<compile_context>
chip_gen: v5e
topology: v5e:2x2
jax: 0.10.0
libtpu: 0.0.40
codegen_flags: <defaults>
</compile_context>

<pallas_src>
import functools

import jax
import jax.numpy as jnp
from jax.experimental import pallas as pl
from jax.experimental.pallas import tpu as pltpu


def _sine_kernel(x_ref, o_ref, *, alpha):
    # Elementwise sin(alpha * x); upcast to f32 for the multiply + sin
    # (important for low-precision inputs since |alpha * x| can be large),
    # then cast back to the output dtype.
    x = x_ref[...].astype(jnp.float32)
    o_ref[...] = jnp.sin(alpha * x).astype(o_ref.dtype)


def _round_up(n, m):
    return ((n + m - 1) // m) * m


def _pick_tile_rows(rows, cols, itemsize, target_bytes=4 << 20):
    """Rows per block: ~target_bytes per tile, multiple of 8, capped at total rows."""
    bytes_per_row = cols * max(int(itemsize), 4)  # conservative (f32 intermediates)
    max_rows = max(8, target_bytes // max(bytes_per_row, 1))
    tile_r = max(8, (max_rows // 8) * 8)
    tile_r = min(tile_r, _round_up(rows, 8))
    return int(tile_r)


def sine(x: jax.Array, alpha: float = 30.0) -> jax.Array:
    """Elementwise sin(alpha * x) via a tiled Pallas TPU kernel."""
    orig_shape = x.shape
    if x.ndim < 2:
        x2d = x.reshape(1, -1)
    else:
        x2d = x.reshape(-1, orig_shape[-1])
    R, C = x2d.shape

    tile_r = _pick_tile_rows(R, C, jnp.dtype(x2d.dtype).itemsize)
    Rp = _round_up(R, tile_r)
    if Rp != R:
        # Wrapper-side glue only: pad rows so the grid divides evenly.
        x2d = jnp.pad(x2d, ((0, Rp - R), (0, 0)))

    kernel = functools.partial(_sine_kernel, alpha=float(alpha))

    out = pl.pallas_call(
        kernel,
        out_shape=jax.ShapeDtypeStruct((Rp, C), x2d.dtype),
        grid_spec=pltpu.PrefetchScalarGridSpec(
            num_scalar_prefetch=0,
            grid=(Rp // tile_r,),
            # Full-width row blocks: contiguous HBM slabs, lane-dense stores.
            in_specs=[pl.BlockSpec((tile_r, C), lambda i: (i, 0))],
            out_specs=pl.BlockSpec((tile_r, C), lambda i: (i, 0)),
        ),
        compiler_params=pltpu.CompilerParams(
            dimension_semantics=("parallel",)),
    )(x2d)

    if Rp != R:
        out = out[:R]
    return out.reshape(orig_shape)


if __name__ == "__main__":
    key = jax.random.PRNGKey(0)
    k1, k2 = jax.random.split(key)
    alpha = 30.0

    # Small NeRF-like activation input (batch, points, hidden).
    x1 = jax.random.normal(k1, (2, 64, 256), dtype=jnp.float32)
    y1 = jax.block_until_ready(sine(x1, alpha))
    ref1 = jnp.sin(alpha * x1)
    assert y1.shape == x1.shape
    assert jnp.allclose(y1, ref1, atol=2e-5, rtol=2e-5), "mismatch vs reference (case 1)"

    # Awkward shape (last dim not a multiple of 128, rows not a multiple of 8)
    # to exercise the padding / full-extent last-dim path.
    x2 = jax.random.normal(k2, (3, 50, 96), dtype=jnp.float32)
    y2 = jax.block_until_ready(sine(x2, alpha))
    ref2 = jnp.sin(alpha * x2)
    assert y2.shape == x2.shape
    assert jnp.allclose(y2, ref2, atol=2e-5, rtol=2e-5), "mismatch vs reference (case 2)"

    print("KERNEL_OK")
</pallas_src>

<mosaic_0001>
module attributes {stable_mosaic.version = 11 : i64} {
  func.func @_sine_kernel(%arg0: i32, %arg1: memref<128x256xf32, #tpu.memory_space<vmem>>, %arg2: memref<128x256xf32, #tpu.memory_space<vmem>>) attributes {dimension_semantics = [#tpu.dimension_semantics<parallel>], iteration_bounds = array<i64: 1>, scalar_prefetch = 0 : i64, scratch_operands = 0 : i64, tpu.core_type = #tpu.core_type<tc>, window_params = [{transform_indices = @transform_0, window_bounds = array<i64: 128, 256>}, {transform_indices = @transform_1, window_bounds = array<i64: 128, 256>}]} {
    %c0 = arith.constant 0 : index
    %c0_0 = arith.constant 0 : index
    %0 = vector.load %arg1[%c0, %c0_0] : memref<128x256xf32, #tpu.memory_space<vmem>>, vector<128x256xf32>
    %cst = arith.constant 3.000000e+01 : f32
    %1 = vector.broadcast %cst : f32 to vector<128x256xf32>
    %2 = arith.mulf %1, %0 : vector<128x256xf32>
    %3 = math.sin %2 : vector<128x256xf32>
    %c0_1 = arith.constant 0 : index
    %c0_2 = arith.constant 0 : index
    %4 = vector.load %arg2[%c0_1, %c0_2] : memref<128x256xf32, #tpu.memory_space<vmem>>, vector<128x256xf32>
    tpu.vector_store %arg2[%c0_1, %c0_2], %3 {strides = array<i32>} : memref<128x256xf32, #tpu.memory_space<vmem>>, vector<128x256xf32>,
    return
  }
  func.func @transform_0(%arg0: i32) -> (i32, i32) {
    %c0_i32 = arith.constant 0 : i32
    %c0_i32_0 = arith.constant 0 : i32
    return %arg0, %c0_i32 : i32, i32
  }
  func.func @transform_1(%arg0: i32) -> (i32, i32) {
    %c0_i32 = arith.constant 0 : i32
    %c0_i32_0 = arith.constant 0 : i32
    return %arg0, %c0_i32 : i32, i32
  }
}

</mosaic_0001>

<llo_original>
// kernel: tpu_custom_call.1
$region0: #{tpu_custom_call.1}
  #allocation0 [shape = 'u32[]', space=smem, size = 0x4, offset = 0x4, fixed_abs, tag = 'smem constant byte address 0x4 - core index']
  #allocation1 [shape = 'u32[72,128]{1,0:T(1,128)}', space=vmem, size = 0x9000, scoped, tag = 'internal scratch']
  %s0 = inlined_call_operand.hbm [shape: f32[128,256], index: 0, kind: input, shape index: {}]
  %s1 = inlined_call_operand.hbm [shape: f32[128,256], index: 1, kind: output, shape index: {}]
  %s2 = sld [smem:[#allocation0]]
  $region18: #{tpu_custom_call.1} parent=0
    _
  %s4 = ssub.s32 1, %s2
  %s5 = scalar_select 0, %s4, %s2
  $region1: #{tpu_custom_call.1} parent=0
    #allocation2 [shape = 'u8[131072]{0}', space=vmem, size = 0x20000, scoped, tag = 'input window, operand 0, single buffered']
    #allocation3 [shape = 's32[1]{0}', space=sflag, size = 0x4, scoped, tag = 'scoped memory for tpu_custom_call.1']
    #allocation4 [shape = 's32[1]{0}', space=sflag, size = 0x4, scoped, tag = 'scoped memory for tpu_custom_call.1']
    #allocation5 [shape = 'u8[131072]{0}', space=vmem, size = 0x20000, scoped, tag = 'output window, operand 0, single buffered']
    %6 = vsyncpa [#allocation3], 0
    %7 = vsyncpa [#allocation4], 0
    // Predicated region
    $region2: #{tpu_custom_call.1} parent=1 // pred_check
      _
    $region3: #{tpu_custom_call.1} parent=1 // pred_check_branch
      %9 = sbr.rel (0) target = $region5
    $region4: #{tpu_custom_call.1} parent=1 // pred_region
      %11 = vsyncadd [#allocation3], 0
      %s12 = sshll.u32 %s0, 4
      %s13 = int_to_ptr.hbm [resolvable:$true] %s12
      %s14 = sshll.u32 [#allocation2], 4
      %s15 = int_to_ptr.vmem [resolvable:$true] %s14
      %20 = dma.hbm_to_vmem [thread:$0]  %s13, 4096, %s15, [#allocation3], 256, 256, 16
    $region5: #{tpu_custom_call.1} parent=1 // pred_fallthru
      _
    // Predicated region
    $region6: #{tpu_custom_call.1} parent=1 // pred_check
      _
    $region7: #{tpu_custom_call.1} parent=1 // pred_check_branch
      %22 = sbr.rel (0) target = $region9
    $region8: #{tpu_custom_call.1} parent=1 // pred_region
      %24 = dma.done [#allocation3], 4096
    $region9: #{tpu_custom_call.1} parent=1 // pred_fallthru
      _
    %v25 = vld [vmem:[#allocation2] sm:$0xff]
    %v26 = vld [vmem:[#allocation2 + $0x8] sm:$0xff]
    %v27 = vld [vmem:[#allocation2 + $0x10] sm:$0xff]
    %v28 = vld [vmem:[#allocation2 + $0x18] sm:$0xff]
    %v29 = vld [vmem:[#allocation2 + $0x20] sm:$0xff]
    %v30 = vld [vmem:[#allocation2 + $0x28] sm:$0xff]
    %v31 = vld [vmem:[#allocation2 + $0x30] sm:$0xff]
    %v32 = vld [vmem:[#allocation2 + $0x38] sm:$0xff]
    %v33 = vld [vmem:[#allocation2 + $0x40] sm:$0xff]
    %v34 = vld [vmem:[#allocation2 + $0x48] sm:$0xff]
    %v35 = vld [vmem:[#allocation2 + $0x50] sm:$0xff]
    %v36 = vld [vmem:[#allocation2 + $0x58] sm:$0xff]
    %v37 = vld [vmem:[#allocation2 + $0x60] sm:$0xff]
    %v38 = vld [vmem:[#allocation2 + $0x68] sm:$0xff]
    %v39 = vld [vmem:[#allocation2 + $0x70] sm:$0xff]
    %v40 = vld [vmem:[#allocation2 + $0x78] sm:$0xff]
    %v41 = vld [vmem:[#allocation2 + $0x80] sm:$0xff]
    %v42 = vld [vmem:[#allocation2 + $0x88] sm:$0xff]
    %v43 = vld [vmem:[#allocation2 + $0x90] sm:$0xff]
    %v44 = vld [vmem:[#allocation2 + $0x98] sm:$0xff]
    %v45 = vld [vmem:[#allocation2 + $0xa0] sm:$0xff]
    %v46 = vld [vmem:[#allocation2 + $0xa8] sm:$0xff]
    %v47 = vld [vmem:[#allocation2 + $0xb0] sm:$0xff]
    %v48 = vld [vmem:[#allocation2 + $0xb8] sm:$0xff]
    %v49 = vld [vmem:[#allocation2 + $0xc0] sm:$0xff]
    %v50 = vld [vmem:[#allocation2 + $0xc8] sm:$0xff]
    %v51 = vld [vmem:[#allocation2 + $0xd0] sm:$0xff]
    %v52 = vld [vmem:[#allocation2 + $0xd8] sm:$0xff]
    %v53 = vld [vmem:[#allocation2 + $0xe0] sm:$0xff]
    %v54 = vld [vmem:[#allocation2 + $0xe8] sm:$0xff]
    %v55 = vld [vmem:[#allocation2 + $0xf0] sm:$0xff]
    %v56 = vld [vmem:[#allocation2 + $0xf8] sm:$0xff]
    %v57 = vmul.f32 %v25, 30.0
    %v58 = vmul.f32 %v26, 30.0
    %v59 = vmul.f32 %v27, 30.0
    %v60 = vmul.f32 %v28, 30.0
    %v61 = vmul.f32 %v29, 30.0
    %v62 = vmul.f32 %v30, 30.0
    %v63 = vmul.f32 %v31, 30.0
    %v64 = vmul.f32 %v32, 30.0
    %v65 = vmul.f32 %v33, 30.0
    %v66 = vmul.f32 %v34, 30.0
    %v67 = vmul.f32 %v35, 30.0
    %v68 = vmul.f32 %v36, 30.0
    %v69 = vmul.f32 %v37, 30.0
    %v70 = vmul.f32 %v38, 30.0
    %v71 = vmul.f32 %v39, 30.0
    %v72 = vmul.f32 %v40, 30.0
    %v73 = vmul.f32 %v41, 30.0
    %v74 = vmul.f32 %v42, 30.0
    %v75 = vmul.f32 %v43, 30.0
    %v76 = vmul.f32 %v44, 30.0
    %v77 = vmul.f32 %v45, 30.0
    %v78 = vmul.f32 %v46, 30.0
    %v79 = vmul.f32 %v47, 30.0
    %v80 = vmul.f32 %v48, 30.0
    %v81 = vmul.f32 %v49, 30.0
    %v82 = vmul.f32 %v50, 30.0
    %v83 = vmul.f32 %v51, 30.0
    %v84 = vmul.f32 %v52, 30.0
    %v85 = vmul.f32 %v53, 30.0
    %v86 = vmul.f32 %v54, 30.0
    %v87 = vmul.f32 %v55, 30.0
    %v88 = vmul.f32 %v56, 30.0
    %v89 = vand.u32 2147483647, %v57
    %vm90 = vcmp.le.f32.partialorder %v89, 0.7853982
    %vm91 = vcmp.lt.s32.totalorder %v57, 0
    %v92 = vand.u32 %v57, 2139095040
    %v93 = vshrl.u32 %v92, 23
    %v94 = vsub.s32 %v93, 127
    %v95 = vand.u32 2147483647, %v57
    %v96 = vand.u32 %v95, 8388607
    %v97 = vor.u32 %v96, 8388608
    %v98 = vsub.s32 0, %v97
    %v99 = vadd.s32 %v94, 1
    %vm100 = vcmp.gt.s32.totalorder %v99, 0
    %v101 = vsel %vm100, %v99, 0
    %v102 = vshrl.u32 %v101, 5
    %v103 = vand.u32 %v101, 31
    %v104 = vsub.s32 32, %v103
    %v105 = vshrl.u32 683565275, %v104
    %v106 = vshll.u32 683565275, %v103
    %v107 = vshrl.u32 2475754826, %v104
    %v108 = vor.u32 %v106, %v107
    %v109 = vshll.u32 2475754826, %v103
    %v110 = vshrl.u32 2131351028, %v104
    %v111 = vor.u32 %v109, %v110
    %v112 = vshll.u32 2131351028, %v103
    %v113 = vshrl.u32 2102212464, %v104
    %v114 = vor.u32 %v112, %v113
    %v115 = vshll.u32 2102212464, %v103
    %v116 = vshrl.u32 920167782, %v104
    %v117 = vor.u32 %v115, %v116
    %v118 = vshll.u32 920167782, %v103
    %v119 = vshrl.u32 1326507024, %v104
    %v120 = vor.u32 %v118, %v119
    %vm121 = vcmp.lt.s32.totalorder %v102, 1
    %vm122 = vcmp.lt.s32.totalorder %v102, 2
    %vm123 = vcmp.lt.s32.totalorder %v102, 3
    %vm124 = vcmp.lt.s32.totalorder %v102, 4
    %v125 = vsel %vm121, %v105, %v108
    %v126 = vsel %vm124, %v114, 2102212464
    %v127 = vsel %vm123, %v111, %v126
    %v128 = vsel %vm122, %v125, %v127
    %v129 = vsel %vm121, %v108, %v111
    %v130 = vsel %vm124, %v117, 920167782
    %v131 = vsel %vm123, %v114, %v130
    %v132 = vsel %vm122, %v129, %v131
    %v133 = vsel %vm121, %v111, %v114
    %v134 = vsel %vm124, %v120, 1326507024
    %v135 = vsel %vm123, %v117, %v134
    %v136 = vsel %vm122, %v133, %v135
    %v137 = vshll.u32 %v97, 8
    %v138 = vand.u32 %v137, 65535
    %v139 = vshrl.u32 %v137, 16
    %v140 = vand.u32 %v136, 65535
    %v141 = vshrl.u32 %v136, 16
    %v142 = vmul.u32 %v138, %v140
    %v143 = vmul.u32 %v138, %v141
    %v144 = vmul.u32 %v139, %v140
    %v145 = vmul.u32 %v139, %v141
    %v146 = vshll.u32 %v143, 16
    %v147 = vshrl.u32 %v143, 16
    %v148 = vshll.u32 %v144, 16
    %v149 = vshrl.u32 %v144, 16
    %vm150 = vc.u32 %v142, %v146
    %v151 = vsel %vm150, 1, 0
    %v152 = vadd.s32 %v142, %v146
    %v153 = vadd.s32 %v145, %v151
    %vm154 = vc.u32 %v152, %v148
    %v155 = vsel %vm154, 1, 0
    %v156 = vadd.s32 %v152, %v148
    %v157 = vadd.s32 %v153, %v155
    %v158 = vadd.s32 %v157, %v147
    %v159 = vadd.s32 %v158, %v149
    %v160 = vand.u32 %v137, 65535
    %v161 = vshrl.u32 %v137, 16
    %v162 = vand.u32 %v132, 65535
    %v163 = vshrl.u32 %v132, 16
    %v164 = vmul.u32 %v160, %v162
    %v165 = vmul.u32 %v160, %v163
    %v166 = vmul.u32 %v161, %v162
    %v167 = vmul.u32 %v161, %v163
    %v168 = vshll.u32 %v165, 16
    %v169 = vshrl.u32 %v165, 16
    %v170 = vshll.u32 %v166, 16
    %v171 = vshrl.u32 %v166, 16
    %vm172 = vc.u32 %v164, %v168
    %v173 = vsel %vm172, 1, 0
    %v174 = vadd.s32 %v164, %v168
    %v175 = vadd.s32 %v167, %v173
    %vm176 = vc.u32 %v174, %v170
    %v177 = vsel %vm176, 1, 0
    %v178 = vadd.s32 %v174, %v170
    %v179 = vadd.s32 %v175, %v177
    %v180 = vadd.s32 %v179, %v169
    %v181 = vadd.s32 %v180, %v171
    %v182 = vmul.u32 %v137, %v128
    %v183 = vadd.s32 %v159, %v178
    %vm184 = vc.u32 %v159, %v178
    %v185 = vadd.s32 %v181, 1
    %v186 = vsel %vm184, %v185, %v181
    %v187 = vadd.s32 %v182, %v186
    %v188 = vadd.s32 %v187, 536870912
    %v189 = vshrl.u32 %v188, 30
    %v190 = vshll.u32 %v189, 30
    %v191 = vsub.s32 %v187, %v190
    %vm192 = vcmp.lt.s32.totalorder %v191, 0
    %v193 = vsub.s32 0, %v191
    %v194 = vsel %vm192, %v193, %v191
    %v195 = vclz %v194
    %v196 = vsub.s32 %v195, 2
    %vm197 = vcmp.gt.s32.totalorder 0, %v196
    %v198 = vsel %vm197, 0, %v196
    %v199 = vsub.s32 32, %v198
    %v200 = vshll.u32 %v191, %v198
    %v201 = vshrl.u32 %v183, %v199
    %v202 = vor.u32 %v200, %v201
    %v203 = vsub.s32 4294967266, %v198
    %v204 = vadd.s32 %v203, 127
    %v205 = vshll.u32 %v204, 23
    %v206 = vor.u32 4788187, %v205
    %v207 = vand.u32 2147483647, %v206
    %v209 = vcvt.s32.f32 %v202
    %v210 = vmul.f32 %v209, %v207
    %v211 = vxor.u32 %v210, 2147483648
    %v212 = vsel %vm91, %v211, %v210
    %v213 = vsub.s32 4, %v189
    %v214 = vsel %vm91, %v213, %v189
    %v215 = vsel %vm90, %v57, %v212
    %v216 = vsel %vm90, 0, %v214
    %v217 = vmul.f32 %v215, %v215
    %v218 = vmul.f32 %v217, -0.001358992
    %v219 = vadd.f32 %v218, 0.041655596
    %v220 = vmul.f32 %v217, %v219
    %v221 = vadd.f32 %v220, -0.4999988
    %v222 = vmul.f32 %v217, %v221
    %v223 = vadd.f32 1.0, %v222
    %v224 = vmul.f32 %v215, %v215
    %v225 = vmul.f32 %v224, -0.00019511016
    %v226 = vadd.f32 %v225, 0.008332121
    %v227 = vmul.f32 %v224, %v226
    %v228 = vadd.f32 %v227, -0.16666654
    %v229 = vmul.f32 %v224, %v228
    %v230 = vadd.f32 %v229, 1.0
    %v231 = vmul.f32 %v230, %v215
    %vm232 = vweird.f32 %v57
    %v233 = vadd.s32 %v216, 3
    %v234 = vand.u32 %v233, 3
    %vm235 = vcmp.lt.s32.totalorder %v234, 2
    %vm236 = vcmp.eq.s32.totalorder %v234, 0
    %v237 = vxor.u32 %v231, 2147483648
    %v238 = vsel %vm236, %v223, %v237
    %vm239 = vcmp.eq.s32.totalorder %v234, 2
    %v240 = vxor.u32 %v223, 2147483648
    %v241 = vsel %vm239, %v240, %v231
    %v242 = vsel %vm235, %v238, %v241
    %v243 = vsel %vm232, nan, %v242
    %v244 = vand.u32 2147483647, %v58
    %vm245 = vcmp.le.f32.partialorder %v244, 0.7853982
    %vm246 = vcmp.lt.s32.totalorder %v58, 0
    %v247 = vand.u32 %v58, 2139095040
    %v248 = vshrl.u32 %v247, 23
    %v249 = vsub.s32 %v248, 127
    %v250 = vand.u32 2147483647, %v58
    %v251 = vand.u32 %v250, 8388607
    %v252 = vor.u32 %v251, 8388608
    %v253 = vsub.s32 0, %v252
    %v254 = vadd.s32 %v249, 1
    %vm255 = vcmp.gt.s32.totalorder %v254, 0
    %v256 = vsel %vm255, %v254, 0
    %v257 = vshrl.u32 %v256, 5
    %v258 = vand.u32 %v256, 31
    %v259 = vsub.s32 32, %v258
    %v260 = vshrl.u32 683565275, %v259
    %v261 = vshll.u32 683565275, %v258
    %v262 = vshrl.u32 2475754826, %v259
    %v263 = vor.u32 %v261, %v262
    %v264 = vshll.u32 2475754826, %v258
    %v265 = vshrl.u32 2131351028, %v259
    %v266 = vor.u32 %v264, %v265
    %v267 = vshll.u32 2131351028, %v258
    %v268 = vshrl.u32 2102212464, %v259
    %v269 = vor.u32 %v267, %v268
    %v270 = vshll.u32 2102212464, %v258
    %v271 = vshrl.u32 920167782, %v259
    %v272 = vor.u32 %v270, %v271
    %v273 = vshll.u32 920167782, %v258
    %v274 = vshrl.u32 1326507024, %v259
    %v275 = vor.u32 %v273, %v274
    %vm276 = vcmp.lt.s32.totalorder %v257, 1
    %vm277 = vcmp.lt.s32.totalorder %v257, 2
    %vm278 = vcmp.lt.s32.totalorder %v257, 3
    %vm279 = vcmp.lt.s32.totalorder %v257, 4
    %v280 = vsel %vm276, %v260, %v263
    %v281 = vsel %vm279, %v269, 2102212464
    %v282 = vsel %vm278, %v266, %v281
    %v283 = vsel %vm277, %v280, %v282
    %v284 = vsel %vm276, %v263, %v266
    %v285 = vsel %vm279, %v272, 920167782
    %v286 = vsel %vm278, %v269, %v285
    %v287 = vsel %vm277, %v284, %v286
    %v288 = vsel %vm276, %v266, %v269
    %v289 = vsel %vm279, %v275, 1326507024
    %v290 = vsel %vm278, %v272, %v289
    %v291 = vsel %vm277, %v288, %v290
    %v292 = vshll.u32 %v252, 8
    %v293 = vand.u32 %v292, 65535
    %v294 = vshrl.u32 %v292, 16
    %v295 = vand.u32 %v291, 65535
    %v296 = vshrl.u32 %v291, 16
    %v297 = vmul.u32 %v293, %v295
    %v298 = vmul.u32 %v293, %v296
    %v299 = vmul.u32 %v294, %v295
    %v300 = vmul.u32 %v294, %v296
    %v301 = vshll.u32 %v298, 16
    %v302 = vshrl.u32 %v298, 16
    %v303 = vshll.u32 %v299, 16
    %v304 = vshrl.u32 %v299, 16
    %vm305 = vc.u32 %v297, %v301
    %v306 = vsel %vm305, 1, 0
    %v307 = vadd.s32 %v297, %v301
    %v308 = vadd.s32 %v300, %v306
    %vm309 = vc.u32 %v307, %v303
    %v310 = vsel %vm309, 1, 0
    %v311 = vadd.s32 %v307, %v303
    %v312 = vadd.s32 %v308, %v310
    %v313 = vadd.s32 %v312, %v302
    %v314 = vadd.s32 %v313, %v304
    %v315 = vand.u32 %v292, 65535
    %v316 = vshrl.u32 %v292, 16
    %v317 = vand.u32 %v287, 65535
    %v318 = vshrl.u32 %v287, 16
    %v319 = vmul.u32 %v315, %v317
    %v320 = vmul.u32 %v315, %v318
    %v321 = vmul.u32 %v316, %v317
    %v322 = vmul.u32 %v316, %v318
    %v323 = vshll.u32 %v320, 16
    %v324 = vshrl.u32 %v320, 16
    %v325 = vshll.u32 %v321, 16
    %v326 = vshrl.u32 %v321, 16
    %vm327 = vc.u32 %v319, %v323
    %v328 = vsel %vm327, 1, 0
    %v329 = vadd.s32 %v319, %v323
    %v330 = vadd.s32 %v322, %v328
    %vm331 = vc.u32 %v329, %v325
    %v332 = vsel %vm331, 1, 0
    %v333 = vadd.s32 %v329, %v325
    %v334 = vadd.s32 %v330, %v332
    %v335 = vadd.s32 %v334, %v324
    %v336 = vadd.s32 %v335, %v326
    %v337 = vmul.u32 %v292, %v283
    %v338 = vadd.s32 %v314, %v333
    %vm339 = vc.u32 %v314, %v333
    %v340 = vadd.s32 %v336, 1
    %v341 = vsel %vm339, %v340, %v336
    %v342 = vadd.s32 %v337, %v341
    %v343 = vadd.s32 %v342, 536870912
    %v344 = vshrl.u32 %v343, 30
    %v345 = vshll.u32 %v344, 30
    %v346 = vsub.s32 %v342, %v345
    %vm347 = vcmp.lt.s32.totalorder %v346, 0
    %v348 = vsub.s32 0, %v346
    %v349 = vsel %vm347, %v348, %v346
    %v350 = vclz %v349
    %v351 = vsub.s32 %v350, 2
    %vm352 = vcmp.gt.s32.totalorder 0, %v351
    %v353 = vsel %vm352, 0, %v351
    %v354 = vsub.s32 32, %v353
    %v355 = vshll.u32 %v346, %v353
    %v356 = vshrl.u32 %v338, %v354
    %v357 = vor.u32 %v355, %v356
    %v358 = vsub.s32 4294967266, %v353
    %v359 = vadd.s32 %v358, 127
    %v360 = vshll.u32 %v359, 23
    %v361 = vor.u32 4788187, %v360
    %v362 = vand.u32 2147483647, %v361
    %v364 = vcvt.s32.f32 %v357
    %v365 = vmul.f32 %v364, %v362
    %v366 = vxor.u32 %v365, 2147483648
    %v367 = vsel %vm246, %v366, %v365
    %v368 = vsub.s32 4, %v344
    %v369 = vsel %vm246, %v368, %v344
    %v370 = vsel %vm245, %v58, %v367
    %v371 = vsel %vm245, 0, %v369
    %v372 = vmul.f32 %v370, %v370
    %v373 = vmul.f32 %v372, -0.001358992
    %v374 = vadd.f32 %v373, 0.041655596
    %v375 = vmul.f32 %v372, %v374
    %v376 = vadd.f32 %v375, -0.4999988
    %v377 = vmul.f32 %v372, %v376
    %v378 = vadd.f32 1.0, %v377
    %v379 = vmul.f32 %v370, %v370
    %v380 = vmul.f32 %v379, -0.00019511016
    %v381 = vadd.f32 %v380, 0.008332121
    %v382 = vmul.f32 %v379, %v381
    %v383 = vadd.f32 %v382, -0.16666654
    %v384 = vmul.f32 %v379, %v383
    %v385 = vadd.f32 %v384, 1.0
    %v386 = vmul.f32 %v385, %v370
    %vm387 = vweird.f32 %v58
    %v388 = vadd.s32 %v371, 3
    %v389 = vand.u32 %v388, 3
    %vm390 = vcmp.lt.s32.totalorder %v389, 2
    %vm391 = vcmp.eq.s32.totalorder %v389, 0
    %v392 = vxor.u32 %v386, 2147483648
    %v393 = vsel %vm391, %v378, %v392
    %vm394 = vcmp.eq.s32.totalorder %v389, 2
    %v395 = vxor.u32 %v378, 2147483648
    %v396 = vsel %vm394, %v395, %v386
    %v397 = vsel %vm390, %v393, %v396
    %v398 = vsel %vm387, nan, %v397
    %v399 = vand.u32 2147483647, %v59
    %vm400 = vcmp.le.f32.partialorder %v399, 0.7853982
    %vm401 = vcmp.lt.s32.totalorder %v59, 0
    %v402 = vand.u32 %v59, 2139095040
    %v403 = vshrl.u32 %v402, 23
    %v404 = vsub.s32 %v403, 127
    %v405 = vand.u32 2147483647, %v59
    %v406 = vand.u32 %v405, 8388607
    %v407 = vor.u32 %v406, 8388608
    %v408 = vsub.s32 0, %v407
    %v409 = vadd.s32 %v404, 1
    %vm410 = vcmp.gt.s32.totalorder %v409, 0
    %v411 = vsel %vm410, %v409, 0
    %v412 = vshrl.u32 %v411, 5
    %v413 = vand.u32 %v411, 31
    %v414 = vsub.s32 32, %v413
    %v415 = vshrl.u32 683565275, %v414
    %v416 = vshll.u32 683565275, %v413
    %v417 = vshrl.u32 2475754826, %v414
    %v418 = vor.u32 %v416, %v417
    %v419 = vshll.u32 2475754826, %v413
    %v420 = vshrl.u32 2131351028, %v414
    %v421 = vor.u32 %v419, %v420
    %v422 = vshll.u32 2131351028, %v413
    %v423 = vshrl.u32 2102212464, %v414
    %v424 = vor.u32 %v422, %v423
    %v425 = vshll.u32 2102212464, %v413
    %v426 = vshrl.u32 920167782, %v414
    %v427 = vor.u32 %v425, %v426
    %v428 = vshll.u32 920167782, %v413
    %v429 = vshrl.u32 1326507024, %v414
    %v430 = vor.u32 %v428, %v429
    %vm431 = vcmp.lt.s32.totalorder %v412, 1
    %vm432 = vcmp.lt.s32.totalorder %v412, 2
    %vm433 = vcmp.lt.s32.totalorder %v412, 3
    %vm434 = vcmp.lt.s32.totalorder %v412, 4
    %v435 = vsel %vm431, %v415, %v418
    %v436 = vsel %vm434, %v424, 2102212464
    %v437 = vsel %vm433, %v421, %v436
    %v438 = vsel %vm432, %v435, %v437
    %v439 = vsel %vm431, %v418, %v421
    %v440 = vsel %vm434, %v427, 920167782
    %v441 = vsel %vm433, %v424, %v440
    %v442 = vsel %vm432, %v439, %v441
    %v443 = vsel %vm431, %v421, %v424
    %v444 = vsel %vm434, %v430, 1326507024
    %v445 = vsel %vm433, %v427, %v444
    %v446 = vsel %vm432, %v443, %v445
    %v447 = vshll.u32 %v407, 8
    %v448 = vand.u32 %v447, 65535
    %v449 = vshrl.u32 %v447, 16
    %v450 = vand.u32 %v446, 65535
    %v451 = vshrl.u32 %v446, 16
    %v452 = vmul.u32 %v448, %v450
    %v453 = vmul.u32 %v448, %v451
    %v454 = vmul.u32 %v449, %v450
    %v455 = vmul.u32 %v449, %v451
    %v456 = vshll.u32 %v453, 16
    %v457 = vshrl.u32 %v453, 16
    %v458 = vshll.u32 %v454, 16
    %v459 = vshrl.u32 %v454, 16
    %vm460 = vc.u32 %v452, %v456
    %v461 = vsel %vm460, 1, 0
    %v462 = vadd.s32 %v452, %v456
    %v463 = vadd.s32 %v455, %v461
    %vm464 = vc.u32 %v462, %v458
    %v465 = vsel %vm464, 1, 0
    %v466 = vadd.s32 %v462, %v458
    %v467 = vadd.s32 %v463, %v465
    %v468 = vadd.s32 %v467, %v457
    %v469 = vadd.s32 %v468, %v459
    %v470 = vand.u32 %v447, 65535
    %v471 = vshrl.u32 %v447, 16
    %v472 = vand.u32 %v442, 65535
    %v473 = vshrl.u32 %v442, 16
    %v474 = vmul.u32 %v470, %v472
    %v475 = vmul.u32 %v470, %v473
    %v476 = vmul.u32 %v471, %v472
    %v477 = vmul.u32 %v471, %v473
    %v478 = vshll.u32 %v475, 16
    %v479 = vshrl.u32 %v475, 16
    %v480 = vshll.u32 %v476, 16
    %v481 = vshrl.u32 %v476, 16
    %vm482 = vc.u32 %v474, %v478
    %v483 = vsel %vm482, 1, 0
    %v484 = vadd.s32 %v474, %v478
    %v485 = vadd.s32 %v477, %v483
    %vm486 = vc.u32 %v484, %v480
    %v487 = vsel %vm486, 1, 0
    %v488 = vadd.s32 %v484, %v480
    %v489 = vadd.s32 %v485, %v487
    %v490 = vadd.s32 %v489, %v479
    %v491 = vadd.s32 %v490, %v481
    %v492 = vmul.u32 %v447, %v438
    %v493 = vadd.s32 %v469, %v488
    %vm494 = vc.u32 %v469, %v488
    %v495 = vadd.s32 %v491, 1
    %v496 = vsel %vm494, %v495, %v491
    %v497 = vadd.s32 %v492, %v496
    %v498 = vadd.s32 %v497, 536870912
    %v499 = vshrl.u32 %v498, 30
    %v500 = vshll.u32 %v499, 30
    %v501 = vsub.s32 %v497, %v500
    %vm502 = vcmp.lt.s32.totalorder %v501, 0
    %v503 = vsub.s32 0, %v501
    %v504 = vsel %vm502, %v503, %v501
    %v505 = vclz %v504
    %v506 = vsub.s32 %v505, 2
    %vm507 = vcmp.gt.s32.totalorder 0, %v506
    %v508 = vsel %vm507, 0, %v506
    %v509 = vsub.s32 32, %v508
    %v510 = vshll.u32 %v501, %v508
    %v511 = vshrl.u32 %v493, %v509
    %v512 = vor.u32 %v510, %v511
    %v513 = vsub.s32 4294967266, %v508
    %v514 = vadd.s32 %v513, 127
    %v515 = vshll.u32 %v514, 23
    %v516 = vor.u32 4788187, %v515
    %v517 = vand.u32 2147483647, %v516
    %v519 = vcvt.s32.f32 %v512
    %v520 = vmul.f32 %v519, %v517
    %v521 = vxor.u32 %v520, 2147483648
    %v522 = vsel %vm401, %v521, %v520
    %v523 = vsub.s32 4, %v499
    %v524 = vsel %vm401, %v523, %v499
    %v525 = vsel %vm400, %v59, %v522
    %v526 = vsel %vm400, 0, %v524
    %v527 = vmul.f32 %v525, %v525
    %v528 = vmul.f32 %v527, -0.001358992
    %v529 = vadd.f32 %v528, 0.041655596
    %v530 = vmul.f32 %v527, %v529
    %v531 = vadd.f32 %v530, -0.4999988
    %v532 = vmul.f32 %v527, %v531
    %v533 = vadd.f32 1.0, %v532
    %v534 = vmul.f32 %v525, %v525
    %v535 = vmul.f32 %v534, -0.00019511016
    %v536 = vadd.f32 %v535, 0.008332121
    %v537 = vmul.f32 %v534, %v536
    %v538 = vadd.f32 %v537, -0.16666654
    %v539 = vmul.f32 %v534, %v538
    %v540 = vadd.f32 %v539, 1.0
    %v541 = vmul.f32 %v540, %v525
    %vm542 = vweird.f32 %v59
    %v543 = vadd.s32 %v526, 3
    %v544 = vand.u32 %v543, 3
    %vm545 = vcmp.lt.s32.totalorder %v544, 2
    %vm546 = vcmp.eq.s32.totalorder %v544, 0
    %v547 = vxor.u32 %v541, 2147483648
    %v548 = vsel %vm546, %v533, %v547
    %vm549 = vcmp.eq.s32.totalorder %v544, 2
    %v550 = vxor.u32 %v533, 2147483648
    %v551 = vsel %vm549, %v550, %v541
    %v552 = vsel %vm545, %v548, %v551
    %v553 = vsel %vm542, nan, %v552
    %v554 = vand.u32 2147483647, %v60
    %vm555 = vcmp.le.f32.partialorder %v554, 0.7853982
    %vm556 = vcmp.lt.s32.totalorder %v60, 0
    %v557 = vand.u32 %v60, 2139095040
    %v558 = vshrl.u32 %v557, 23
    %v559 = vsub.s32 %v558, 127
    %v560 = vand.u32 2147483647, %v60
    %v561 = vand.u32 %v560, 8388607
    %v562 = vor.u32 %v561, 8388608
    %v563 = vsub.s32 0, %v562
    %v564 = vadd.s32 %v559, 1
    %vm565 = vcmp.gt.s32.totalorder %v564, 0
    %v566 = vsel %vm565, %v564, 0
    %v567 = vshrl.u32 %v566, 5
    %v568 = vand.u32 %v566, 31
    %v569 = vsub.s32 32, %v568
    %v570 = vshrl.u32 683565275, %v569
    %v571 = vshll.u32 683565275, %v568
    %v572 = vshrl.u32 2475754826, %v569
    %v573 = vor.u32 %v571, %v572
    %v574 = vshll.u32 2475754826, %v568
    %v575 = vshrl.u32 2131351028, %v569
    %v576 = vor.u32 %v574, %v575
    %v577 = vshll.u32 2131351028, %v568
    %v578 = vshrl.u32 2102212464, %v569
    %v579 = vor.u32 %v577, %v578
    %v580 = vshll.u32 2102212464, %v568
    %v581 = vshrl.u32 920167782, %v569
    %v582 = vor.u32 %v580, %v581
    %v583 = vshll.u32 920167782, %v568
    %v584 = vshrl.u32 1326507024, %v569
    %v585 = vor.u32 %v583, %v584
    %vm586 = vcmp.lt.s32.totalorder %v567, 1
    %vm587 = vcmp.lt.s32.totalorder %v567, 2
    %vm588 = vcmp.lt.s32.totalorder %v567, 3
    %vm589 = vcmp.lt.s32.totalorder %v567, 4
    %v590 = vsel %vm586, %v570, %v573
    %v591 = vsel %vm589, %v579, 2102212464
    %v592 = vsel %vm588, %v576, %v591
    %v593 = vsel %vm587, %v590, %v592
    %v594 = vsel %vm586, %v573, %v576
    %v595 = vsel %vm589, %v582, 920167782
    %v596 = vsel %vm588, %v579, %v595
    %v597 = vsel %vm587, %v594, %v596
    %v598 = vsel %vm586, %v576, %v579
    %v599 = vsel %vm589, %v585, 1326507024
    %v600 = vsel %vm588, %v582, %v599
    %v601 = vsel %vm587, %v598, %v600
    %v602 = vshll.u32 %v562, 8
    %v603 = vand.u32 %v602, 65535
    %v604 = vshrl.u32 %v602, 16
    %v605 = vand.u32 %v601, 65535
    %v606 = vshrl.u32 %v601, 16
    %v607 = vmul.u32 %v603, %v605
    %v608 = vmul.u32 %v603, %v606
    %v609 = vmul.u32 %v604, %v605
    %v610 = vmul.u32 %v604, %v606
    %v611 = vshll.u32 %v608, 16
    %v612 = vshrl.u32 %v608, 16
    %v613 = vshll.u32 %v609, 16
    %v614 = vshrl.u32 %v609, 16
    %vm615 = vc.u32 %v607, %v611
    %v616 = vsel %vm615, 1, 0
    %v617 = vadd.s32 %v607, %v611
    %v618 = vadd.s32 %v610, %v616
    %vm619 = vc.u32 %v617, %v613
    %v620 = vsel %vm619, 1, 0
    %v621 = vadd.s32 %v617, %v613
    %v622 = vadd.s32 %v618, %v620
    %v623 = vadd.s32 %v622, %v612
    %v624 = vadd.s32 %v623, %v614
    %v625 = vand.u32 %v602, 65535
    %v626 = vshrl.u32 %v602, 16
    %v627 = vand.u32 %v597, 65535
    %v628 = vshrl.u32 %v597, 16
    %v629 = vmul.u32 %v625, %v627
    %v630 = vmul.u32 %v625, %v628
    %v631 = vmul.u32 %v626, %v627
    %v632 = vmul.u32 %v626, %v628
    %v633 = vshll.u32 %v630, 16
    %v634 = vshrl.u32 %v630, 16
    %v635 = vshll.u32 %v631, 16
    %v636 = vshrl.u32 %v631, 16
    %vm637 = vc.u32 %v629, %v633
    %v638 = vsel %vm637, 1, 0
    %v639 = vadd.s32 %v629, %v633
    %v640 = vadd.s32 %v632, %v638
    %vm641 = vc.u32 %v639, %v635
    %v642 = vsel %vm641, 1, 0
    %v643 = vadd.s32 %v639, %v635
    %v644 = vadd.s32 %v640, %v642
    %v645 = vadd.s32 %v644, %v634
    %v646 = vadd.s32 %v645, %v636
    %v647 = vmul.u32 %v602, %v593
    %v648 = vadd.s32 %v624, %v643
    %vm649 = vc.u32 %v624, %v643
    %v650 = vadd.s32 %v646, 1
    %v651 = vsel %vm649, %v650, %v646
    %v652 = vadd.s32 %v647, %v651
    %v653 = vadd.s32 %v652, 536870912
    %v654 = vshrl.u32 %v653, 30
    %v655 = vshll.u32 %v654, 30
    %v656 = vsub.s32 %v652, %v655
    %vm657 = vcmp.lt.s32.totalorder %v656, 0
    %v658 = vsub.s32 0, %v656
    %v659 = vsel %vm657, %v658, %v656
    %v660 = vclz %v659
    %v661 = vsub.s32 %v660, 2
    %vm662 = vcmp.gt.s32.totalorder 0, %v661
    %v663 = vsel %vm662, 0, %v661
    %v664 = vsub.s32 32, %v663
    %v665 = vshll.u32 %v656, %v663
    %v666 = vshrl.u32 %v648, %v664
    %v667 = vor.u32 %v665, %v666
    %v668 = vsub.s32 4294967266, %v663
    %v669 = vadd.s32 %v668, 127
    %v670 = vshll.u32 %v669, 23
    %v671 = vor.u32 4788187, %v670
    %v672 = vand.u32 2147483647, %v671
    %v674 = vcvt.s32.f32 %v667
    %v675 = vmul.f32 %v674, %v672
    %v676 = vxor.u32 %v675, 2147483648
    %v677 = vsel %vm556, %v676, %v675
    %v678 = vsub.s32 4, %v654
    %v679 = vsel %vm556, %v678, %v654
    %v680 = vsel %vm555, %v60, %v677
    %v681 = vsel %vm555, 0, %v679
    %v682 = vmul.f32 %v680, %v680
    %v683 = vmul.f32 %v682, -0.001358992
    %v684 = vadd.f32 %v683, 0.041655596
    %v685 = vmul.f32 %v682, %v684
    %v686 = vadd.f32 %v685, -0.4999988
    %v687 = vmul.f32 %v682, %v686
    %v688 = vadd.f32 1.0, %v687
    %v689 = vmul.f32 %v680, %v680
    %v690 = vmul.f32 %v689, -0.00019511016
    %v691 = vadd.f32 %v690, 0.008332121
    %v692 = vmul.f32 %v689, %v691
    %v693 = vadd.f32 %v692, -0.16666654
    %v694 = vmul.f32 %v689, %v693
    %v695 = vadd.f32 %v694, 1.0
    %v696 = vmul.f32 %v695, %v680
    %vm697 = vweird.f32 %v60
    %v698 = vadd.s32 %v681, 3
    %v699 = vand.u32 %v698, 3
    %vm700 = vcmp.lt.s32.totalorder %v699, 2
    %vm701 = vcmp.eq.s32.totalorder %v699, 0
    %v702 = vxor.u32 %v696, 2147483648
    %v703 = vsel %vm701, %v688, %v702
    %vm704 = vcmp.eq.s32.totalorder %v699, 2
    %v705 = vxor.u32 %v688, 2147483648
    %v706 = vsel %vm704, %v705, %v696
    %v707 = vsel %vm700, %v703, %v706
    %v708 = vsel %vm697, nan, %v707
    %v709 = vand.u32 2147483647, %v61
    %vm710 = vcmp.le.f32.partialorder %v709, 0.7853982
    %vm711 = vcmp.lt.s32.totalorder %v61, 0
    %v712 = vand.u32 %v61, 2139095040
    %v713 = vshrl.u32 %v712, 23
    %v714 = vsub.s32 %v713, 127
    %v715 = vand.u32 2147483647, %v61
    %v716 = vand.u32 %v715, 8388607
    %v717 = vor.u32 %v716, 8388608
    %v718 = vsub.s32 0, %v717
    %v719 = vadd.s32 %v714, 1
    %vm720 = vcmp.gt.s32.totalorder %v719, 0
    %v721 = vsel %vm720, %v719, 0
    %v722 = vshrl.u32 %v721, 5
    %v723 = vand.u32 %v721, 31
    %v724 = vsub.s32 32, %v723
    %v725 = vshrl.u32 683565275, %v724
    %v726 = vshll.u32 683565275, %v723
    %v727 = vshrl.u32 2475754826, %v724
    %v728 = vor.u32 %v726, %v727
    %v729 = vshll.u32 2475754826, %v723
    %v730 = vshrl.u32 2131351028, %v724
    %v731 = vor.u32 %v729, %v730
    %v732 = vshll.u32 2131351028, %v723
    %v733 = vshrl.u32 2102212464, %v724
    %v734 = vor.u32 %v732, %v733
    %v735 = vshll.u32 2102212464, %v723
    %v736 = vshrl.u32 920167782, %v724
    %v737 = vor.u32 %v735, %v736
    %v738 = vshll.u32 920167782, %v723
    %v739 = vshrl.u32 1326507024, %v724
    %v740 = vor.u32 %v738, %v739
    %vm741 = vcmp.lt.s32.totalorder %v722, 1
    %vm742 = vcmp.lt.s32.totalorder %v722, 2
    %vm743 = vcmp.lt.s32.totalorder %v722, 3
    %vm744 = vcmp.lt.s32.totalorder %v722, 4
    %v745 = vsel %vm741, %v725, %v728
    %v746 = vsel %vm744, %v734, 2102212464
    %v747 = vsel %vm743, %v731, %v746
    %v748 = vsel %vm742, %v745, %v747
    %v749 = vsel %vm741, %v728, %v731
    %v750 = vsel %vm744, %v737, 920167782
    %v751 = vsel %vm743, %v734, %v750
    %v752 = vsel %vm742, %v749, %v751
    %v753 = vsel %vm741, %v731, %v734
    %v754 = vsel %vm744, %v740, 1326507024
    %v755 = vsel %vm743, %v737, %v754
    %v756 = vsel %vm742, %v753, %v755
    %v757 = vshll.u32 %v717, 8
    %v758 = vand.u32 %v757, 65535
    %v759 = vshrl.u32 %v757, 16
    %v760 = vand.u32 %v756, 65535
    %v761 = vshrl.u32 %v756, 16
    %v762 = vmul.u32 %v758, %v760
    %v763 = vmul.u32 %v758, %v761
    %v764 = vmul.u32 %v759, %v760
    %v765 = vmul.u32 %v759, %v761
    %v766 = vshll.u32 %v763, 16
    %v767 = vshrl.u32 %v763, 16
    %v768 = vshll.u32 %v764, 16
    %v769 = vshrl.u32 %v764, 16
    %vm770 = vc.u32 %v762, %v766
    %v771 = vsel %vm770, 1, 0
    %v772 = vadd.s32 %v762, %v766
    %v773 = vadd.s32 %v765, %v771
    %vm774 = vc.u32 %v772, %v768
    %v775 = vsel %vm774, 1, 0
    %v776 = vadd.s32 %v772, %v768
    %v777 = vadd.s32 %v773, %v775
    %v778 = vadd.s32 %v777, %v767
    %v779 = vadd.s32 %v778, %v769
    %v780 = vand.u32 %v757, 65535
    %v781 = vshrl.u32 %v757, 16
    %v782 = vand.u32 %v752, 65535
    %v783 = vshrl.u32 %v752, 16
    %v784 = vmul.u32 %v780, %v782
    %v785 = vmul.u32 %v780, %v783
    %v786 = vmul.u32 %v781, %v782
    %v787 = vmul.u32 %v781, %v783
    %v788 = vshll.u32 %v785, 16
    %v789 = vshrl.u32 %v785, 16
    %v790 = vshll.u32 %v786, 16
    %v791 = vshrl.u32 %v786, 16
    %vm792 = vc.u32 %v784, %v788
    %v793 = vsel %vm792, 1, 0
    %v794 = vadd.s32 %v784, %v788
    %v795 = vadd.s32 %v787, %v793
    %vm796 = vc.u32 %v794, %v790
    %v797 = vsel %vm796, 1, 0
    %v798 = vadd.s32 %v794, %v790
    %v799 = vadd.s32 %v795, %v797
    %v800 = vadd.s32 %v799, %v789
    %v801 = vadd.s32 %v800, %v791
    %v802 = vmul.u32 %v757, %v748
    %v803 = vadd.s32 %v779, %v798
    %vm804 = vc.u32 %v779, %v798
    %v805 = vadd.s32 %v801, 1
    %v806 = vsel %vm804, %v805, %v801
    %v807 = vadd.s32 %v802, %v806
    %v808 = vadd.s32 %v807, 536870912
    %v809 = vshrl.u32 %v808, 30
    %v810 = vshll.u32 %v809, 30
    %v811 = vsub.s32 %v807, %v810
    %vm812 = vcmp.lt.s32.totalorder %v811, 0
    %v813 = vsub.s32 0, %v811
    %v814 = vsel %vm812, %v813, %v811
    %v815 = vclz %v814
    %v816 = vsub.s32 %v815, 2
    %vm817 = vcmp.gt.s32.totalorder 0, %v816
    %v818 = vsel %vm817, 0, %v816
    %v819 = vsub.s32 32, %v818
    %v820 = vshll.u32 %v811, %v818
    %v821 = vshrl.u32 %v803, %v819
    %v822 = vor.u32 %v820, %v821
    %v823 = vsub.s32 4294967266, %v818
    %v824 = vadd.s32 %v823, 127
    %v825 = vshll.u32 %v824, 23
    %v826 = vor.u32 4788187, %v825
    %v827 = vand.u32 2147483647, %v826
    %v829 = vcvt.s32.f32 %v822
    %v830 = vmul.f32 %v829, %v827
    %v831 = vxor.u32 %v830, 2147483648
    %v832 = vsel %vm711, %v831, %v830
    %v833 = vsub.s32 4, %v809
    %v834 = vsel %vm711, %v833, %v809
    %v835 = vsel %vm710, %v61, %v832
    %v836 = vsel %vm710, 0, %v834
    %v837 = vmul.f32 %v835, %v835
    %v838 = vmul.f32 %v837, -0.001358992
    %v839 = vadd.f32 %v838, 0.041655596
    %v840 = vmul.f32 %v837, %v839
    %v841 = vadd.f32 %v840, -0.4999988
    %v842 = vmul.f32 %v837, %v841
    %v843 = vadd.f32 1.0, %v842
    %v844 = vmul.f32 %v835, %v835
    %v845 = vmul.f32 %v844, -0.00019511016
    %v846 = vadd.f32 %v845, 0.008332121
    %v847 = vmul.f32 %v844, %v846
    %v848 = vadd.f32 %v847, -0.16666654
    %v849 = vmul.f32 %v844, %v848
    %v850 = vadd.f32 %v849, 1.0
    %v851 = vmul.f32 %v850, %v835
    %vm852 = vweird.f32 %v61
    %v853 = vadd.s32 %v836, 3
    %v854 = vand.u32 %v853, 3
    %vm855 = vcmp.lt.s32.totalorder %v854, 2
    %vm856 = vcmp.eq.s32.totalorder %v854, 0
    %v857 = vxor.u32 %v851, 2147483648
    %v858 = vsel %vm856, %v843, %v857
    %vm859 = vcmp.eq.s32.totalorder %v854, 2
    %v860 = vxor.u32 %v843, 2147483648
    %v861 = vsel %vm859, %v860, %v851
    %v862 = vsel %vm855, %v858, %v861
    %v863 = vsel %vm852, nan, %v862
    %v864 = vand.u32 2147483647, %v62
    %vm865 = vcmp.le.f32.partialorder %v864, 0.7853982
    %vm866 = vcmp.lt.s32.totalorder %v62, 0
    %v867 = vand.u32 %v62, 2139095040
    %v868 = vshrl.u32 %v867, 23
    %v869 = vsub.s32 %v868, 127
    %v870 = vand.u32 2147483647, %v62
    %v871 = vand.u32 %v870, 8388607
    %v872 = vor.u32 %v871, 8388608
    %v873 = vsub.s32 0, %v872
    %v874 = vadd.s32 %v869, 1
    %vm875 = vcmp.gt.s32.totalorder %v874, 0
    %v876 = vsel %vm875, %v874, 0
    %v877 = vshrl.u32 %v876, 5
    %v878 = vand.u32 %v876, 31
    %v879 = vsub.s32 32, %v878
    %v880 = vshrl.u32 683565275, %v879
    %v881 = vshll.u32 683565275, %v878
    %v882 = vshrl.u32 2475754826, %v879
    %v883 = vor.u32 %v881, %v882
    %v884 = vshll.u32 2475754826, %v878
    %v885 = vshrl.u32 2131351028, %v879
    %v886 = vor.u32 %v884, %v885
    %v887 = vshll.u32 2131351028, %v878
    %v888 = vshrl.u32 2102212464, %v879
    %v889 = vor.u32 %v887, %v888
    %v890 = vshll.u32 2102212464, %v878
    %v891 = vshrl.u32 920167782, %v879
    %v892 = vor.u32 %v890, %v891
    %v893 = vshll.u32 920167782, %v878
    %v894 = vshrl.u32 1326507024, %v879
    %v895 = vor.u32 %v893, %v894
    %vm896 = vcmp.lt.s32.totalorder %v877, 1
    %vm897 = vcmp.lt.s32.totalorder %v877, 2
    %vm898 = vcmp.lt.s32.totalorder %v877, 3
    %vm899 = vcmp.lt.s32.totalorder %v877, 4
    %v900 = vsel %vm896, %v880, %v883
    %v901 = vsel %vm899, %v889, 2102212464
    %v902 = vsel %vm898, %v886, %v901
    %v903 = vsel %vm897, %v900, %v902
    %v904 = vsel %vm896, %v883, %v886
    %v905 = vsel %vm899, %v892, 920167782
    %v906 = vsel %vm898, %v889, %v905
    %v907 = vsel %vm897, %v904, %v906
    %v908 = vsel %vm896, %v886, %v889
    %v909 = vsel %vm899, %v895, 1326507024
    %v910 = vsel %vm898, %v892, %v909
    %v911 = vsel %vm897, %v908, %v910
    %v912 = vshll.u32 %v872, 8
    %v913 = vand.u32 %v912, 65535
    %v914 = vshrl.u32 %v912, 16
    %v915 = vand.u32 %v911, 65535
    %v916 = vshrl.u32 %v911, 16
    %v917 = vmul.u32 %v913, %v915
    %v918 = vmul.u32 %v913, %v916
    %v919 = vmul.u32 %v914, %v915
    %v920 = vmul.u32 %v914, %v916
    %v921 = vshll.u32 %v918, 16
    %v922 = vshrl.u32 %v918, 16
    %v923 = vshll.u32 %v919, 16
    %v924 = vshrl.u32 %v919, 16
    %vm925 = vc.u32 %v917, %v921
    %v926 = vsel %vm925, 1, 0
    %v927 = vadd.s32 %v917, %v921
    %v928 = vadd.s32 %v920, %v926
    %vm929 = vc.u32 %v927, %v923
    %v930 = vsel %vm929, 1, 0
    %v931 = vadd.s32 %v927, %v923
    %v932 = vadd.s32 %v928, %v930
    %v933 = vadd.s32 %v932, %v922
    %v934 = vadd.s32 %v933, %v924
    %v935 = vand.u32 %v912, 65535
    %v936 = vshrl.u32 %v912, 16
    %v937 = vand.u32 %v907, 65535
    %v938 = vshrl.u32 %v907, 16
    %v939 = vmul.u32 %v935, %v937
    %v940 = vmul.u32 %v935, %v938
    %v941 = vmul.u32 %v936, %v937
    %v942 = vmul.u32 %v936, %v938
    %v943 = vshll.u32 %v940, 16
    %v944 = vshrl.u32 %v940, 16
    %v945 = vshll.u32 %v941, 16
    %v946 = vshrl.u32 %v941, 16
    %vm947 = vc.u32 %v939, %v943
    %v948 = vsel %vm947, 1, 0
    %v949 = vadd.s32 %v939, %v943
    %v950 = vadd.s32 %v942, %v948
    %vm951 = vc.u32 %v949, %v945
    %v952 = vsel %vm951, 1, 0
    %v953 = vadd.s32 %v949, %v945
    %v954 = vadd.s32 %v950, %v952
    %v955 = vadd.s32 %v954, %v944
    %v956 = vadd.s32 %v955, %v946
    %v957 = vmul.u32 %v912, %v903
    %v958 = vadd.s32 %v934, %v953
    %vm959 = vc.u32 %v934, %v953
    %v960 = vadd.s32 %v956, 1
    %v961 = vsel %vm959, %v960, %v956
    %v962 = vadd.s32 %v957, %v961
    %v963 = vadd.s32 %v962, 536870912
    %v964 = vshrl.u32 %v963, 30
    %v965 = vshll.u32 %v964, 30
    %v966 = vsub.s32 %v962, %v965
    %vm967 = vcmp.lt.s32.totalorder %v966, 0
    %v968 = vsub.s32 0, %v966
    %v969 = vsel %vm967, %v968, %v966
    %v970 = vclz %v969
    %v971 = vsub.s32 %v970, 2
    %vm972 = vcmp.gt.s32.totalorder 0, %v971
    %v973 = vsel %vm972, 0, %v971
    %v974 = vsub.s32 32, %v973
    %v975 = vshll.u32 %v966, %v973
    %v976 = vshrl.u32 %v958, %v974
    %v977 = vor.u32 %v975, %v976
    %v978 = vsub.s32 4294967266, %v973
    %v979 = vadd.s32 %v978, 127
    %v980 = vshll.u32 %v979, 23
    %v981 = vor.u32 4788187, %v980
    %v982 = vand.u32 2147483647, %v981
    %v984 = vcvt.s32.f32 %v977
    %v985 = vmul.f32 %v984, %v982
    %v986 = vxor.u32 %v985, 2147483648
    %v987 = vsel %vm866, %v986, %v985
    %v988 = vsub.s32 4, %v964
    %v989 = vsel %vm866, %v988, %v964
    %v990 = vsel %vm865, %v62, %v987
    %v991 = vsel %vm865, 0, %v989
    %v992 = vmul.f32 %v990, %v990
    %v993 = vmul.f32 %v992, -0.001358992
    %v994 = vadd.f32 %v993, 0.041655596
    %v995 = vmul.f32 %v992, %v994
    %v996 = vadd.f32 %v995, -0.4999988
    %v997 = vmul.f32 %v992, %v996
    %v998 = vadd.f32 1.0, %v997
    %v999 = vmul.f32 %v990, %v990
    %v1000 = vmul.f32 %v999, -0.00019511016
    %v1001 = vadd.f32 %v1000, 0.008332121
    %v1002 = vmul.f32 %v999, %v1001
    %v1003 = vadd.f32 %v1002, -0.16666654
    %v1004 = vmul.f32 %v999, %v1003
    %v1005 = vadd.f32 %v1004, 1.0
    %v1006 = vmul.f32 %v1005, %v990
    %vm1007 = vweird.f32 %v62
    %v1008 = vadd.s32 %v991, 3
    %v1009 = vand.u32 %v1008, 3
    %vm1010 = vcmp.lt.s32.totalorder %v1009, 2
    %vm1011 = vcmp.eq.s32.totalorder %v1009, 0
    %v1012 = vxor.u32 %v1006, 2147483648
    %v1013 = vsel %vm1011, %v998, %v1012
    %vm1014 = vcmp.eq.s32.totalorder %v1009, 2
    %v1015 = vxor.u32 %v998, 2147483648
    %v1016 = vsel %vm1014, %v1015, %v1006
    %v1017 = vsel %vm1010, %v1013, %v1016
    %v1018 = vsel %vm1007, nan, %v1017
    %v1019 = vand.u32 2147483647, %v63
    %vm1020 = vcmp.le.f32.partialorder %v1019, 0.7853982
    %vm1021 = vcmp.lt.s32.totalorder %v63, 0
    %v1022 = vand.u32 %v63, 2139095040
    %v1023 = vshrl.u32 %v1022, 23
    %v1024 = vsub.s32 %v1023, 127
    %v1025 = vand.u32 2147483647, %v63
    %v1026 = vand.u32 %v1025, 8388607
    %v1027 = vor.u32 %v1026, 8388608
    %v1028 = vsub.s32 0, %v1027
    %v1029 = vadd.s32 %v1024, 1
    %vm1030 = vcmp.gt.s32.totalorder %v1029, 0
    %v1031 = vsel %vm1030, %v1029, 0
    %v1032 = vshrl.u32 %v1031, 5
    %v1033 = vand.u32 %v1031, 31
    %v1034 = vsub.s32 32, %v1033
    %v1035 = vshrl.u32 683565275, %v1034
    %v1036 = vshll.u32 683565275, %v1033
    %v1037 = vshrl.u32 2475754826, %v1034
    %v1038 = vor.u32 %v1036, %v1037
    %v1039 = vshll.u32 2475754826, %v1033
    %v1040 = vshrl.u32 2131351028, %v1034
    %v1041 = vor.u32 %v1039, %v1040
    %v1042 = vshll.u32 2131351028, %v1033
    %v1043 = vshrl.u32 2102212464, %v1034
    %v1044 = vor.u32 %v1042, %v1043
    %v1045 = vshll.u32 2102212464, %v1033
    %v1046 = vshrl.u32 920167782, %v1034
    %v1047 = vor.u32 %v1045, %v1046
    %v1048 = vshll.u32 920167782, %v1033
    %v1049 = vshrl.u32 1326507024, %v1034
    %v1050 = vor.u32 %v1048, %v1049
    %vm1051 = vcmp.lt.s32.totalorder %v1032, 1
    %vm1052 = vcmp.lt.s32.totalorder %v1032, 2
    %vm1053 = vcmp.lt.s32.totalorder %v1032, 3
    %vm1054 = vcmp.lt.s32.totalorder %v1032, 4
    %v1055 = vsel %vm1051, %v1035, %v1038
    %v1056 = vsel %vm1054, %v1044, 2102212464
    %v1057 = vsel %vm1053, %v1041, %v1056
    %v1058 = vsel %vm1052, %v1055, %v1057
    %v1059 = vsel %vm1051, %v1038, %v1041
    %v1060 = vsel %vm1054, %v1047, 920167782
    %v1061 = vsel %vm1053, %v1044, %v1060
    %v1062 = vsel %vm1052, %v1059, %v1061
    %v1063 = vsel %vm1051, %v1041, %v1044
    %v1064 = vsel %vm1054, %v1050, 1326507024
    %v1065 = vsel %vm1053, %v1047, %v1064
    %v1066 = vsel %vm1052, %v1063, %v1065
    %v1067 = vshll.u32 %v1027, 8
    %v1068 = vand.u32 %v1067, 65535
    %v1069 = vshrl.u32 %v1067, 16
    %v1070 = vand.u32 %v1066, 65535
    %v1071 = vshrl.u32 %v1066, 16
    %v1072 = vmul.u32 %v1068, %v1070
    %v1073 = vmul.u32 %v1068, %v1071
    %v1074 = vmul.u32 %v1069, %v1070
    %v1075 = vmul.u32 %v1069, %v1071
    %v1076 = vshll.u32 %v1073, 16
    %v1077 = vshrl.u32 %v1073, 16
    %v1078 = vshll.u32 %v1074, 16
    %v1079 = vshrl.u32 %v1074, 16
    %vm1080 = vc.u32 %v1072, %v1076
    %v1081 = vsel %vm1080, 1, 0
    %v1082 = vadd.s32 %v1072, %v1076
    %v1083 = vadd.s32 %v1075, %v1081
    %vm1084 = vc.u32 %v1082, %v1078
    %v1085 = vsel %vm1084, 1, 0
    %v1086 = vadd.s32 %v1082, %v1078
    %v1087 = vadd.s32 %v1083, %v1085
    %v1088 = vadd.s32 %v1087, %v1077
    %v1089 = vadd.s32 %v1088, %v1079
    %v1090 = vand.u32 %v1067, 65535
    %v1091 = vshrl.u32 %v1067, 16
    %v1092 = vand.u32 %v1062, 65535
    %v1093 = vshrl.u32 %v1062, 16
    %v1094 = vmul.u32 %v1090, %v1092
    %v1095 = vmul.u32 %v1090, %v1093
    %v1096 = vmul.u32 %v1091, %v1092
    %v1097 = vmul.u32 %v1091, %v1093
    %v1098 = vshll.u32 %v1095, 16
    %v1099 = vshrl.u32 %v1095, 16
    %v1100 = vshll.u32 %v1096, 16
    %v1101 = vshrl.u32 %v1096, 16
    %vm1102 = vc.u32 %v1094, %v1098
    %v1103 = vsel %vm1102, 1, 0
    %v1104 = vadd.s32 %v1094, %v1098
    %v1105 = vadd.s32 %v1097, %v1103
    %vm1106 = vc.u32 %v1104, %v1100
    %v1107 = vsel %vm1106, 1, 0
    %v1108 = vadd.s32 %v1104, %v1100
    %v1109 = vadd.s32 %v1105, %v1107
    %v1110 = vadd.s32 %v1109, %v1099
    %v1111 = vadd.s32 %v1110, %v1101
    %v1112 = vmul.u32 %v1067, %v1058
    %v1113 = vadd.s32 %v1089, %v1108
    %vm1114 = vc.u32 %v1089, %v1108
    %v1115 = vadd.s32 %v1111, 1
    %v1116 = vsel %vm1114, %v1115, %v1111
    %v1117 = vadd.s32 %v1112, %v1116
    %v1118 = vadd.s32 %v1117, 536870912
    %v1119 = vshrl.u32 %v1118, 30
    %v1120 = vshll.u32 %v1119, 30
    %v1121 = vsub.s32 %v1117, %v1120
    %vm1122 = vcmp.lt.s32.totalorder %v1121, 0
    %v1123 = vsub.s32 0, %v1121
    %v1124 = vsel %vm1122, %v1123, %v1121
    %v1125 = vclz %v1124
    %v1126 = vsub.s32 %v1125, 2
    %vm1127 = vcmp.gt.s32.totalorder 0, %v1126
    %v1128 = vsel %vm1127, 0, %v1126
    %v1129 = vsub.s32 32, %v1128
    %v1130 = vshll.u32 %v1121, %v1128
    %v1131 = vshrl.u32 %v1113, %v1129
    %v1132 = vor.u32 %v1130, %v1131
    %v1133 = vsub.s32 4294967266, %v1128
    %v1134 = vadd.s32 %v1133, 127
    %v1135 = vshll.u32 %v1134, 23
    %v1136 = vor.u32 4788187, %v1135
    %v1137 = vand.u32 2147483647, %v1136
    %v1139 = vcvt.s32.f32 %v1132
    %v1140 = vmul.f32 %v1139, %v1137
    %v1141 = vxor.u32 %v1140, 2147483648
    %v1142 = vsel %vm1021, %v1141, %v1140
    %v1143 = vsub.s32 4, %v1119
    %v1144 = vsel %vm1021, %v1143, %v1119
    %v1145 = vsel %vm1020, %v63, %v1142
    %v1146 = vsel %vm1020, 0, %v1144
    %v1147 = vmul.f32 %v1145, %v1145
    %v1148 = vmul.f32 %v1147, -0.001358992
    %v1149 = vadd.f32 %v1148, 0.041655596
    %v1150 = vmul.f32 %v1147, %v1149
    %v1151 = vadd.f32 %v1150, -0.4999988
    %v1152 = vmul.f32 %v1147, %v1151
    %v1153 = vadd.f32 1.0, %v1152
    %v1154 = vmul.f32 %v1145, %v1145
    %v1155 = vmul.f32 %v1154, -0.00019511016
    %v1156 = vadd.f32 %v1155, 0.008332121
    %v1157 = vmul.f32 %v1154, %v1156
    %v1158 = vadd.f32 %v1157, -0.16666654
    %v1159 = vmul.f32 %v1154, %v1158
    %v1160 = vadd.f32 %v1159, 1.0
    %v1161 = vmul.f32 %v1160, %v1145
    %vm1162 = vweird.f32 %v63
    %v1163 = vadd.s32 %v1146, 3
    %v1164 = vand.u32 %v1163, 3
    %vm1165 = vcmp.lt.s32.totalorder %v1164, 2
    %vm1166 = vcmp.eq.s32.totalorder %v1164, 0
    %v1167 = vxor.u32 %v1161, 2147483648
    %v1168 = vsel %vm1166, %v1153, %v1167
    %vm1169 = vcmp.eq.s32.totalorder %v1164, 2
    %v1170 = vxor.u32 %v1153, 2147483648
    %v1171 = vsel %vm1169, %v1170, %v1161
    %v1172 = vsel %vm1165, %v1168, %v1171
    %v1173 = vsel %vm1162, nan, %v1172
    %v1174 = vand.u32 2147483647, %v64
    %vm1175 = vcmp.le.f32.partialorder %v1174, 0.7853982
    %vm1176 = vcmp.lt.s32.totalorder %v64, 0
    %v1177 = vand.u32 %v64, 2139095040
    %v1178 = vshrl.u32 %v1177, 23
    %v1179 = vsub.s32 %v1178, 127
    %v1180 = vand.u32 2147483647, %v64
    %v1181 = vand.u32 %v1180, 8388607
    %v1182 = vor.u32 %v1181, 8388608
    %v1183 = vsub.s32 0, %v1182
    %v1184 = vadd.s32 %v1179, 1
    %vm1185 = vcmp.gt.s32.totalorder %v1184, 0
    %v1186 = vsel %vm1185, %v1184, 0
    %v1187 = vshrl.u32 %v1186, 5
    %v1188 = vand.u32 %v1186, 31
    %v1189 = vsub.s32 32, %v1188
    %v1190 = vshrl.u32 683565275, %v1189
    %v1191 = vshll.u32 683565275, %v1188
    %v1192 = vshrl.u32 2475754826, %v1189
    %v1193 = vor.u32 %v1191, %v1192
    %v1194 = vshll.u32 2475754826, %v1188
    %v1195 = vshrl.u32 2131351028, %v1189
    %v1196 = vor.u32 %v1194, %v1195
    %v1197 = vshll.u32 2131351028, %v1188
    %v1198 = vshrl.u32 2102212464, %v1189
    %v1199 = vor.u32 %v1197, %v1198
    %v1200 = vshll.u32 2102212464, %v1188
    %v1201 = vshrl.u32 920167782, %v1189
    %v1202 = vor.u32 %v1200, %v1201
    %v1203 = vshll.u32 920167782, %v1188
    %v1204 = vshrl.u32 1326507024, %v1189
    %v1205 = vor.u32 %v1203, %v1204
    %vm1206 = vcmp.lt.s32.totalorder %v1187, 1
    %vm1207 = vcmp.lt.s32.totalorder %v1187, 2
    %vm1208 = vcmp.lt.s32.totalorder %v1187, 3
    %vm1209 = vcmp.lt.s32.totalorder %v1187, 4
    %v1210 = vsel %vm1206, %v1190, %v1193
    %v1211 = vsel %vm1209, %v1199, 2102212464
    %v1212 = vsel %vm1208, %v1196, %v1211
    %v1213 = vsel %vm1207, %v1210, %v1212
    %v1214 = vsel %vm1206, %v1193, %v1196
    %v1215 = vsel %vm1209, %v1202, 920167782
    %v1216 = vsel %vm1208, %v1199, %v1215
    %v1217 = vsel %vm1207, %v1214, %v1216
    %v1218 = vsel %vm1206, %v1196, %v1199
    %v1219 = vsel %vm1209, %v1205, 1326507024
    %v1220 = vsel %vm1208, %v1202, %v1219
    %v1221 = vsel %vm1207, %v1218, %v1220
    %v1222 = vshll.u32 %v1182, 8
    %v1223 = vand.u32 %v1222, 65535
    %v1224 = vshrl.u32 %v1222, 16
    %v1225 = vand.u32 %v1221, 65535
    %v1226 = vshrl.u32 %v1221, 16
    %v1227 = vmul.u32 %v1223, %v1225
    %v1228 = vmul.u32 %v1223, %v1226
    %v1229 = vmul.u32 %v1224, %v1225
    %v1230 = vmul.u32 %v1224, %v1226
    %v1231 = vshll.u32 %v1228, 16
    %v1232 = vshrl.u32 %v1228, 16
    %v1233 = vshll.u32 %v1229, 16
    %v1234 = vshrl.u32 %v1229, 16
    %vm1235 = vc.u32 %v1227, %v1231
    %v1236 = vsel %vm1235, 1, 0
    %v1237 = vadd.s32 %v1227, %v1231
    %v1238 = vadd.s32 %v1230, %v1236
    %vm1239 = vc.u32 %v1237, %v1233
    %v1240 = vsel %vm1239, 1, 0
    %v1241 = vadd.s32 %v1237, %v1233
    %v1242 = vadd.s32 %v1238, %v1240
    %v1243 = vadd.s32 %v1242, %v1232
    %v1244 = vadd.s32 %v1243, %v1234
    %v1245 = vand.u32 %v1222, 65535
    %v1246 = vshrl.u32 %v1222, 16
    %v1247 = vand.u32 %v1217, 65535
    %v1248 = vshrl.u32 %v1217, 16
    %v1249 = vmul.u32 %v1245, %v1247
    %v1250 = vmul.u32 %v1245, %v1248
    %v1251 = vmul.u32 %v1246, %v1247
    %v1252 = vmul.u32 %v1246, %v1248
    %v1253 = vshll.u32 %v1250, 16
    %v1254 = vshrl.u32 %v1250, 16
    %v1255 = vshll.u32 %v1251, 16
    %v1256 = vshrl.u32 %v1251, 16
    %vm1257 = vc.u32 %v1249, %v1253
    %v1258 = vsel %vm1257, 1, 0
    %v1259 = vadd.s32 %v1249, %v1253
    %v1260 = vadd.s32 %v1252, %v1258
    %vm1261 = vc.u32 %v1259, %v1255
    %v1262 = vsel %vm1261, 1, 0
    %v1263 = vadd.s32 %v1259, %v1255
    %v1264 = vadd.s32 %v1260, %v1262
    %v1265 = vadd.s32 %v1264, %v1254
    %v1266 = vadd.s32 %v1265, %v1256
    %v1267 = vmul.u32 %v1222, %v1213
    %v1268 = vadd.s32 %v1244, %v1263
    %vm1269 = vc.u32 %v1244, %v1263
    %v1270 = vadd.s32 %v1266, 1
    %v1271 = vsel %vm1269, %v1270, %v1266
    %v1272 = vadd.s32 %v1267, %v1271
    %v1273 = vadd.s32 %v1272, 536870912
    %v1274 = vshrl.u32 %v1273, 30
    %v1275 = vshll.u32 %v1274, 30
    %v1276 = vsub.s32 %v1272, %v1275
    %vm1277 = vcmp.lt.s32.totalorder %v1276, 0
    %v1278 = vsub.s32 0, %v1276
    %v1279 = vsel %vm1277, %v1278, %v1276
    %v1280 = vclz %v1279
    %v1281 = vsub.s32 %v1280, 2
    %vm1282 = vcmp.gt.s32.totalorder 0, %v1281
    %v1283 = vsel %vm1282, 0, %v1281
    %v1284 = vsub.s32 32, %v1283
    %v1285 = vshll.u32 %v1276, %v1283
    %v1286 = vshrl.u32 %v1268, %v1284
    %v1287 = vor.u32 %v1285, %v1286
    %v1288 = vsub.s32 4294967266, %v1283
    %v1289 = vadd.s32 %v1288, 127
    %v1290 = vshll.u32 %v1289, 23
    %v1291 = vor.u32 4788187, %v1290
    %v1292 = vand.u32 2147483647, %v1291
    %v1294 = vcvt.s32.f32 %v1287
    %v1295 = vmul.f32 %v1294, %v1292
    %v1296 = vxor.u32 %v1295, 2147483648
    %v1297 = vsel %vm1176, %v1296, %v1295
    %v1298 = vsub.s32 4, %v1274
    %v1299 = vsel %vm1176, %v1298, %v1274
    %v1300 = vsel %vm1175, %v64, %v1297
    %v1301 = vsel %vm1175, 0, %v1299
    %v1302 = vmul.f32 %v1300, %v1300
    %v1303 = vmul.f32 %v1302, -0.001358992
    %v1304 = vadd.f32 %v1303, 0.041655596
    %v1305 = vmul.f32 %v1302, %v1304
    %v1306 = vadd.f32 %v1305, -0.4999988
    %v1307 = vmul.f32 %v1302, %v1306
    %v1308 = vadd.f32 1.0, %v1307
    %v1309 = vmul.f32 %v1300, %v1300
    %v1310 = vmul.f32 %v1309, -0.00019511016
    %v1311 = vadd.f32 %v1310, 0.008332121
    %v1312 = vmul.f32 %v1309, %v1311
    %v1313 = vadd.f32 %v1312, -0.16666654
    %v1314 = vmul.f32 %v1309, %v1313
    %v1315 = vadd.f32 %v1314, 1.0
    %v1316 = vmul.f32 %v1315, %v1300
    %vm1317 = vweird.f32 %v64
    %v1318 = vadd.s32 %v1301, 3
    %v1319 = vand.u32 %v1318, 3
    %vm1320 = vcmp.lt.s32.totalorder %v1319, 2
    %vm1321 = vcmp.eq.s32.totalorder %v1319, 0
    %v1322 = vxor.u32 %v1316, 2147483648
    %v1323 = vsel %vm1321, %v1308, %v1322
    %vm1324 = vcmp.eq.s32.totalorder %v1319, 2
    %v1325 = vxor.u32 %v1308, 2147483648
    %v1326 = vsel %vm1324, %v1325, %v1316
    %v1327 = vsel %vm1320, %v1323, %v1326
    %v1328 = vsel %vm1317, nan, %v1327
    %v1329 = vand.u32 2147483647, %v65
    %vm1330 = vcmp.le.f32.partialorder %v1329, 0.7853982
    %vm1331 = vcmp.lt.s32.totalorder %v65, 0
    %v1332 = vand.u32 %v65, 2139095040
    %v1333 = vshrl.u32 %v1332, 23
    %v1334 = vsub.s32 %v1333, 127
    %v1335 = vand.u32 2147483647, %v65
    %v1336 = vand.u32 %v1335, 8388607
    %v1337 = vor.u32 %v1336, 8388608
    %v1338 = vsub.s32 0, %v1337
    %v1339 = vadd.s32 %v1334, 1
    %vm1340 = vcmp.gt.s32.totalorder %v1339, 0
    %v1341 = vsel %vm1340, %v1339, 0
    %v1342 = vshrl.u32 %v1341, 5
    %v1343 = vand.u32 %v1341, 31
    %v1344 = vsub.s32 32, %v1343
    %v1345 = vshrl.u32 683565275, %v1344
    %v1346 = vshll.u32 683565275, %v1343
    %v1347 = vshrl.u32 2475754826, %v1344
    %v1348 = vor.u32 %v1346, %v1347
    %v1349 = vshll.u32 2475754826, %v1343
    %v1350 = vshrl.u32 2131351028, %v1344
    %v1351 = vor.u32 %v1349, %v1350
    %v1352 = vshll.u32 2131351028, %v1343
    %v1353 = vshrl.u32 2102212464, %v1344
    %v1354 = vor.u32 %v1352, %v1353
    %v1355 = vshll.u32 2102212464, %v1343
    %v1356 = vshrl.u32 920167782, %v1344
    %v1357 = vor.u32 %v1355, %v1356
    %v1358 = vshll.u32 920167782, %v1343
    %v1359 = vshrl.u32 1326507024, %v1344
    %v1360 = vor.u32 %v1358, %v1359
    %vm1361 = vcmp.lt.s32.totalorder %v1342, 1
    %vm1362 = vcmp.lt.s32.totalorder %v1342, 2
    %vm1363 = vcmp.lt.s32.totalorder %v1342, 3
    %vm1364 = vcmp.lt.s32.totalorder %v1342, 4
    %v1365 = vsel %vm1361, %v1345, %v1348
    %v1366 = vsel %vm1364, %v1354, 2102212464
    %v1367 = vsel %vm1363, %v1351, %v1366
    %v1368 = vsel %vm1362, %v1365, %v1367
    %v1369 = vsel %vm1361, %v1348, %v1351
    %v1370 = vsel %vm1364, %v1357, 920167782
    %v1371 = vsel %vm1363, %v1354, %v1370
    %v1372 = vsel %vm1362, %v1369, %v1371
    %v1373 = vsel %vm1361, %v1351, %v1354
    %v1374 = vsel %vm1364, %v1360, 1326507024
    %v1375 = vsel %vm1363, %v1357, %v1374
    %v1376 = vsel %vm1362, %v1373, %v1375
    %v1377 = vshll.u32 %v1337, 8
    %v1378 = vand.u32 %v1377, 65535
    %v1379 = vshrl.u32 %v1377, 16
    %v1380 = vand.u32 %v1376, 65535
    %v1381 = vshrl.u32 %v1376, 16
    %v1382 = vmul.u32 %v1378, %v1380
    %v1383 = vmul.u32 %v1378, %v1381
    %v1384 = vmul.u32 %v1379, %v1380
    %v1385 = vmul.u32 %v1379, %v1381
    %v1386 = vshll.u32 %v1383, 16
    %v1387 = vshrl.u32 %v1383, 16
    %v1388 = vshll.u32 %v1384, 16
    %v1389 = vshrl.u32 %v1384, 16
    %vm1390 = vc.u32 %v1382, %v1386
    %v1391 = vsel %vm1390, 1, 0
    %v1392 = vadd.s32 %v1382, %v1386
    %v1393 = vadd.s32 %v1385, %v1391
    %vm1394 = vc.u32 %v1392, %v1388
    %v1395 = vsel %vm1394, 1, 0
    %v1396 = vadd.s32 %v1392, %v1388
    %v1397 = vadd.s32 %v1393, %v1395
    %v1398 = vadd.s32 %v1397, %v1387
    %v1399 = vadd.s32 %v1398, %v1389
    %v1400 = vand.u32 %v1377, 65535
    %v1401 = vshrl.u32 %v1377, 16
    %v1402 = vand.u32 %v1372, 65535
    %v1403 = vshrl.u32 %v1372, 16
    %v1404 = vmul.u32 %v1400, %v1402
    %v1405 = vmul.u32 %v1400, %v1403
    %v1406 = vmul.u32 %v1401, %v1402
    %v1407 = vmul.u32 %v1401, %v1403
    %v1408 = vshll.u32 %v1405, 16
    %v1409 = vshrl.u32 %v1405, 16
    %v1410 = vshll.u32 %v1406, 16
    %v1411 = vshrl.u32 %v1406, 16
    %vm1412 = vc.u32 %v1404, %v1408
    %v1413 = vsel %vm1412, 1, 0
    %v1414 = vadd.s32 %v1404, %v1408
    %v1415 = vadd.s32 %v1407, %v1413
    %vm1416 = vc.u32 %v1414, %v1410
    %v1417 = vsel %vm1416, 1, 0
    %v1418 = vadd.s32 %v1414, %v1410
    %v1419 = vadd.s32 %v1415, %v1417
    %v1420 = vadd.s32 %v1419, %v1409
    %v1421 = vadd.s32 %v1420, %v1411
    %v1422 = vmul.u32 %v1377, %v1368
    %v1423 = vadd.s32 %v1399, %v1418
    %vm1424 = vc.u32 %v1399, %v1418
    %v1425 = vadd.s32 %v1421, 1
    %v1426 = vsel %vm1424, %v1425, %v1421
    %v1427 = vadd.s32 %v1422, %v1426
    %v1428 = vadd.s32 %v1427, 536870912
    %v1429 = vshrl.u32 %v1428, 30
    %v1430 = vshll.u32 %v1429, 30
    %v1431 = vsub.s32 %v1427, %v1430
    %vm1432 = vcmp.lt.s32.totalorder %v1431, 0
    %v1433 = vsub.s32 0, %v1431
    %v1434 = vsel %vm1432, %v1433, %v1431
    %v1435 = vclz %v1434
    %v1436 = vsub.s32 %v1435, 2
    %vm1437 = vcmp.gt.s32.totalorder 0, %v1436
    %v1438 = vsel %vm1437, 0, %v1436
    %v1439 = vsub.s32 32, %v1438
    %v1440 = vshll.u32 %v1431, %v1438
    %v1441 = vshrl.u32 %v1423, %v1439
    %v1442 = vor.u32 %v1440, %v1441
    %v1443 = vsub.s32 4294967266, %v1438
    %v1444 = vadd.s32 %v1443, 127
    %v1445 = vshll.u32 %v1444, 23
    %v1446 = vor.u32 4788187, %v1445
    %v1447 = vand.u32 2147483647, %v1446
    %v1449 = vcvt.s32.f32 %v1442
    %v1450 = vmul.f32 %v1449, %v1447
    %v1451 = vxor.u32 %v1450, 2147483648
    %v1452 = vsel %vm1331, %v1451, %v1450
    %v1453 = vsub.s32 4, %v1429
    %v1454 = vsel %vm1331, %v1453, %v1429
    %v1455 = vsel %vm1330, %v65, %v1452
    %v1456 = vsel %vm1330, 0, %v1454
    %v1457 = vmul.f32 %v1455, %v1455
    %v1458 = vmul.f32 %v1457, -0.001358992
    %v1459 = vadd.f32 %v1458, 0.041655596
    %v1460 = vmul.f32 %v1457, %v1459
    %v1461 = vadd.f32 %v1460, -0.4999988
    %v1462 = vmul.f32 %v1457, %v1461
    %v1463 = vadd.f32 1.0, %v1462
    %v1464 = vmul.f32 %v1455, %v1455
    %v1465 = vmul.f32 %v1464, -0.00019511016
    %v1466 = vadd.f32 %v1465, 0.008332121
    %v1467 = vmul.f32 %v1464, %v1466
    %v1468 = vadd.f32 %v1467, -0.16666654
    %v1469 = vmul.f32 %v1464, %v1468
    %v1470 = vadd.f32 %v1469, 1.0
    %v1471 = vmul.f32 %v1470, %v1455
    %vm1472 = vweird.f32 %v65
    %v1473 = vadd.s32 %v1456, 3
    %v1474 = vand.u32 %v1473, 3
    %vm1475 = vcmp.lt.s32.totalorder %v1474, 2
    %vm1476 = vcmp.eq.s32.totalorder %v1474, 0
    %v1477 = vxor.u32 %v1471, 2147483648
    %v1478 = vsel %vm1476, %v1463, %v1477
    %vm1479 = vcmp.eq.s32.totalorder %v1474, 2
    %v1480 = vxor.u32 %v1463, 2147483648
    %v1481 = vsel %vm1479, %v1480, %v1471
    %v1482 = vsel %vm1475, %v1478, %v1481
    %v1483 = vsel %vm1472, nan, %v1482
    %v1484 = vand.u32 2147483647, %v66
    %vm1485 = vcmp.le.f32.partialorder %v1484, 0.7853982
    %vm1486 = vcmp.lt.s32.totalorder %v66, 0
    %v1487 = vand.u32 %v66, 2139095040
    %v1488 = vshrl.u32 %v1487, 23
    %v1489 = vsub.s32 %v1488, 127
    %v1490 = vand.u32 2147483647, %v66
    %v1491 = vand.u32 %v1490, 8388607
    %v1492 = vor.u32 %v1491, 8388608
    %v1493 = vsub.s32 0, %v1492
    %v1494 = vadd.s32 %v1489, 1
    %vm1495 = vcmp.gt.s32.totalorder %v1494, 0
    %v1496 = vsel %vm1495, %v1494, 0
    %v1497 = vshrl.u32 %v1496, 5
    %v1498 = vand.u32 %v1496, 31
    %v1499 = vsub.s32 32, %v1498
    %v1500 = vshrl.u32 683565275, %v1499
    %v1501 = vshll.u32 683565275, %v1498
    %v1502 = vshrl.u32 2475754826, %v1499
    %v1503 = vor.u32 %v1501, %v1502
    %v1504 = vshll.u32 2475754826, %v1498
    %v1505 = vshrl.u32 2131351028, %v1499
    %v1506 = vor.u32 %v1504, %v1505
    %v1507 = vshll.u32 2131351028, %v1498
    %v1508 = vshrl.u32 2102212464, %v1499
    %v1509 = vor.u32 %v1507, %v1508
    %v1510 = vshll.u32 2102212464, %v1498
    %v1511 = vshrl.u32 920167782, %v1499
    %v1512 = vor.u32 %v1510, %v1511
    %v1513 = vshll.u32 920167782, %v1498
    %v1514 = vshrl.u32 1326507024, %v1499
    %v1515 = vor.u32 %v1513, %v1514
    %vm1516 = vcmp.lt.s32.totalorder %v1497, 1
    %vm1517 = vcmp.lt.s32.totalorder %v1497, 2
    %vm1518 = vcmp.lt.s32.totalorder %v1497, 3
    %vm1519 = vcmp.lt.s32.totalorder %v1497, 4
    %v1520 = vsel %vm1516, %v1500, %v1503
    %v1521 = vsel %vm1519, %v1509, 2102212464
    %v1522 = vsel %vm1518, %v1506, %v1521
    %v1523 = vsel %vm1517, %v1520, %v1522
    %v1524 = vsel %vm1516, %v1503, %v1506
    %v1525 = vsel %vm1519, %v1512, 920167782
    %v1526 = vsel %vm1518, %v1509, %v1525
    %v1527 = vsel %vm1517, %v1524, %v1526
    %v1528 = vsel %vm1516, %v1506, %v1509
    %v1529 = vsel %vm1519, %v1515, 1326507024
    %v1530 = vsel %vm1518, %v1512, %v1529
    %v1531 = vsel %vm1517, %v1528, %v1530
    %v1532 = vshll.u32 %v1492, 8
    %v1533 = vand.u32 %v1532, 65535
    %v1534 = vshrl.u32 %v1532, 16
    %v1535 = vand.u32 %v1531, 65535
    %v1536 = vshrl.u32 %v1531, 16
    %v1537 = vmul.u32 %v1533, %v1535
    %v1538 = vmul.u32 %v1533, %v1536
    %v1539 = vmul.u32 %v1534, %v1535
    %v1540 = vmul.u32 %v1534, %v1536
    %v1541 = vshll.u32 %v1538, 16
    %v1542 = vshrl.u32 %v1538, 16
    %v1543 = vshll.u32 %v1539, 16
    %v1544 = vshrl.u32 %v1539, 16
    %vm1545 = vc.u32 %v1537, %v1541
    %v1546 = vsel %vm1545, 1, 0
    %v1547 = vadd.s32 %v1537, %v1541
    %v1548 = vadd.s32 %v1540, %v1546
    %vm1549 = vc.u32 %v1547, %v1543
    %v1550 = vsel %vm1549, 1, 0
    %v1551 = vadd.s32 %v1547, %v1543
    %v1552 = vadd.s32 %v1548, %v1550
    %v1553 = vadd.s32 %v1552, %v1542
    %v1554 = vadd.s32 %v1553, %v1544
    %v1555 = vand.u32 %v1532, 65535
    %v1556 = vshrl.u32 %v1532, 16
    %v1557 = vand.u32 %v1527, 65535
    %v1558 = vshrl.u32 %v1527, 16
    %v1559 = vmul.u32 %v1555, %v1557
    %v1560 = vmul.u32 %v1555, %v1558
    %v1561 = vmul.u32 %v1556, %v1557
    %v1562 = vmul.u32 %v1556, %v1558
    %v1563 = vshll.u32 %v1560, 16
    %v1564 = vshrl.u32 %v1560, 16
    %v1565 = vshll.u32 %v1561, 16
    %v1566 = vshrl.u32 %v1561, 16
    %vm1567 = vc.u32 %v1559, %v1563
    %v1568 = vsel %vm1567, 1, 0
    %v1569 = vadd.s32 %v1559, %v1563
    %v1570 = vadd.s32 %v1562, %v1568
    %vm1571 = vc.u32 %v1569, %v1565
    %v1572 = vsel %vm1571, 1, 0
    %v1573 = vadd.s32 %v1569, %v1565
    %v1574 = vadd.s32 %v1570, %v1572
    %v1575 = vadd.s32 %v1574, %v1564
    %v1576 = vadd.s32 %v1575, %v1566
    %v1577 = vmul.u32 %v1532, %v1523
    %v1578 = vadd.s32 %v1554, %v1573
    %vm1579 = vc.u32 %v1554, %v1573
    %v1580 = vadd.s32 %v1576, 1
    %v1581 = vsel %vm1579, %v1580, %v1576
    %v1582 = vadd.s32 %v1577, %v1581
    %v1583 = vadd.s32 %v1582, 536870912
    %v1584 = vshrl.u32 %v1583, 30
    %v1585 = vshll.u32 %v1584, 30
    %v1586 = vsub.s32 %v1582, %v1585
    %vm1587 = vcmp.lt.s32.totalorder %v1586, 0
    %v1588 = vsub.s32 0, %v1586
    %v1589 = vsel %vm1587, %v1588, %v1586
    %v1590 = vclz %v1589
    %v1591 = vsub.s32 %v1590, 2
    %vm1592 = vcmp.gt.s32.totalorder 0, %v1591
    %v1593 = vsel %vm1592, 0, %v1591
    %v1594 = vsub.s32 32, %v1593
    %v1595 = vshll.u32 %v1586, %v1593
    %v1596 = vshrl.u32 %v1578, %v1594
    %v1597 = vor.u32 %v1595, %v1596
    %v1598 = vsub.s32 4294967266, %v1593
    %v1599 = vadd.s32 %v1598, 127
    %v1600 = vshll.u32 %v1599, 23
    %v1601 = vor.u32 4788187, %v1600
    %v1602 = vand.u32 2147483647, %v1601
    %v1604 = vcvt.s32.f32 %v1597
    %v1605 = vmul.f32 %v1604, %v1602
    %v1606 = vxor.u32 %v1605, 2147483648
    %v1607 = vsel %vm1486, %v1606, %v1605
    %v1608 = vsub.s32 4, %v1584
    %v1609 = vsel %vm1486, %v1608, %v1584
    %v1610 = vsel %vm1485, %v66, %v1607
    %v1611 = vsel %vm1485, 0, %v1609
    %v1612 = vmul.f32 %v1610, %v1610
    %v1613 = vmul.f32 %v1612, -0.001358992
    %v1614 = vadd.f32 %v1613, 0.041655596
    %v1615 = vmul.f32 %v1612, %v1614
    %v1616 = vadd.f32 %v1615, -0.4999988
    %v1617 = vmul.f32 %v1612, %v1616
    %v1618 = vadd.f32 1.0, %v1617
    %v1619 = vmul.f32 %v1610, %v1610
    %v1620 = vmul.f32 %v1619, -0.00019511016
    %v1621 = vadd.f32 %v1620, 0.008332121
    %v1622 = vmul.f32 %v1619, %v1621
    %v1623 = vadd.f32 %v1622, -0.16666654
    %v1624 = vmul.f32 %v1619, %v1623
    %v1625 = vadd.f32 %v1624, 1.0
    %v1626 = vmul.f32 %v1625, %v1610
    %vm1627 = vweird.f32 %v66
    %v1628 = vadd.s32 %v1611, 3
    %v1629 = vand.u32 %v1628, 3
    %vm1630 = vcmp.lt.s32.totalorder %v1629, 2
    %vm1631 = vcmp.eq.s32.totalorder %v1629, 0
    %v1632 = vxor.u32 %v1626, 2147483648
    %v1633 = vsel %vm1631, %v1618, %v1632
    %vm1634 = vcmp.eq.s32.totalorder %v1629, 2
    %v1635 = vxor.u32 %v1618, 2147483648
    %v1636 = vsel %vm1634, %v1635, %v1626
    %v1637 = vsel %vm1630, %v1633, %v1636
    %v1638 = vsel %vm1627, nan, %v1637
    %v1639 = vand.u32 2147483647, %v67
    %vm1640 = vcmp.le.f32.partialorder %v1639, 0.7853982
    %vm1641 = vcmp.lt.s32.totalorder %v67, 0
    %v1642 = vand.u32 %v67, 2139095040
    %v1643 = vshrl.u32 %v1642, 23
    %v1644 = vsub.s32 %v1643, 127
    %v1645 = vand.u32 2147483647, %v67
    %v1646 = vand.u32 %v1645, 8388607
    %v1647 = vor.u32 %v1646, 8388608
    %v1648 = vsub.s32 0, %v1647
    %v1649 = vadd.s32 %v1644, 1
    %vm1650 = vcmp.gt.s32.totalorder %v1649, 0
    %v1651 = vsel %vm1650, %v1649, 0
    %v1652 = vshrl.u32 %v1651, 5
    %v1653 = vand.u32 %v1651, 31
    %v1654 = vsub.s32 32, %v1653
    %v1655 = vshrl.u32 683565275, %v1654
    %v1656 = vshll.u32 683565275, %v1653
    %v1657 = vshrl.u32 2475754826, %v1654
    %v1658 = vor.u32 %v1656, %v1657
    %v1659 = vshll.u32 2475754826, %v1653
    %v1660 = vshrl.u32 2131351028, %v1654
    %v1661 = vor.u32 %v1659, %v1660
    %v1662 = vshll.u32 2131351028, %v1653
    %v1663 = vshrl.u32 2102212464, %v1654
    %v1664 = vor.u32 %v1662, %v1663
    %v1665 = vshll.u32 2102212464, %v1653
    %v1666 = vshrl.u32 920167782, %v1654
    %v1667 = vor.u32 %v1665, %v1666
    %v1668 = vshll.u32 920167782, %v1653
    %v1669 = vshrl.u32 1326507024, %v1654
    %v1670 = vor.u32 %v1668, %v1669
    %vm1671 = vcmp.lt.s32.totalorder %v1652, 1
    %vm1672 = vcmp.lt.s32.totalorder %v1652, 2
    %vm1673 = vcmp.lt.s32.totalorder %v1652, 3
    %vm1674 = vcmp.lt.s32.totalorder %v1652, 4
    %v1675 = vsel %vm1671, %v1655, %v1658
    %v1676 = vsel %vm1674, %v1664, 2102212464
    %v1677 = vsel %vm1673, %v1661, %v1676
    %v1678 = vsel %vm1672, %v1675, %v1677
    %v1679 = vsel %vm1671, %v1658, %v1661
    %v1680 = vsel %vm1674, %v1667, 920167782
    %v1681 = vsel %vm1673, %v1664, %v1680
    %v1682 = vsel %vm1672, %v1679, %v1681
    %v1683 = vsel %vm1671, %v1661, %v1664
    %v1684 = vsel %vm1674, %v1670, 1326507024
    %v1685 = vsel %vm1673, %v1667, %v1684
    %v1686 = vsel %vm1672, %v1683, %v1685
    %v1687 = vshll.u32 %v1647, 8
    %v1688 = vand.u32 %v1687, 65535
    %v1689 = vshrl.u32 %v1687, 16
    %v1690 = vand.u32 %v1686, 65535
    %v1691 = vshrl.u32 %v1686, 16
    %v1692 = vmul.u32 %v1688, %v1690
    %v1693 = vmul.u32 %v1688, %v1691
    %v1694 = vmul.u32 %v1689, %v1690
    %v1695 = vmul.u32 %v1689, %v1691
    %v1696 = vshll.u32 %v1693, 16
    %v1697 = vshrl.u32 %v1693, 16
    %v1698 = vshll.u32 %v1694, 16
    %v1699 = vshrl.u32 %v1694, 16
    %vm1700 = vc.u32 %v1692, %v1696
    %v1701 = vsel %vm1700, 1, 0
    %v1702 = vadd.s32 %v1692, %v1696
    %v1703 = vadd.s32 %v1695, %v1701
    %vm1704 = vc.u32 %v1702, %v1698
    %v1705 = vsel %vm1704, 1, 0
    %v1706 = vadd.s32 %v1702, %v1698
    %v1707 = vadd.s32 %v1703, %v1705
    %v1708 = vadd.s32 %v1707, %v1697
    %v1709 = vadd.s32 %v1708, %v1699
    %v1710 = vand.u32 %v1687, 65535
    %v1711 = vshrl.u32 %v1687, 16
    %v1712 = vand.u32 %v1682, 65535
    %v1713 = vshrl.u32 %v1682, 16
    %v1714 = vmul.u32 %v1710, %v1712
    %v1715 = vmul.u32 %v1710, %v1713
    %v1716 = vmul.u32 %v1711, %v1712
    %v1717 = vmul.u32 %v1711, %v1713
    %v1718 = vshll.u32 %v1715, 16
    %v1719 = vshrl.u32 %v1715, 16
    %v1720 = vshll.u32 %v1716, 16
    %v1721 = vshrl.u32 %v1716, 16
    %vm1722 = vc.u32 %v1714, %v1718
    %v1723 = vsel %vm1722, 1, 0
    %v1724 = vadd.s32 %v1714, %v1718
    %v1725 = vadd.s32 %v1717, %v1723
    %vm1726 = vc.u32 %v1724, %v1720
    %v1727 = vsel %vm1726, 1, 0
    %v1728 = vadd.s32 %v1724, %v1720
    %v1729 = vadd.s32 %v1725, %v1727
    %v1730 = vadd.s32 %v1729, %v1719
    %v1731 = vadd.s32 %v1730, %v1721
    %v1732 = vmul.u32 %v1687, %v1678
    %v1733 = vadd.s32 %v1709, %v1728
    %vm1734 = vc.u32 %v1709, %v1728
    %v1735 = vadd.s32 %v1731, 1
    %v1736 = vsel %vm1734, %v1735, %v1731
    %v1737 = vadd.s32 %v1732, %v1736
    %v1738 = vadd.s32 %v1737, 536870912
    %v1739 = vshrl.u32 %v1738, 30
    %v1740 = vshll.u32 %v1739, 30
    %v1741 = vsub.s32 %v1737, %v1740
    %vm1742 = vcmp.lt.s32.totalorder %v1741, 0
    %v1743 = vsub.s32 0, %v1741
    %v1744 = vsel %vm1742, %v1743, %v1741
    %v1745 = vclz %v1744
    %v1746 = vsub.s32 %v1745, 2
    %vm1747 = vcmp.gt.s32.totalorder 0, %v1746
    %v1748 = vsel %vm1747, 0, %v1746
    %v1749 = vsub.s32 32, %v1748
    %v1750 = vshll.u32 %v1741, %v1748
    %v1751 = vshrl.u32 %v1733, %v1749
    %v1752 = vor.u32 %v1750, %v1751
    %v1753 = vsub.s32 4294967266, %v1748
    %v1754 = vadd.s32 %v1753, 127
    %v1755 = vshll.u32 %v1754, 23
    %v1756 = vor.u32 4788187, %v1755
    %v1757 = vand.u32 2147483647, %v1756
    %v1759 = vcvt.s32.f32 %v1752
    %v1760 = vmul.f32 %v1759, %v1757
    %v1761 = vxor.u32 %v1760, 2147483648
    %v1762 = vsel %vm1641, %v1761, %v1760
    %v1763 = vsub.s32 4, %v1739
    %v1764 = vsel %vm1641, %v1763, %v1739
    %v1765 = vsel %vm1640, %v67, %v1762
    %v1766 = vsel %vm1640, 0, %v1764
    %v1767 = vmul.f32 %v1765, %v1765
    %v1768 = vmul.f32 %v1767, -0.001358992
    %v1769 = vadd.f32 %v1768, 0.041655596
    %v1770 = vmul.f32 %v1767, %v1769
    %v1771 = vadd.f32 %v1770, -0.4999988
    %v1772 = vmul.f32 %v1767, %v1771
    %v1773 = vadd.f32 1.0, %v1772
    %v1774 = vmul.f32 %v1765, %v1765
    %v1775 = vmul.f32 %v1774, -0.00019511016
    %v1776 = vadd.f32 %v1775, 0.008332121
    %v1777 = vmul.f32 %v1774, %v1776
    %v1778 = vadd.f32 %v1777, -0.16666654
    %v1779 = vmul.f32 %v1774, %v1778
    %v1780 = vadd.f32 %v1779, 1.0
    %v1781 = vmul.f32 %v1780, %v1765
    %vm1782 = vweird.f32 %v67
    %v1783 = vadd.s32 %v1766, 3
    %v1784 = vand.u32 %v1783, 3
    %vm1785 = vcmp.lt.s32.totalorder %v1784, 2
    %vm1786 = vcmp.eq.s32.totalorder %v1784, 0
    %v1787 = vxor.u32 %v1781, 2147483648
    %v1788 = vsel %vm1786, %v1773, %v1787
    %vm1789 = vcmp.eq.s32.totalorder %v1784, 2
    %v1790 = vxor.u32 %v1773, 2147483648
    %v1791 = vsel %vm1789, %v1790, %v1781
    %v1792 = vsel %vm1785, %v1788, %v1791
    %v1793 = vsel %vm1782, nan, %v1792
    %v1794 = vand.u32 2147483647, %v68
    %vm1795 = vcmp.le.f32.partialorder %v1794, 0.7853982
    %vm1796 = vcmp.lt.s32.totalorder %v68, 0
    %v1797 = vand.u32 %v68, 2139095040
    %v1798 = vshrl.u32 %v1797, 23
    %v1799 = vsub.s32 %v1798, 127
    %v1800 = vand.u32 2147483647, %v68
    %v1801 = vand.u32 %v1800, 8388607
    %v1802 = vor.u32 %v1801, 8388608
    %v1803 = vsub.s32 0, %v1802
    %v1804 = vadd.s32 %v1799, 1
    %vm1805 = vcmp.gt.s32.totalorder %v1804, 0
    %v1806 = vsel %vm1805, %v1804, 0
    %v1807 = vshrl.u32 %v1806, 5
    %v1808 = vand.u32 %v1806, 31
    %v1809 = vsub.s32 32, %v1808
    %v1810 = vshrl.u32 683565275, %v1809
    %v1811 = vshll.u32 683565275, %v1808
    %v1812 = vshrl.u32 2475754826, %v1809
    %v1813 = vor.u32 %v1811, %v1812
    %v1814 = vshll.u32 2475754826, %v1808
    %v1815 = vshrl.u32 2131351028, %v1809
    %v1816 = vor.u32 %v1814, %v1815
    %v1817 = vshll.u32 2131351028, %v1808
    %v1818 = vshrl.u32 2102212464, %v1809
    %v1819 = vor.u32 %v1817, %v1818
    %v1820 = vshll.u32 2102212464, %v1808
    %v1821 = vshrl.u32 920167782, %v1809
    %v1822 = vor.u32 %v1820, %v1821
    %v1823 = vshll.u32 920167782, %v1808
    %v1824 = vshrl.u32 1326507024, %v1809
    %v1825 = vor.u32 %v1823, %v1824
    %vm1826 = vcmp.lt.s32.totalorder %v1807, 1
    %vm1827 = vcmp.lt.s32.totalorder %v1807, 2
    %vm1828 = vcmp.lt.s32.totalorder %v1807, 3
    %vm1829 = vcmp.lt.s32.totalorder %v1807, 4
    %v1830 = vsel %vm1826, %v1810, %v1813
    %v1831 = vsel %vm1829, %v1819, 2102212464
    %v1832 = vsel %vm1828, %v1816, %v1831
    %v1833 = vsel %vm1827, %v1830, %v1832
    %v1834 = vsel %vm1826, %v1813, %v1816
    %v1835 = vsel %vm1829, %v1822, 920167782
    %v1836 = vsel %vm1828, %v1819, %v1835
    %v1837 = vsel %vm1827, %v1834, %v1836
    %v1838 = vsel %vm1826, %v1816, %v1819
    %v1839 = vsel %vm1829, %v1825, 1326507024
    %v1840 = vsel %vm1828, %v1822, %v1839
    %v1841 = vsel %vm1827, %v1838, %v1840
    %v1842 = vshll.u32 %v1802, 8
    %v1843 = vand.u32 %v1842, 65535
    %v1844 = vshrl.u32 %v1842, 16
    %v1845 = vand.u32 %v1841, 65535
    %v1846 = vshrl.u32 %v1841, 16
    %v1847 = vmul.u32 %v1843, %v1845
    %v1848 = vmul.u32 %v1843, %v1846
    %v1849 = vmul.u32 %v1844, %v1845
    %v1850 = vmul.u32 %v1844, %v1846
    %v1851 = vshll.u32 %v1848, 16
    %v1852 = vshrl.u32 %v1848, 16
    %v1853 = vshll.u32 %v1849, 16
    %v1854 = vshrl.u32 %v1849, 16
    %vm1855 = vc.u32 %v1847, %v1851
    %v1856 = vsel %vm1855, 1, 0
    %v1857 = vadd.s32 %v1847, %v1851
    %v1858 = vadd.s32 %v1850, %v1856
    %vm1859 = vc.u32 %v1857, %v1853
    %v1860 = vsel %vm1859, 1, 0
    %v1861 = vadd.s32 %v1857, %v1853
    %v1862 = vadd.s32 %v1858, %v1860
    %v1863 = vadd.s32 %v1862, %v1852
    %v1864 = vadd.s32 %v1863, %v1854
    %v1865 = vand.u32 %v1842, 65535
    %v1866 = vshrl.u32 %v1842, 16
    %v1867 = vand.u32 %v1837, 65535
    %v1868 = vshrl.u32 %v1837, 16
    %v1869 = vmul.u32 %v1865, %v1867
    %v1870 = vmul.u32 %v1865, %v1868
    %v1871 = vmul.u32 %v1866, %v1867
    %v1872 = vmul.u32 %v1866, %v1868
    %v1873 = vshll.u32 %v1870, 16
    %v1874 = vshrl.u32 %v1870, 16
    %v1875 = vshll.u32 %v1871, 16
    %v1876 = vshrl.u32 %v1871, 16
    %vm1877 = vc.u32 %v1869, %v1873
    %v1878 = vsel %vm1877, 1, 0
    %v1879 = vadd.s32 %v1869, %v1873
    %v1880 = vadd.s32 %v1872, %v1878
    %vm1881 = vc.u32 %v1879, %v1875
    %v1882 = vsel %vm1881, 1, 0
    %v1883 = vadd.s32 %v1879, %v1875
    %v1884 = vadd.s32 %v1880, %v1882
    %v1885 = vadd.s32 %v1884, %v1874
    %v1886 = vadd.s32 %v1885, %v1876
    %v1887 = vmul.u32 %v1842, %v1833
    %v1888 = vadd.s32 %v1864, %v1883
    %vm1889 = vc.u32 %v1864, %v1883
    %v1890 = vadd.s32 %v1886, 1
    %v1891 = vsel %vm1889, %v1890, %v1886
    %v1892 = vadd.s32 %v1887, %v1891
    %v1893 = vadd.s32 %v1892, 536870912
    %v1894 = vshrl.u32 %v1893, 30
    %v1895 = vshll.u32 %v1894, 30
    %v1896 = vsub.s32 %v1892, %v1895
    %vm1897 = vcmp.lt.s32.totalorder %v1896, 0
    %v1898 = vsub.s32 0, %v1896
    %v1899 = vsel %vm1897, %v1898, %v1896
    %v1900 = vclz %v1899
    %v1901 = vsub.s32 %v1900, 2
    %vm1902 = vcmp.gt.s32.totalorder 0, %v1901
    %v1903 = vsel %vm1902, 0, %v1901
    %v1904 = vsub.s32 32, %v1903
    %v1905 = vshll.u32 %v1896, %v1903
    %v1906 = vshrl.u32 %v1888, %v1904
    %v1907 = vor.u32 %v1905, %v1906
    %v1908 = vsub.s32 4294967266, %v1903
    %v1909 = vadd.s32 %v1908, 127
    %v1910 = vshll.u32 %v1909, 23
    %v1911 = vor.u32 4788187, %v1910
    %v1912 = vand.u32 2147483647, %v1911
    %v1914 = vcvt.s32.f32 %v1907
    %v1915 = vmul.f32 %v1914, %v1912
    %v1916 = vxor.u32 %v1915, 2147483648
    %v1917 = vsel %vm1796, %v1916, %v1915
    %v1918 = vsub.s32 4, %v1894
    %v1919 = vsel %vm1796, %v1918, %v1894
    %v1920 = vsel %vm1795, %v68, %v1917
    %v1921 = vsel %vm1795, 0, %v1919
    %v1922 = vmul.f32 %v1920, %v1920
    %v1923 = vmul.f32 %v1922, -0.001358992
    %v1924 = vadd.f32 %v1923, 0.041655596
    %v1925 = vmul.f32 %v1922, %v1924
    %v1926 = vadd.f32 %v1925, -0.4999988
    %v1927 = vmul.f32 %v1922, %v1926
    %v1928 = vadd.f32 1.0, %v1927
    %v1929 = vmul.f32 %v1920, %v1920
    %v1930 = vmul.f32 %v1929, -0.00019511016
    %v1931 = vadd.f32 %v1930, 0.008332121
    %v1932 = vmul.f32 %v1929, %v1931
    %v1933 = vadd.f32 %v1932, -0.16666654
    %v1934 = vmul.f32 %v1929, %v1933
    %v1935 = vadd.f32 %v1934, 1.0
    %v1936 = vmul.f32 %v1935, %v1920
    %vm1937 = vweird.f32 %v68
    %v1938 = vadd.s32 %v1921, 3
    %v1939 = vand.u32 %v1938, 3
    %vm1940 = vcmp.lt.s32.totalorder %v1939, 2
    %vm1941 = vcmp.eq.s32.totalorder %v1939, 0
    %v1942 = vxor.u32 %v1936, 2147483648
    %v1943 = vsel %vm1941, %v1928, %v1942
    %vm1944 = vcmp.eq.s32.totalorder %v1939, 2
    %v1945 = vxor.u32 %v1928, 2147483648
    %v1946 = vsel %vm1944, %v1945, %v1936
    %v1947 = vsel %vm1940, %v1943, %v1946
    %v1948 = vsel %vm1937, nan, %v1947
    %v1949 = vand.u32 2147483647, %v69
    %vm1950 = vcmp.le.f32.partialorder %v1949, 0.7853982
    %vm1951 = vcmp.lt.s32.totalorder %v69, 0
    %v1952 = vand.u32 %v69, 2139095040
    %v1953 = vshrl.u32 %v1952, 23
    %v1954 = vsub.s32 %v1953, 127
    %v1955 = vand.u32 2147483647, %v69
    %v1956 = vand.u32 %v1955, 8388607
    %v1957 = vor.u32 %v1956, 8388608
    %v1958 = vsub.s32 0, %v1957
    %v1959 = vadd.s32 %v1954, 1
    %vm1960 = vcmp.gt.s32.totalorder %v1959, 0
    %v1961 = vsel %vm1960, %v1959, 0
    %v1962 = vshrl.u32 %v1961, 5
    %v1963 = vand.u32 %v1961, 31
    %v1964 = vsub.s32 32, %v1963
    %v1965 = vshrl.u32 683565275, %v1964
    %v1966 = vshll.u32 683565275, %v1963
    %v1967 = vshrl.u32 2475754826, %v1964
    %v1968 = vor.u32 %v1966, %v1967
    %v1969 = vshll.u32 2475754826, %v1963
    %v1970 = vshrl.u32 2131351028, %v1964
    %v1971 = vor.u32 %v1969, %v1970
    %v1972 = vshll.u32 2131351028, %v1963
    %v1973 = vshrl.u32 2102212464, %v1964
    %v1974 = vor.u32 %v1972, %v1973
    %v1975 = vshll.u32 2102212464, %v1963
    %v1976 = vshrl.u32 920167782, %v1964
    %v1977 = vor.u32 %v1975, %v1976
    %v1978 = vshll.u32 920167782, %v1963
    %v1979 = vshrl.u32 1326507024, %v1964
    %v1980 = vor.u32 %v1978, %v1979
    %vm1981 = vcmp.lt.s32.totalorder %v1962, 1
    %vm1982 = vcmp.lt.s32.totalorder %v1962, 2
    %vm1983 = vcmp.lt.s32.totalorder %v1962, 3
    %vm1984 = vcmp.lt.s32.totalorder %v1962, 4
    %v1985 = vsel %vm1981, %v1965, %v1968
    %v1986 = vsel %vm1984, %v1974, 2102212464
    %v1987 = vsel %vm1983, %v1971, %v1986
    %v1988 = vsel %vm1982, %v1985, %v1987
    %v1989 = vsel %vm1981, %v1968, %v1971
    %v1990 = vsel %vm1984, %v1977, 920167782
    %v1991 = vsel %vm1983, %v1974, %v1990
    %v1992 = vsel %vm1982, %v1989, %v1991
    %v1993 = vsel %vm1981, %v1971, %v1974
    %v1994 = vsel %vm1984, %v1980, 1326507024
    %v1995 = vsel %vm1983, %v1977, %v1994
    %v1996 = vsel %vm1982, %v1993, %v1995
    %v1997 = vshll.u32 %v1957, 8
    %v1998 = vand.u32 %v1997, 65535
    %v1999 = vshrl.u32 %v1997, 16
    %v2000 = vand.u32 %v1996, 65535
    %v2001 = vshrl.u32 %v1996, 16
    %v2002 = vmul.u32 %v1998, %v2000
    %v2003 = vmul.u32 %v1998, %v2001
    %v2004 = vmul.u32 %v1999, %v2000
    %v2005 = vmul.u32 %v1999, %v2001
    %v2006 = vshll.u32 %v2003, 16
    %v2007 = vshrl.u32 %v2003, 16
    %v2008 = vshll.u32 %v2004, 16
    %v2009 = vshrl.u32 %v2004, 16
    %vm2010 = vc.u32 %v2002, %v2006
    %v2011 = vsel %vm2010, 1, 0
    %v2012 = vadd.s32 %v2002, %v2006
    %v2013 = vadd.s32 %v2005, %v2011
    %vm2014 = vc.u32 %v2012, %v2008
    %v2015 = vsel %vm2014, 1, 0
    %v2016 = vadd.s32 %v2012, %v2008
    %v2017 = vadd.s32 %v2013, %v2015
    %v2018 = vadd.s32 %v2017, %v2007
    %v2019 = vadd.s32 %v2018, %v2009
    %v2020 = vand.u32 %v1997, 65535
    %v2021 = vshrl.u32 %v1997, 16
    %v2022 = vand.u32 %v1992, 65535
    %v2023 = vshrl.u32 %v1992, 16
    %v2024 = vmul.u32 %v2020, %v2022
    %v2025 = vmul.u32 %v2020, %v2023
    %v2026 = vmul.u32 %v2021, %v2022
    %v2027 = vmul.u32 %v2021, %v2023
    %v2028 = vshll.u32 %v2025, 16
    %v2029 = vshrl.u32 %v2025, 16
    %v2030 = vshll.u32 %v2026, 16
    %v2031 = vshrl.u32 %v2026, 16
    %vm2032 = vc.u32 %v2024, %v2028
    %v2033 = vsel %vm2032, 1, 0
    %v2034 = vadd.s32 %v2024, %v2028
    %v2035 = vadd.s32 %v2027, %v2033
    %vm2036 = vc.u32 %v2034, %v2030
    %v2037 = vsel %vm2036, 1, 0
    %v2038 = vadd.s32 %v2034, %v2030
    %v2039 = vadd.s32 %v2035, %v2037
    %v2040 = vadd.s32 %v2039, %v2029
    %v2041 = vadd.s32 %v2040, %v2031
    %v2042 = vmul.u32 %v1997, %v1988
    %v2043 = vadd.s32 %v2019, %v2038
    %vm2044 = vc.u32 %v2019, %v2038
    %v2045 = vadd.s32 %v2041, 1
    %v2046 = vsel %vm2044, %v2045, %v2041
    %v2047 = vadd.s32 %v2042, %v2046
    %v2048 = vadd.s32 %v2047, 536870912
    %v2049 = vshrl.u32 %v2048, 30
    %v2050 = vshll.u32 %v2049, 30
    %v2051 = vsub.s32 %v2047, %v2050
    %vm2052 = vcmp.lt.s32.totalorder %v2051, 0
    %v2053 = vsub.s32 0, %v2051
    %v2054 = vsel %vm2052, %v2053, %v2051
    %v2055 = vclz %v2054
    %v2056 = vsub.s32 %v2055, 2
    %vm2057 = vcmp.gt.s32.totalorder 0, %v2056
    %v2058 = vsel %vm2057, 0, %v2056
    %v2059 = vsub.s32 32, %v2058
    %v2060 = vshll.u32 %v2051, %v2058
    %v2061 = vshrl.u32 %v2043, %v2059
    %v2062 = vor.u32 %v2060, %v2061
    %v2063 = vsub.s32 4294967266, %v2058
    %v2064 = vadd.s32 %v2063, 127
    %v2065 = vshll.u32 %v2064, 23
    %v2066 = vor.u32 4788187, %v2065
    %v2067 = vand.u32 2147483647, %v2066
    %v2069 = vcvt.s32.f32 %v2062
    %v2070 = vmul.f32 %v2069, %v2067
    %v2071 = vxor.u32 %v2070, 2147483648
    %v2072 = vsel %vm1951, %v2071, %v2070
    %v2073 = vsub.s32 4, %v2049
    %v2074 = vsel %vm1951, %v2073, %v2049
    %v2075 = vsel %vm1950, %v69, %v2072
    %v2076 = vsel %vm1950, 0, %v2074
    %v2077 = vmul.f32 %v2075, %v2075
    %v2078 = vmul.f32 %v2077, -0.001358992
    %v2079 = vadd.f32 %v2078, 0.041655596
    %v2080 = vmul.f32 %v2077, %v2079
    %v2081 = vadd.f32 %v2080, -0.4999988
    %v2082 = vmul.f32 %v2077, %v2081
    %v2083 = vadd.f32 1.0, %v2082
    %v2084 = vmul.f32 %v2075, %v2075
    %v2085 = vmul.f32 %v2084, -0.00019511016
    %v2086 = vadd.f32 %v2085, 0.008332121
    %v2087 = vmul.f32 %v2084, %v2086
    %v2088 = vadd.f32 %v2087, -0.16666654
    %v2089 = vmul.f32 %v2084, %v2088
    %v2090 = vadd.f32 %v2089, 1.0
    %v2091 = vmul.f32 %v2090, %v2075
    %vm2092 = vweird.f32 %v69
    %v2093 = vadd.s32 %v2076, 3
    %v2094 = vand.u32 %v2093, 3
    %vm2095 = vcmp.lt.s32.totalorder %v2094, 2
    %vm2096 = vcmp.eq.s32.totalorder %v2094, 0
    %v2097 = vxor.u32 %v2091, 2147483648
    %v2098 = vsel %vm2096, %v2083, %v2097
    %vm2099 = vcmp.eq.s32.totalorder %v2094, 2
    %v2100 = vxor.u32 %v2083, 2147483648
    %v2101 = vsel %vm2099, %v2100, %v2091
    %v2102 = vsel %vm2095, %v2098, %v2101
    %v2103 = vsel %vm2092, nan, %v2102
    %v2104 = vand.u32 2147483647, %v70
    %vm2105 = vcmp.le.f32.partialorder %v2104, 0.7853982
    %vm2106 = vcmp.lt.s32.totalorder %v70, 0
    %v2107 = vand.u32 %v70, 2139095040
    %v2108 = vshrl.u32 %v2107, 23
    %v2109 = vsub.s32 %v2108, 127
    %v2110 = vand.u32 2147483647, %v70
    %v2111 = vand.u32 %v2110, 8388607
    %v2112 = vor.u32 %v2111, 8388608
    %v2113 = vsub.s32 0, %v2112
    %v2114 = vadd.s32 %v2109, 1
    %vm2115 = vcmp.gt.s32.totalorder %v2114, 0
    %v2116 = vsel %vm2115, %v2114, 0
    %v2117 = vshrl.u32 %v2116, 5
    %v2118 = vand.u32 %v2116, 31
    %v2119 = vsub.s32 32, %v2118
    %v2120 = vshrl.u32 683565275, %v2119
    %v2121 = vshll.u32 683565275, %v2118
    %v2122 = vshrl.u32 2475754826, %v2119
    %v2123 = vor.u32 %v2121, %v2122
    %v2124 = vshll.u32 2475754826, %v2118
    %v2125 = vshrl.u32 2131351028, %v2119
    %v2126 = vor.u32 %v2124, %v2125
    %v2127 = vshll.u32 2131351028, %v2118
    %v2128 = vshrl.u32 2102212464, %v2119
    %v2129 = vor.u32 %v2127, %v2128
    %v2130 = vshll.u32 2102212464, %v2118
    %v2131 = vshrl.u32 920167782, %v2119
    %v2132 = vor.u32 %v2130, %v2131
    %v2133 = vshll.u32 920167782, %v2118
    %v2134 = vshrl.u32 1326507024, %v2119
    %v2135 = vor.u32 %v2133, %v2134
    %vm2136 = vcmp.lt.s32.totalorder %v2117, 1
    %vm2137 = vcmp.lt.s32.totalorder %v2117, 2
    %vm2138 = vcmp.lt.s32.totalorder %v2117, 3
    %vm2139 = vcmp.lt.s32.totalorder %v2117, 4
    %v2140 = vsel %vm2136, %v2120, %v2123
    %v2141 = vsel %vm2139, %v2129, 2102212464
    %v2142 = vsel %vm2138, %v2126, %v2141
    %v2143 = vsel %vm2137, %v2140, %v2142
    %v2144 = vsel %vm2136, %v2123, %v2126
    %v2145 = vsel %vm2139, %v2132, 920167782
    %v2146 = vsel %vm2138, %v2129, %v2145
    %v2147 = vsel %vm2137, %v2144, %v2146
    %v2148 = vsel %vm2136, %v2126, %v2129
    %v2149 = vsel %vm2139, %v2135, 1326507024
    %v2150 = vsel %vm2138, %v2132, %v2149
    %v2151 = vsel %vm2137, %v2148, %v2150
    %v2152 = vshll.u32 %v2112, 8
    %v2153 = vand.u32 %v2152, 65535
    %v2154 = vshrl.u32 %v2152, 16
    %v2155 = vand.u32 %v2151, 65535
    %v2156 = vshrl.u32 %v2151, 16
    %v2157 = vmul.u32 %v2153, %v2155
    %v2158 = vmul.u32 %v2153, %v2156
    %v2159 = vmul.u32 %v2154, %v2155
    %v2160 = vmul.u32 %v2154, %v2156
    %v2161 = vshll.u32 %v2158, 16
    %v2162 = vshrl.u32 %v2158, 16
    %v2163 = vshll.u32 %v2159, 16
    %v2164 = vshrl.u32 %v2159, 16
    %vm2165 = vc.u32 %v2157, %v2161
    %v2166 = vsel %vm2165, 1, 0
    %v2167 = vadd.s32 %v2157, %v2161
    %v2168 = vadd.s32 %v2160, %v2166
    %vm2169 = vc.u32 %v2167, %v2163
    %v2170 = vsel %vm2169, 1, 0
    %v2171 = vadd.s32 %v2167, %v2163
    %v2172 = vadd.s32 %v2168, %v2170
    %v2173 = vadd.s32 %v2172, %v2162
    %v2174 = vadd.s32 %v2173, %v2164
    %v2175 = vand.u32 %v2152, 65535
    %v2176 = vshrl.u32 %v2152, 16
    %v2177 = vand.u32 %v2147, 65535
    %v2178 = vshrl.u32 %v2147, 16
    %v2179 = vmul.u32 %v2175, %v2177
    %v2180 = vmul.u32 %v2175, %v2178
    %v2181 = vmul.u32 %v2176, %v2177
    %v2182 = vmul.u32 %v2176, %v2178
    %v2183 = vshll.u32 %v2180, 16
    %v2184 = vshrl.u32 %v2180, 16
    %v2185 = vshll.u32 %v2181, 16
    %v2186 = vshrl.u32 %v2181, 16
    %vm2187 = vc.u32 %v2179, %v2183
    %v2188 = vsel %vm2187, 1, 0
    %v2189 = vadd.s32 %v2179, %v2183
    %v2190 = vadd.s32 %v2182, %v2188
    %vm2191 = vc.u32 %v2189, %v2185
    %v2192 = vsel %vm2191, 1, 0
    %v2193 = vadd.s32 %v2189, %v2185
    %v2194 = vadd.s32 %v2190, %v2192
    %v2195 = vadd.s32 %v2194, %v2184
    %v2196 = vadd.s32 %v2195, %v2186
    %v2197 = vmul.u32 %v2152, %v2143
    %v2198 = vadd.s32 %v2174, %v2193
    %vm2199 = vc.u32 %v2174, %v2193
    %v2200 = vadd.s32 %v2196, 1
    %v2201 = vsel %vm2199, %v2200, %v2196
    %v2202 = vadd.s32 %v2197, %v2201
    %v2203 = vadd.s32 %v2202, 536870912
    %v2204 = vshrl.u32 %v2203, 30
    %v2205 = vshll.u32 %v2204, 30
    %v2206 = vsub.s32 %v2202, %v2205
    %vm2207 = vcmp.lt.s32.totalorder %v2206, 0
    %v2208 = vsub.s32 0, %v2206
    %v2209 = vsel %vm2207, %v2208, %v2206
    %v2210 = vclz %v2209
    %v2211 = vsub.s32 %v2210, 2
    %vm2212 = vcmp.gt.s32.totalorder 0, %v2211
    %v2213 = vsel %vm2212, 0, %v2211
    %v2214 = vsub.s32 32, %v2213
    %v2215 = vshll.u32 %v2206, %v2213
    %v2216 = vshrl.u32 %v2198, %v2214
    %v2217 = vor.u32 %v2215, %v2216
    %v2218 = vsub.s32 4294967266, %v2213
    %v2219 = vadd.s32 %v2218, 127
    %v2220 = vshll.u32 %v2219, 23
    %v2221 = vor.u32 4788187, %v2220
    %v2222 = vand.u32 2147483647, %v2221
    %v2224 = vcvt.s32.f32 %v2217
    %v2225 = vmul.f32 %v2224, %v2222
    %v2226 = vxor.u32 %v2225, 2147483648
    %v2227 = vsel %vm2106, %v2226, %v2225
    %v2228 = vsub.s32 4, %v2204
    %v2229 = vsel %vm2106, %v2228, %v2204
    %v2230 = vsel %vm2105, %v70, %v2227
    %v2231 = vsel %vm2105, 0, %v2229
    %v2232 = vmul.f32 %v2230, %v2230
    %v2233 = vmul.f32 %v2232, -0.001358992
    %v2234 = vadd.f32 %v2233, 0.041655596
    %v2235 = vmul.f32 %v2232, %v2234
    %v2236 = vadd.f32 %v2235, -0.4999988
    %v2237 = vmul.f32 %v2232, %v2236
    %v2238 = vadd.f32 1.0, %v2237
    %v2239 = vmul.f32 %v2230, %v2230
    %v2240 = vmul.f32 %v2239, -0.00019511016
    %v2241 = vadd.f32 %v2240, 0.008332121
    %v2242 = vmul.f32 %v2239, %v2241
    %v2243 = vadd.f32 %v2242, -0.16666654
    %v2244 = vmul.f32 %v2239, %v2243
    %v2245 = vadd.f32 %v2244, 1.0
    %v2246 = vmul.f32 %v2245, %v2230
    %vm2247 = vweird.f32 %v70
    %v2248 = vadd.s32 %v2231, 3
    %v2249 = vand.u32 %v2248, 3
    %vm2250 = vcmp.lt.s32.totalorder %v2249, 2
    %vm2251 = vcmp.eq.s32.totalorder %v2249, 0
    %v2252 = vxor.u32 %v2246, 2147483648
    %v2253 = vsel %vm2251, %v2238, %v2252
    %vm2254 = vcmp.eq.s32.totalorder %v2249, 2
    %v2255 = vxor.u32 %v2238, 2147483648
    %v2256 = vsel %vm2254, %v2255, %v2246
    %v2257 = vsel %vm2250, %v2253, %v2256
    %v2258 = vsel %vm2247, nan, %v2257
    %v2259 = vand.u32 2147483647, %v71
    %vm2260 = vcmp.le.f32.partialorder %v2259, 0.7853982
    %vm2261 = vcmp.lt.s32.totalorder %v71, 0
    %v2262 = vand.u32 %v71, 2139095040
    %v2263 = vshrl.u32 %v2262, 23
    %v2264 = vsub.s32 %v2263, 127
    %v2265 = vand.u32 2147483647, %v71
    %v2266 = vand.u32 %v2265, 8388607
    %v2267 = vor.u32 %v2266, 8388608
    %v2268 = vsub.s32 0, %v2267
    %v2269 = vadd.s32 %v2264, 1
    %vm2270 = vcmp.gt.s32.totalorder %v2269, 0
    %v2271 = vsel %vm2270, %v2269, 0
    %v2272 = vshrl.u32 %v2271, 5
    %v2273 = vand.u32 %v2271, 31
    %v2274 = vsub.s32 32, %v2273
    %v2275 = vshrl.u32 683565275, %v2274
    %v2276 = vshll.u32 683565275, %v2273
    %v2277 = vshrl.u32 2475754826, %v2274
    %v2278 = vor.u32 %v2276, %v2277
    %v2279 = vshll.u32 2475754826, %v2273
    %v2280 = vshrl.u32 2131351028, %v2274
    %v2281 = vor.u32 %v2279, %v2280
    %v2282 = vshll.u32 2131351028, %v2273
    %v2283 = vshrl.u32 2102212464, %v2274
    %v2284 = vor.u32 %v2282, %v2283
    %v2285 = vshll.u32 2102212464, %v2273
    %v2286 = vshrl.u32 920167782, %v2274
    %v2287 = vor.u32 %v2285, %v2286
    %v2288 = vshll.u32 920167782, %v2273
    %v2289 = vshrl.u32 1326507024, %v2274
    %v2290 = vor.u32 %v2288, %v2289
    %vm2291 = vcmp.lt.s32.totalorder %v2272, 1
    %vm2292 = vcmp.lt.s32.totalorder %v2272, 2
    %vm2293 = vcmp.lt.s32.totalorder %v2272, 3
    %vm2294 = vcmp.lt.s32.totalorder %v2272, 4
    %v2295 = vsel %vm2291, %v2275, %v2278
    %v2296 = vsel %vm2294, %v2284, 2102212464
    %v2297 = vsel %vm2293, %v2281, %v2296
    %v2298 = vsel %vm2292, %v2295, %v2297
    %v2299 = vsel %vm2291, %v2278, %v2281
    %v2300 = vsel %vm2294, %v2287, 920167782
    %v2301 = vsel %vm2293, %v2284, %v2300
    %v2302 = vsel %vm2292, %v2299, %v2301
    %v2303 = vsel %vm2291, %v2281, %v2284
    %v2304 = vsel %vm2294, %v2290, 1326507024
    %v2305 = vsel %vm2293, %v2287, %v2304
    %v2306 = vsel %vm2292, %v2303, %v2305
    %v2307 = vshll.u32 %v2267, 8
    %v2308 = vand.u32 %v2307, 65535
    %v2309 = vshrl.u32 %v2307, 16
    %v2310 = vand.u32 %v2306, 65535
    %v2311 = vshrl.u32 %v2306, 16
    %v2312 = vmul.u32 %v2308, %v2310
    %v2313 = vmul.u32 %v2308, %v2311
    %v2314 = vmul.u32 %v2309, %v2310
    %v2315 = vmul.u32 %v2309, %v2311
    %v2316 = vshll.u32 %v2313, 16
    %v2317 = vshrl.u32 %v2313, 16
    %v2318 = vshll.u32 %v2314, 16
    %v2319 = vshrl.u32 %v2314, 16
    %vm2320 = vc.u32 %v2312, %v2316
    %v2321 = vsel %vm2320, 1, 0
    %v2322 = vadd.s32 %v2312, %v2316
    %v2323 = vadd.s32 %v2315, %v2321
    %vm2324 = vc.u32 %v2322, %v2318
    %v2325 = vsel %vm2324, 1, 0
    %v2326 = vadd.s32 %v2322, %v2318
    %v2327 = vadd.s32 %v2323, %v2325
    %v2328 = vadd.s32 %v2327, %v2317
    %v2329 = vadd.s32 %v2328, %v2319
    %v2330 = vand.u32 %v2307, 65535
    %v2331 = vshrl.u32 %v2307, 16
    %v2332 = vand.u32 %v2302, 65535
    %v2333 = vshrl.u32 %v2302, 16
    %v2334 = vmul.u32 %v2330, %v2332
    %v2335 = vmul.u32 %v2330, %v2333
    %v2336 = vmul.u32 %v2331, %v2332
    %v2337 = vmul.u32 %v2331, %v2333
    %v2338 = vshll.u32 %v2335, 16
    %v2339 = vshrl.u32 %v2335, 16
    %v2340 = vshll.u32 %v2336, 16
    %v2341 = vshrl.u32 %v2336, 16
    %vm2342 = vc.u32 %v2334, %v2338
    %v2343 = vsel %vm2342, 1, 0
    %v2344 = vadd.s32 %v2334, %v2338
    %v2345 = vadd.s32 %v2337, %v2343
    %vm2346 = vc.u32 %v2344, %v2340
    %v2347 = vsel %vm2346, 1, 0
    %v2348 = vadd.s32 %v2344, %v2340
    %v2349 = vadd.s32 %v2345, %v2347
    %v2350 = vadd.s32 %v2349, %v2339
    %v2351 = vadd.s32 %v2350, %v2341
    %v2352 = vmul.u32 %v2307, %v2298
    %v2353 = vadd.s32 %v2329, %v2348
    %vm2354 = vc.u32 %v2329, %v2348
    %v2355 = vadd.s32 %v2351, 1
    %v2356 = vsel %vm2354, %v2355, %v2351
    %v2357 = vadd.s32 %v2352, %v2356
    %v2358 = vadd.s32 %v2357, 536870912
    %v2359 = vshrl.u32 %v2358, 30
    %v2360 = vshll.u32 %v2359, 30
    %v2361 = vsub.s32 %v2357, %v2360
    %vm2362 = vcmp.lt.s32.totalorder %v2361, 0
    %v2363 = vsub.s32 0, %v2361
    %v2364 = vsel %vm2362, %v2363, %v2361
    %v2365 = vclz %v2364
    %v2366 = vsub.s32 %v2365, 2
    %vm2367 = vcmp.gt.s32.totalorder 0, %v2366
    %v2368 = vsel %vm2367, 0, %v2366
    %v2369 = vsub.s32 32, %v2368
    %v2370 = vshll.u32 %v2361, %v2368
    %v2371 = vshrl.u32 %v2353, %v2369
    %v2372 = vor.u32 %v2370, %v2371
    %v2373 = vsub.s32 4294967266, %v2368
    %v2374 = vadd.s32 %v2373, 127
    %v2375 = vshll.u32 %v2374, 23
    %v2376 = vor.u32 4788187, %v2375
    %v2377 = vand.u32 2147483647, %v2376
    %v2379 = vcvt.s32.f32 %v2372
    %v2380 = vmul.f32 %v2379, %v2377
    %v2381 = vxor.u32 %v2380, 2147483648
    %v2382 = vsel %vm2261, %v2381, %v2380
    %v2383 = vsub.s32 4, %v2359
    %v2384 = vsel %vm2261, %v2383, %v2359
    %v2385 = vsel %vm2260, %v71, %v2382
    %v2386 = vsel %vm2260, 0, %v2384
    %v2387 = vmul.f32 %v2385, %v2385
    %v2388 = vmul.f32 %v2387, -0.001358992
    %v2389 = vadd.f32 %v2388, 0.041655596
    %v2390 = vmul.f32 %v2387, %v2389
    %v2391 = vadd.f32 %v2390, -0.4999988
    %v2392 = vmul.f32 %v2387, %v2391
    %v2393 = vadd.f32 1.0, %v2392
    %v2394 = vmul.f32 %v2385, %v2385
    %v2395 = vmul.f32 %v2394, -0.00019511016
    %v2396 = vadd.f32 %v2395, 0.008332121
    %v2397 = vmul.f32 %v2394, %v2396
    %v2398 = vadd.f32 %v2397, -0.16666654
    %v2399 = vmul.f32 %v2394, %v2398
    %v2400 = vadd.f32 %v2399, 1.0
    %v2401 = vmul.f32 %v2400, %v2385
    %vm2402 = vweird.f32 %v71
    %v2403 = vadd.s32 %v2386, 3
    %v2404 = vand.u32 %v2403, 3
    %vm2405 = vcmp.lt.s32.totalorder %v2404, 2
    %vm2406 = vcmp.eq.s32.totalorder %v2404, 0
    %v2407 = vxor.u32 %v2401, 2147483648
    %v2408 = vsel %vm2406, %v2393, %v2407
    %vm2409 = vcmp.eq.s32.totalorder %v2404, 2
    %v2410 = vxor.u32 %v2393, 2147483648
    %v2411 = vsel %vm2409, %v2410, %v2401
    %v2412 = vsel %vm2405, %v2408, %v2411
    %v2413 = vsel %vm2402, nan, %v2412
    %v2414 = vand.u32 2147483647, %v72
    %vm2415 = vcmp.le.f32.partialorder %v2414, 0.7853982
    %vm2416 = vcmp.lt.s32.totalorder %v72, 0
    %v2417 = vand.u32 %v72, 2139095040
    %v2418 = vshrl.u32 %v2417, 23
    %v2419 = vsub.s32 %v2418, 127
    %v2420 = vand.u32 2147483647, %v72
    %v2421 = vand.u32 %v2420, 8388607
    %v2422 = vor.u32 %v2421, 8388608
    %v2423 = vsub.s32 0, %v2422
    %v2424 = vadd.s32 %v2419, 1
    %vm2425 = vcmp.gt.s32.totalorder %v2424, 0
    %v2426 = vsel %vm2425, %v2424, 0
    %v2427 = vshrl.u32 %v2426, 5
    %v2428 = vand.u32 %v2426, 31
    %v2429 = vsub.s32 32, %v2428
    %v2430 = vshrl.u32 683565275, %v2429
    %v2431 = vshll.u32 683565275, %v2428
    %v2432 = vshrl.u32 2475754826, %v2429
    %v2433 = vor.u32 %v2431, %v2432
    %v2434 = vshll.u32 2475754826, %v2428
    %v2435 = vshrl.u32 2131351028, %v2429
    %v2436 = vor.u32 %v2434, %v2435
    %v2437 = vshll.u32 2131351028, %v2428
    %v2438 = vshrl.u32 2102212464, %v2429
    %v2439 = vor.u32 %v2437, %v2438
    %v2440 = vshll.u32 2102212464, %v2428
    %v2441 = vshrl.u32 920167782, %v2429
    %v2442 = vor.u32 %v2440, %v2441
    %v2443 = vshll.u32 920167782, %v2428
    %v2444 = vshrl.u32 1326507024, %v2429
    %v2445 = vor.u32 %v2443, %v2444
    %vm2446 = vcmp.lt.s32.totalorder %v2427, 1
    %vm2447 = vcmp.lt.s32.totalorder %v2427, 2
    %vm2448 = vcmp.lt.s32.totalorder %v2427, 3
    %vm2449 = vcmp.lt.s32.totalorder %v2427, 4
    %v2450 = vsel %vm2446, %v2430, %v2433
    %v2451 = vsel %vm2449, %v2439, 2102212464
    %v2452 = vsel %vm2448, %v2436, %v2451
    %v2453 = vsel %vm2447, %v2450, %v2452
    %v2454 = vsel %vm2446, %v2433, %v2436
    %v2455 = vsel %vm2449, %v2442, 920167782
    %v2456 = vsel %vm2448, %v2439, %v2455
    %v2457 = vsel %vm2447, %v2454, %v2456
    %v2458 = vsel %vm2446, %v2436, %v2439
    %v2459 = vsel %vm2449, %v2445, 1326507024
    %v2460 = vsel %vm2448, %v2442, %v2459
    %v2461 = vsel %vm2447, %v2458, %v2460
    %v2462 = vshll.u32 %v2422, 8
    %v2463 = vand.u32 %v2462, 65535
    %v2464 = vshrl.u32 %v2462, 16
    %v2465 = vand.u32 %v2461, 65535
    %v2466 = vshrl.u32 %v2461, 16
    %v2467 = vmul.u32 %v2463, %v2465
    %v2468 = vmul.u32 %v2463, %v2466
    %v2469 = vmul.u32 %v2464, %v2465
    %v2470 = vmul.u32 %v2464, %v2466
    %v2471 = vshll.u32 %v2468, 16
    %v2472 = vshrl.u32 %v2468, 16
    %v2473 = vshll.u32 %v2469, 16
    %v2474 = vshrl.u32 %v2469, 16
    %vm2475 = vc.u32 %v2467, %v2471
    %v2476 = vsel %vm2475, 1, 0
    %v2477 = vadd.s32 %v2467, %v2471
    %v2478 = vadd.s32 %v2470, %v2476
    %vm2479 = vc.u32 %v2477, %v2473
    %v2480 = vsel %vm2479, 1, 0
    %v2481 = vadd.s32 %v2477, %v2473
    %v2482 = vadd.s32 %v2478, %v2480
    %v2483 = vadd.s32 %v2482, %v2472
    %v2484 = vadd.s32 %v2483, %v2474
    %v2485 = vand.u32 %v2462, 65535
    %v2486 = vshrl.u32 %v2462, 16
    %v2487 = vand.u32 %v2457, 65535
    %v2488 = vshrl.u32 %v2457, 16
    %v2489 = vmul.u32 %v2485, %v2487
    %v2490 = vmul.u32 %v2485, %v2488
    %v2491 = vmul.u32 %v2486, %v2487
    %v2492 = vmul.u32 %v2486, %v2488
    %v2493 = vshll.u32 %v2490, 16
    %v2494 = vshrl.u32 %v2490, 16
    %v2495 = vshll.u32 %v2491, 16
    %v2496 = vshrl.u32 %v2491, 16
    %vm2497 = vc.u32 %v2489, %v2493
    %v2498 = vsel %vm2497, 1, 0
    %v2499 = vadd.s32 %v2489, %v2493
    %v2500 = vadd.s32 %v2492, %v2498
    %vm2501 = vc.u32 %v2499, %v2495
    %v2502 = vsel %vm2501, 1, 0
    %v2503 = vadd.s32 %v2499, %v2495
    %v2504 = vadd.s32 %v2500, %v2502
    %v2505 = vadd.s32 %v2504, %v2494
    %v2506 = vadd.s32 %v2505, %v2496
    %v2507 = vmul.u32 %v2462, %v2453
    %v2508 = vadd.s32 %v2484, %v2503
    %vm2509 = vc.u32 %v2484, %v2503
    %v2510 = vadd.s32 %v2506, 1
    %v2511 = vsel %vm2509, %v2510, %v2506
    %v2512 = vadd.s32 %v2507, %v2511
    %v2513 = vadd.s32 %v2512, 536870912
    %v2514 = vshrl.u32 %v2513, 30
    %v2515 = vshll.u32 %v2514, 30
    %v2516 = vsub.s32 %v2512, %v2515
    %vm2517 = vcmp.lt.s32.totalorder %v2516, 0
    %v2518 = vsub.s32 0, %v2516
    %v2519 = vsel %vm2517, %v2518, %v2516
    %v2520 = vclz %v2519
    %v2521 = vsub.s32 %v2520, 2
    %vm2522 = vcmp.gt.s32.totalorder 0, %v2521
    %v2523 = vsel %vm2522, 0, %v2521
    %v2524 = vsub.s32 32, %v2523
    %v2525 = vshll.u32 %v2516, %v2523
    %v2526 = vshrl.u32 %v2508, %v2524
    %v2527 = vor.u32 %v2525, %v2526
    %v2528 = vsub.s32 4294967266, %v2523
    %v2529 = vadd.s32 %v2528, 127
    %v2530 = vshll.u32 %v2529, 23
    %v2531 = vor.u32 4788187, %v2530
    %v2532 = vand.u32 2147483647, %v2531
    %v2534 = vcvt.s32.f32 %v2527
    %v2535 = vmul.f32 %v2534, %v2532
    %v2536 = vxor.u32 %v2535, 2147483648
    %v2537 = vsel %vm2416, %v2536, %v2535
    %v2538 = vsub.s32 4, %v2514
    %v2539 = vsel %vm2416, %v2538, %v2514
    %v2540 = vsel %vm2415, %v72, %v2537
    %v2541 = vsel %vm2415, 0, %v2539
    %v2542 = vmul.f32 %v2540, %v2540
    %v2543 = vmul.f32 %v2542, -0.001358992
    %v2544 = vadd.f32 %v2543, 0.041655596
    %v2545 = vmul.f32 %v2542, %v2544
    %v2546 = vadd.f32 %v2545, -0.4999988
    %v2547 = vmul.f32 %v2542, %v2546
    %v2548 = vadd.f32 1.0, %v2547
    %v2549 = vmul.f32 %v2540, %v2540
    %v2550 = vmul.f32 %v2549, -0.00019511016
    %v2551 = vadd.f32 %v2550, 0.008332121
    %v2552 = vmul.f32 %v2549, %v2551
    %v2553 = vadd.f32 %v2552, -0.16666654
    %v2554 = vmul.f32 %v2549, %v2553
    %v2555 = vadd.f32 %v2554, 1.0
    %v2556 = vmul.f32 %v2555, %v2540
    %vm2557 = vweird.f32 %v72
    %v2558 = vadd.s32 %v2541, 3
    %v2559 = vand.u32 %v2558, 3
    %vm2560 = vcmp.lt.s32.totalorder %v2559, 2
    %vm2561 = vcmp.eq.s32.totalorder %v2559, 0
    %v2562 = vxor.u32 %v2556, 2147483648
    %v2563 = vsel %vm2561, %v2548, %v2562
    %vm2564 = vcmp.eq.s32.totalorder %v2559, 2
    %v2565 = vxor.u32 %v2548, 2147483648
    %v2566 = vsel %vm2564, %v2565, %v2556
    %v2567 = vsel %vm2560, %v2563, %v2566
    %v2568 = vsel %vm2557, nan, %v2567
    %v2569 = vand.u32 2147483647, %v73
    %vm2570 = vcmp.le.f32.partialorder %v2569, 0.7853982
    %vm2571 = vcmp.lt.s32.totalorder %v73, 0
    %v2572 = vand.u32 %v73, 2139095040
    %v2573 = vshrl.u32 %v2572, 23
    %v2574 = vsub.s32 %v2573, 127
    %v2575 = vand.u32 2147483647, %v73
    %v2576 = vand.u32 %v2575, 8388607
    %v2577 = vor.u32 %v2576, 8388608
    %v2578 = vsub.s32 0, %v2577
    %v2579 = vadd.s32 %v2574, 1
    %vm2580 = vcmp.gt.s32.totalorder %v2579, 0
    %v2581 = vsel %vm2580, %v2579, 0
    %v2582 = vshrl.u32 %v2581, 5
    %v2583 = vand.u32 %v2581, 31
    %v2584 = vsub.s32 32, %v2583
    %v2585 = vshrl.u32 683565275, %v2584
    %v2586 = vshll.u32 683565275, %v2583
    %v2587 = vshrl.u32 2475754826, %v2584
    %v2588 = vor.u32 %v2586, %v2587
    %v2589 = vshll.u32 2475754826, %v2583
    %v2590 = vshrl.u32 2131351028, %v2584
    %v2591 = vor.u32 %v2589, %v2590
    %v2592 = vshll.u32 2131351028, %v2583
    %v2593 = vshrl.u32 2102212464, %v2584
    %v2594 = vor.u32 %v2592, %v2593
    %v2595 = vshll.u32 2102212464, %v2583
    %v2596 = vshrl.u32 920167782, %v2584
    %v2597 = vor.u32 %v2595, %v2596
    %v2598 = vshll.u32 920167782, %v2583
    %v2599 = vshrl.u32 1326507024, %v2584
    %v2600 = vor.u32 %v2598, %v2599
    %vm2601 = vcmp.lt.s32.totalorder %v2582, 1
    %vm2602 = vcmp.lt.s32.totalorder %v2582, 2
    %vm2603 = vcmp.lt.s32.totalorder %v2582, 3
    %vm2604 = vcmp.lt.s32.totalorder %v2582, 4
    %v2605 = vsel %vm2601, %v2585, %v2588
    %v2606 = vsel %vm2604, %v2594, 2102212464
    %v2607 = vsel %vm2603, %v2591, %v2606
    %v2608 = vsel %vm2602, %v2605, %v2607
    %v2609 = vsel %vm2601, %v2588, %v2591
    %v2610 = vsel %vm2604, %v2597, 920167782
    %v2611 = vsel %vm2603, %v2594, %v2610
    %v2612 = vsel %vm2602, %v2609, %v2611
    %v2613 = vsel %vm2601, %v2591, %v2594
    %v2614 = vsel %vm2604, %v2600, 1326507024
    %v2615 = vsel %vm2603, %v2597, %v2614
    %v2616 = vsel %vm2602, %v2613, %v2615
    %v2617 = vshll.u32 %v2577, 8
    %v2618 = vand.u32 %v2617, 65535
    %v2619 = vshrl.u32 %v2617, 16
    %v2620 = vand.u32 %v2616, 65535
    %v2621 = vshrl.u32 %v2616, 16
    %v2622 = vmul.u32 %v2618, %v2620
    %v2623 = vmul.u32 %v2618, %v2621
    %v2624 = vmul.u32 %v2619, %v2620
    %v2625 = vmul.u32 %v2619, %v2621
    %v2626 = vshll.u32 %v2623, 16
    %v2627 = vshrl.u32 %v2623, 16
    %v2628 = vshll.u32 %v2624, 16
    %v2629 = vshrl.u32 %v2624, 16
    %vm2630 = vc.u32 %v2622, %v2626
    %v2631 = vsel %vm2630, 1, 0
    %v2632 = vadd.s32 %v2622, %v2626
    %v2633 = vadd.s32 %v2625, %v2631
    %vm2634 = vc.u32 %v2632, %v2628
    %v2635 = vsel %vm2634, 1, 0
    %v2636 = vadd.s32 %v2632, %v2628
    %v2637 = vadd.s32 %v2633, %v2635
    %v2638 = vadd.s32 %v2637, %v2627
    %v2639 = vadd.s32 %v2638, %v2629
    %v2640 = vand.u32 %v2617, 65535
    %v2641 = vshrl.u32 %v2617, 16
    %v2642 = vand.u32 %v2612, 65535
    %v2643 = vshrl.u32 %v2612, 16
    %v2644 = vmul.u32 %v2640, %v2642
    %v2645 = vmul.u32 %v2640, %v2643
    %v2646 = vmul.u32 %v2641, %v2642
    %v2647 = vmul.u32 %v2641, %v2643
    %v2648 = vshll.u32 %v2645, 16
    %v2649 = vshrl.u32 %v2645, 16
    %v2650 = vshll.u32 %v2646, 16
    %v2651 = vshrl.u32 %v2646, 16
    %vm2652 = vc.u32 %v2644, %v2648
    %v2653 = vsel %vm2652, 1, 0
    %v2654 = vadd.s32 %v2644, %v2648
    %v2655 = vadd.s32 %v2647, %v2653
    %vm2656 = vc.u32 %v2654, %v2650
    %v2657 = vsel %vm2656, 1, 0
    %v2658 = vadd.s32 %v2654, %v2650
    %v2659 = vadd.s32 %v2655, %v2657
    %v2660 = vadd.s32 %v2659, %v2649
    %v2661 = vadd.s32 %v2660, %v2651
    %v2662 = vmul.u32 %v2617, %v2608
    %v2663 = vadd.s32 %v2639, %v2658
    %vm2664 = vc.u32 %v2639, %v2658
    %v2665 = vadd.s32 %v2661, 1
    %v2666 = vsel %vm2664, %v2665, %v2661
    %v2667 = vadd.s32 %v2662, %v2666
    %v2668 = vadd.s32 %v2667, 536870912
    %v2669 = vshrl.u32 %v2668, 30
    %v2670 = vshll.u32 %v2669, 30
    %v2671 = vsub.s32 %v2667, %v2670
    %vm2672 = vcmp.lt.s32.totalorder %v2671, 0
    %v2673 = vsub.s32 0, %v2671
    %v2674 = vsel %vm2672, %v2673, %v2671
    %v2675 = vclz %v2674
    %v2676 = vsub.s32 %v2675, 2
    %vm2677 = vcmp.gt.s32.totalorder 0, %v2676
    %v2678 = vsel %vm2677, 0, %v2676
    %v2679 = vsub.s32 32, %v2678
    %v2680 = vshll.u32 %v2671, %v2678
    %v2681 = vshrl.u32 %v2663, %v2679
    %v2682 = vor.u32 %v2680, %v2681
    %v2683 = vsub.s32 4294967266, %v2678
    %v2684 = vadd.s32 %v2683, 127
    %v2685 = vshll.u32 %v2684, 23
    %v2686 = vor.u32 4788187, %v2685
    %v2687 = vand.u32 2147483647, %v2686
    %v2689 = vcvt.s32.f32 %v2682
    %v2690 = vmul.f32 %v2689, %v2687
    %v2691 = vxor.u32 %v2690, 2147483648
    %v2692 = vsel %vm2571, %v2691, %v2690
    %v2693 = vsub.s32 4, %v2669
    %v2694 = vsel %vm2571, %v2693, %v2669
    %v2695 = vsel %vm2570, %v73, %v2692
    %v2696 = vsel %vm2570, 0, %v2694
    %v2697 = vmul.f32 %v2695, %v2695
    %v2698 = vmul.f32 %v2697, -0.001358992
    %v2699 = vadd.f32 %v2698, 0.041655596
    %v2700 = vmul.f32 %v2697, %v2699
    %v2701 = vadd.f32 %v2700, -0.4999988
    %v2702 = vmul.f32 %v2697, %v2701
    %v2703 = vadd.f32 1.0, %v2702
    %v2704 = vmul.f32 %v2695, %v2695
    %v2705 = vmul.f32 %v2704, -0.00019511016
    %v2706 = vadd.f32 %v2705, 0.008332121
    %v2707 = vmul.f32 %v2704, %v2706
    %v2708 = vadd.f32 %v2707, -0.16666654
    %v2709 = vmul.f32 %v2704, %v2708
    %v2710 = vadd.f32 %v2709, 1.0
    %v2711 = vmul.f32 %v2710, %v2695
    %vm2712 = vweird.f32 %v73
    %v2713 = vadd.s32 %v2696, 3
    %v2714 = vand.u32 %v2713, 3
    %vm2715 = vcmp.lt.s32.totalorder %v2714, 2
    %vm2716 = vcmp.eq.s32.totalorder %v2714, 0
    %v2717 = vxor.u32 %v2711, 2147483648
    %v2718 = vsel %vm2716, %v2703, %v2717
    %vm2719 = vcmp.eq.s32.totalorder %v2714, 2
    %v2720 = vxor.u32 %v2703, 2147483648
    %v2721 = vsel %vm2719, %v2720, %v2711
    %v2722 = vsel %vm2715, %v2718, %v2721
    %v2723 = vsel %vm2712, nan, %v2722
    %v2724 = vand.u32 2147483647, %v74
    %vm2725 = vcmp.le.f32.partialorder %v2724, 0.7853982
    %vm2726 = vcmp.lt.s32.totalorder %v74, 0
    %v2727 = vand.u32 %v74, 2139095040
    %v2728 = vshrl.u32 %v2727, 23
    %v2729 = vsub.s32 %v2728, 127
    %v2730 = vand.u32 2147483647, %v74
    %v2731 = vand.u32 %v2730, 8388607
    %v2732 = vor.u32 %v2731, 8388608
    %v2733 = vsub.s32 0, %v2732
    %v2734 = vadd.s32 %v2729, 1
    %vm2735 = vcmp.gt.s32.totalorder %v2734, 0
    %v2736 = vsel %vm2735, %v2734, 0
    %v2737 = vshrl.u32 %v2736, 5
    %v2738 = vand.u32 %v2736, 31
    %v2739 = vsub.s32 32, %v2738
    %v2740 = vshrl.u32 683565275, %v2739
    %v2741 = vshll.u32 683565275, %v2738
    %v2742 = vshrl.u32 2475754826, %v2739
    %v2743 = vor.u32 %v2741, %v2742
    %v2744 = vshll.u32 2475754826, %v2738
    %v2745 = vshrl.u32 2131351028, %v2739
    %v2746 = vor.u32 %v2744, %v2745
    %v2747 = vshll.u32 2131351028, %v2738
    %v2748 = vshrl.u32 2102212464, %v2739
    %v2749 = vor.u32 %v2747, %v2748
    %v2750 = vshll.u32 2102212464, %v2738
    %v2751 = vshrl.u32 920167782, %v2739
    %v2752 = vor.u32 %v2750, %v2751
    %v2753 = vshll.u32 920167782, %v2738
    %v2754 = vshrl.u32 1326507024, %v2739
    %v2755 = vor.u32 %v2753, %v2754
    %vm2756 = vcmp.lt.s32.totalorder %v2737, 1
    %vm2757 = vcmp.lt.s32.totalorder %v2737, 2
    %vm2758 = vcmp.lt.s32.totalorder %v2737, 3
    %vm2759 = vcmp.lt.s32.totalorder %v2737, 4
    %v2760 = vsel %vm2756, %v2740, %v2743
    %v2761 = vsel %vm2759, %v2749, 2102212464
    %v2762 = vsel %vm2758, %v2746, %v2761
    %v2763 = vsel %vm2757, %v2760, %v2762
    %v2764 = vsel %vm2756, %v2743, %v2746
    %v2765 = vsel %vm2759, %v2752, 920167782
    %v2766 = vsel %vm2758, %v2749, %v2765
    %v2767 = vsel %vm2757, %v2764, %v2766
    %v2768 = vsel %vm2756, %v2746, %v2749
    %v2769 = vsel %vm2759, %v2755, 1326507024
    %v2770 = vsel %vm2758, %v2752, %v2769
    %v2771 = vsel %vm2757, %v2768, %v2770
    %v2772 = vshll.u32 %v2732, 8
    %v2773 = vand.u32 %v2772, 65535
    %v2774 = vshrl.u32 %v2772, 16
    %v2775 = vand.u32 %v2771, 65535
    %v2776 = vshrl.u32 %v2771, 16
    %v2777 = vmul.u32 %v2773, %v2775
    %v2778 = vmul.u32 %v2773, %v2776
    %v2779 = vmul.u32 %v2774, %v2775
    %v2780 = vmul.u32 %v2774, %v2776
    %v2781 = vshll.u32 %v2778, 16
    %v2782 = vshrl.u32 %v2778, 16
    %v2783 = vshll.u32 %v2779, 16
    %v2784 = vshrl.u32 %v2779, 16
    %vm2785 = vc.u32 %v2777, %v2781
    %v2786 = vsel %vm2785, 1, 0
    %v2787 = vadd.s32 %v2777, %v2781
    %v2788 = vadd.s32 %v2780, %v2786
    %vm2789 = vc.u32 %v2787, %v2783
    %v2790 = vsel %vm2789, 1, 0
    %v2791 = vadd.s32 %v2787, %v2783
    %v2792 = vadd.s32 %v2788, %v2790
    %v2793 = vadd.s32 %v2792, %v2782
    %v2794 = vadd.s32 %v2793, %v2784
    %v2795 = vand.u32 %v2772, 65535
    %v2796 = vshrl.u32 %v2772, 16
    %v2797 = vand.u32 %v2767, 65535
    %v2798 = vshrl.u32 %v2767, 16
    %v2799 = vmul.u32 %v2795, %v2797
    %v2800 = vmul.u32 %v2795, %v2798
    %v2801 = vmul.u32 %v2796, %v2797
    %v2802 = vmul.u32 %v2796, %v2798
    %v2803 = vshll.u32 %v2800, 16
    %v2804 = vshrl.u32 %v2800, 16
    %v2805 = vshll.u32 %v2801, 16
    %v2806 = vshrl.u32 %v2801, 16
    %vm2807 = vc.u32 %v2799, %v2803
    %v2808 = vsel %vm2807, 1, 0
    %v2809 = vadd.s32 %v2799, %v2803
    %v2810 = vadd.s32 %v2802, %v2808
    %vm2811 = vc.u32 %v2809, %v2805
    %v2812 = vsel %vm2811, 1, 0
    %v2813 = vadd.s32 %v2809, %v2805
    %v2814 = vadd.s32 %v2810, %v2812
    %v2815 = vadd.s32 %v2814, %v2804
    %v2816 = vadd.s32 %v2815, %v2806
    %v2817 = vmul.u32 %v2772, %v2763
    %v2818 = vadd.s32 %v2794, %v2813
    %vm2819 = vc.u32 %v2794, %v2813
    %v2820 = vadd.s32 %v2816, 1
    %v2821 = vsel %vm2819, %v2820, %v2816
    %v2822 = vadd.s32 %v2817, %v2821
    %v2823 = vadd.s32 %v2822, 536870912
    %v2824 = vshrl.u32 %v2823, 30
    %v2825 = vshll.u32 %v2824, 30
    %v2826 = vsub.s32 %v2822, %v2825
    %vm2827 = vcmp.lt.s32.totalorder %v2826, 0
    %v2828 = vsub.s32 0, %v2826
    %v2829 = vsel %vm2827, %v2828, %v2826
    %v2830 = vclz %v2829
    %v2831 = vsub.s32 %v2830, 2
    %vm2832 = vcmp.gt.s32.totalorder 0, %v2831
    %v2833 = vsel %vm2832, 0, %v2831
    %v2834 = vsub.s32 32, %v2833
    %v2835 = vshll.u32 %v2826, %v2833
    %v2836 = vshrl.u32 %v2818, %v2834
    %v2837 = vor.u32 %v2835, %v2836
    %v2838 = vsub.s32 4294967266, %v2833
    %v2839 = vadd.s32 %v2838, 127
    %v2840 = vshll.u32 %v2839, 23
    %v2841 = vor.u32 4788187, %v2840
    %v2842 = vand.u32 2147483647, %v2841
    %v2844 = vcvt.s32.f32 %v2837
    %v2845 = vmul.f32 %v2844, %v2842
    %v2846 = vxor.u32 %v2845, 2147483648
    %v2847 = vsel %vm2726, %v2846, %v2845
    %v2848 = vsub.s32 4, %v2824
    %v2849 = vsel %vm2726, %v2848, %v2824
    %v2850 = vsel %vm2725, %v74, %v2847
    %v2851 = vsel %vm2725, 0, %v2849
    %v2852 = vmul.f32 %v2850, %v2850
    %v2853 = vmul.f32 %v2852, -0.001358992
    %v2854 = vadd.f32 %v2853, 0.041655596
    %v2855 = vmul.f32 %v2852, %v2854
    %v2856 = vadd.f32 %v2855, -0.4999988
    %v2857 = vmul.f32 %v2852, %v2856
    %v2858 = vadd.f32 1.0, %v2857
    %v2859 = vmul.f32 %v2850, %v2850
    %v2860 = vmul.f32 %v2859, -0.00019511016
    %v2861 = vadd.f32 %v2860, 0.008332121
    %v2862 = vmul.f32 %v2859, %v2861
    %v2863 = vadd.f32 %v2862, -0.16666654
    %v2864 = vmul.f32 %v2859, %v2863
    %v2865 = vadd.f32 %v2864, 1.0
    %v2866 = vmul.f32 %v2865, %v2850
    %vm2867 = vweird.f32 %v74
    %v2868 = vadd.s32 %v2851, 3
    %v2869 = vand.u32 %v2868, 3
    %vm2870 = vcmp.lt.s32.totalorder %v2869, 2
    %vm2871 = vcmp.eq.s32.totalorder %v2869, 0
    %v2872 = vxor.u32 %v2866, 2147483648
    %v2873 = vsel %vm2871, %v2858, %v2872
    %vm2874 = vcmp.eq.s32.totalorder %v2869, 2
    %v2875 = vxor.u32 %v2858, 2147483648
    %v2876 = vsel %vm2874, %v2875, %v2866
    %v2877 = vsel %vm2870, %v2873, %v2876
    %v2878 = vsel %vm2867, nan, %v2877
    %v2879 = vand.u32 2147483647, %v75
    %vm2880 = vcmp.le.f32.partialorder %v2879, 0.7853982
    %vm2881 = vcmp.lt.s32.totalorder %v75, 0
    %v2882 = vand.u32 %v75, 2139095040
    %v2883 = vshrl.u32 %v2882, 23
    %v2884 = vsub.s32 %v2883, 127
    %v2885 = vand.u32 2147483647, %v75
    %v2886 = vand.u32 %v2885, 8388607
    %v2887 = vor.u32 %v2886, 8388608
    %v2888 = vsub.s32 0, %v2887
    %v2889 = vadd.s32 %v2884, 1
    %vm2890 = vcmp.gt.s32.totalorder %v2889, 0
    %v2891 = vsel %vm2890, %v2889, 0
    %v2892 = vshrl.u32 %v2891, 5
    %v2893 = vand.u32 %v2891, 31
    %v2894 = vsub.s32 32, %v2893
    %v2895 = vshrl.u32 683565275, %v2894
    %v2896 = vshll.u32 683565275, %v2893
    %v2897 = vshrl.u32 2475754826, %v2894
    %v2898 = vor.u32 %v2896, %v2897
    %v2899 = vshll.u32 2475754826, %v2893
    %v2900 = vshrl.u32 2131351028, %v2894
    %v2901 = vor.u32 %v2899, %v2900
    %v2902 = vshll.u32 2131351028, %v2893
    %v2903 = vshrl.u32 2102212464, %v2894
    %v2904 = vor.u32 %v2902, %v2903
    %v2905 = vshll.u32 2102212464, %v2893
    %v2906 = vshrl.u32 920167782, %v2894
    %v2907 = vor.u32 %v2905, %v2906
    %v2908 = vshll.u32 920167782, %v2893
    %v2909 = vshrl.u32 1326507024, %v2894
    %v2910 = vor.u32 %v2908, %v2909
    %vm2911 = vcmp.lt.s32.totalorder %v2892, 1
    %vm2912 = vcmp.lt.s32.totalorder %v2892, 2
    %vm2913 = vcmp.lt.s32.totalorder %v2892, 3
    %vm2914 = vcmp.lt.s32.totalorder %v2892, 4
    %v2915 = vsel %vm2911, %v2895, %v2898
    %v2916 = vsel %vm2914, %v2904, 2102212464
    %v2917 = vsel %vm2913, %v2901, %v2916
    %v2918 = vsel %vm2912, %v2915, %v2917
    %v2919 = vsel %vm2911, %v2898, %v2901
    %v2920 = vsel %vm2914, %v2907, 920167782
    %v2921 = vsel %vm2913, %v2904, %v2920
    %v2922 = vsel %vm2912, %v2919, %v2921
    %v2923 = vsel %vm2911, %v2901, %v2904
    %v2924 = vsel %vm2914, %v2910, 1326507024
    %v2925 = vsel %vm2913, %v2907, %v2924
    %v2926 = vsel %vm2912, %v2923, %v2925
    %v2927 = vshll.u32 %v2887, 8
    %v2928 = vand.u32 %v2927, 65535
    %v2929 = vshrl.u32 %v2927, 16
    %v2930 = vand.u32 %v2926, 65535
    %v2931 = vshrl.u32 %v2926, 16
    %v2932 = vmul.u32 %v2928, %v2930
    %v2933 = vmul.u32 %v2928, %v2931
    %v2934 = vmul.u32 %v2929, %v2930
    %v2935 = vmul.u32 %v2929, %v2931
    %v2936 = vshll.u32 %v2933, 16
    %v2937 = vshrl.u32 %v2933, 16
    %v2938 = vshll.u32 %v2934, 16
    %v2939 = vshrl.u32 %v2934, 16
    %vm2940 = vc.u32 %v2932, %v2936
    %v2941 = vsel %vm2940, 1, 0
    %v2942 = vadd.s32 %v2932, %v2936
    %v2943 = vadd.s32 %v2935, %v2941
    %vm2944 = vc.u32 %v2942, %v2938
    %v2945 = vsel %vm2944, 1, 0
    %v2946 = vadd.s32 %v2942, %v2938
    %v2947 = vadd.s32 %v2943, %v2945
    %v2948 = vadd.s32 %v2947, %v2937
    %v2949 = vadd.s32 %v2948, %v2939
    %v2950 = vand.u32 %v2927, 65535
    %v2951 = vshrl.u32 %v2927, 16
    %v2952 = vand.u32 %v2922, 65535
    %v2953 = vshrl.u32 %v2922, 16
    %v2954 = vmul.u32 %v2950, %v2952
    %v2955 = vmul.u32 %v2950, %v2953
    %v2956 = vmul.u32 %v2951, %v2952
    %v2957 = vmul.u32 %v2951, %v2953
    %v2958 = vshll.u32 %v2955, 16
    %v2959 = vshrl.u32 %v2955, 16
    %v2960 = vshll.u32 %v2956, 16
    %v2961 = vshrl.u32 %v2956, 16
    %vm2962 = vc.u32 %v2954, %v2958
    %v2963 = vsel %vm2962, 1, 0
    %v2964 = vadd.s32 %v2954, %v2958
    %v2965 = vadd.s32 %v2957, %v2963
    %vm2966 = vc.u32 %v2964, %v2960
    %v2967 = vsel %vm2966, 1, 0
    %v2968 = vadd.s32 %v2964, %v2960
    %v2969 = vadd.s32 %v2965, %v2967
    %v2970 = vadd.s32 %v2969, %v2959
    %v2971 = vadd.s32 %v2970, %v2961
    %v2972 = vmul.u32 %v2927, %v2918
    %v2973 = vadd.s32 %v2949, %v2968
    %vm2974 = vc.u32 %v2949, %v2968
    %v2975 = vadd.s32 %v2971, 1
    %v2976 = vsel %vm2974, %v2975, %v2971
    %v2977 = vadd.s32 %v2972, %v2976
    %v2978 = vadd.s32 %v2977, 536870912
    %v2979 = vshrl.u32 %v2978, 30
    %v2980 = vshll.u32 %v2979, 30
    %v2981 = vsub.s32 %v2977, %v2980
    %vm2982 = vcmp.lt.s32.totalorder %v2981, 0
    %v2983 = vsub.s32 0, %v2981
    %v2984 = vsel %vm2982, %v2983, %v2981
    %v2985 = vclz %v2984
    %v2986 = vsub.s32 %v2985, 2
    %vm2987 = vcmp.gt.s32.totalorder 0, %v2986
    %v2988 = vsel %vm2987, 0, %v2986
    %v2989 = vsub.s32 32, %v2988
    %v2990 = vshll.u32 %v2981, %v2988
    %v2991 = vshrl.u32 %v2973, %v2989
    %v2992 = vor.u32 %v2990, %v2991
    %v2993 = vsub.s32 4294967266, %v2988
    %v2994 = vadd.s32 %v2993, 127
    %v2995 = vshll.u32 %v2994, 23
    %v2996 = vor.u32 4788187, %v2995
    %v2997 = vand.u32 2147483647, %v2996
    %v2999 = vcvt.s32.f32 %v2992
    %v3000 = vmul.f32 %v2999, %v2997
    %v3001 = vxor.u32 %v3000, 2147483648
    %v3002 = vsel %vm2881, %v3001, %v3000
    %v3003 = vsub.s32 4, %v2979
    %v3004 = vsel %vm2881, %v3003, %v2979
    %v3005 = vsel %vm2880, %v75, %v3002
    %v3006 = vsel %vm2880, 0, %v3004
    %v3007 = vmul.f32 %v3005, %v3005
    %v3008 = vmul.f32 %v3007, -0.001358992
    %v3009 = vadd.f32 %v3008, 0.041655596
    %v3010 = vmul.f32 %v3007, %v3009
    %v3011 = vadd.f32 %v3010, -0.4999988
    %v3012 = vmul.f32 %v3007, %v3011
    %v3013 = vadd.f32 1.0, %v3012
    %v3014 = vmul.f32 %v3005, %v3005
    %v3015 = vmul.f32 %v3014, -0.00019511016
    %v3016 = vadd.f32 %v3015, 0.008332121
    %v3017 = vmul.f32 %v3014, %v3016
    %v3018 = vadd.f32 %v3017, -0.16666654
    %v3019 = vmul.f32 %v3014, %v3018
    %v3020 = vadd.f32 %v3019, 1.0
    %v3021 = vmul.f32 %v3020, %v3005
    %vm3022 = vweird.f32 %v75
    %v3023 = vadd.s32 %v3006, 3
    %v3024 = vand.u32 %v3023, 3
    %vm3025 = vcmp.lt.s32.totalorder %v3024, 2
    %vm3026 = vcmp.eq.s32.totalorder %v3024, 0
    %v3027 = vxor.u32 %v3021, 2147483648
    %v3028 = vsel %vm3026, %v3013, %v3027
    %vm3029 = vcmp.eq.s32.totalorder %v3024, 2
    %v3030 = vxor.u32 %v3013, 2147483648
    %v3031 = vsel %vm3029, %v3030, %v3021
    %v3032 = vsel %vm3025, %v3028, %v3031
    %v3033 = vsel %vm3022, nan, %v3032
    %v3034 = vand.u32 2147483647, %v76
    %vm3035 = vcmp.le.f32.partialorder %v3034, 0.7853982
    %vm3036 = vcmp.lt.s32.totalorder %v76, 0
    %v3037 = vand.u32 %v76, 2139095040
    %v3038 = vshrl.u32 %v3037, 23
    %v3039 = vsub.s32 %v3038, 127
    %v3040 = vand.u32 2147483647, %v76
    %v3041 = vand.u32 %v3040, 8388607
    %v3042 = vor.u32 %v3041, 8388608
    %v3043 = vsub.s32 0, %v3042
    %v3044 = vadd.s32 %v3039, 1
    %vm3045 = vcmp.gt.s32.totalorder %v3044, 0
    %v3046 = vsel %vm3045, %v3044, 0
    %v3047 = vshrl.u32 %v3046, 5
    %v3048 = vand.u32 %v3046, 31
    %v3049 = vsub.s32 32, %v3048
    %v3050 = vshrl.u32 683565275, %v3049
    %v3051 = vshll.u32 683565275, %v3048
    %v3052 = vshrl.u32 2475754826, %v3049
    %v3053 = vor.u32 %v3051, %v3052
    %v3054 = vshll.u32 2475754826, %v3048
    %v3055 = vshrl.u32 2131351028, %v3049
    %v3056 = vor.u32 %v3054, %v3055
    %v3057 = vshll.u32 2131351028, %v3048
    %v3058 = vshrl.u32 2102212464, %v3049
    %v3059 = vor.u32 %v3057, %v3058
    %v3060 = vshll.u32 2102212464, %v3048
    %v3061 = vshrl.u32 920167782, %v3049
    %v3062 = vor.u32 %v3060, %v3061
    %v3063 = vshll.u32 920167782, %v3048
    %v3064 = vshrl.u32 1326507024, %v3049
    %v3065 = vor.u32 %v3063, %v3064
    %vm3066 = vcmp.lt.s32.totalorder %v3047, 1
    %vm3067 = vcmp.lt.s32.totalorder %v3047, 2
    %vm3068 = vcmp.lt.s32.totalorder %v3047, 3
    %vm3069 = vcmp.lt.s32.totalorder %v3047, 4
    %v3070 = vsel %vm3066, %v3050, %v3053
    %v3071 = vsel %vm3069, %v3059, 2102212464
    %v3072 = vsel %vm3068, %v3056, %v3071
    %v3073 = vsel %vm3067, %v3070, %v3072
    %v3074 = vsel %vm3066, %v3053, %v3056
    %v3075 = vsel %vm3069, %v3062, 920167782
    %v3076 = vsel %vm3068, %v3059, %v3075
    %v3077 = vsel %vm3067, %v3074, %v3076
    %v3078 = vsel %vm3066, %v3056, %v3059
    %v3079 = vsel %vm3069, %v3065, 1326507024
    %v3080 = vsel %vm3068, %v3062, %v3079
    %v3081 = vsel %vm3067, %v3078, %v3080
    %v3082 = vshll.u32 %v3042, 8
    %v3083 = vand.u32 %v3082, 65535
    %v3084 = vshrl.u32 %v3082, 16
    %v3085 = vand.u32 %v3081, 65535
    %v3086 = vshrl.u32 %v3081, 16
    %v3087 = vmul.u32 %v3083, %v3085
    %v3088 = vmul.u32 %v3083, %v3086
    %v3089 = vmul.u32 %v3084, %v3085
    %v3090 = vmul.u32 %v3084, %v3086
    %v3091 = vshll.u32 %v3088, 16
    %v3092 = vshrl.u32 %v3088, 16
    %v3093 = vshll.u32 %v3089, 16
    %v3094 = vshrl.u32 %v3089, 16
    %vm3095 = vc.u32 %v3087, %v3091
    %v3096 = vsel %vm3095, 1, 0
    %v3097 = vadd.s32 %v3087, %v3091
    %v3098 = vadd.s32 %v3090, %v3096
    %vm3099 = vc.u32 %v3097, %v3093
    %v3100 = vsel %vm3099, 1, 0
    %v3101 = vadd.s32 %v3097, %v3093
    %v3102 = vadd.s32 %v3098, %v3100
    %v3103 = vadd.s32 %v3102, %v3092
    %v3104 = vadd.s32 %v3103, %v3094
    %v3105 = vand.u32 %v3082, 65535
    %v3106 = vshrl.u32 %v3082, 16
    %v3107 = vand.u32 %v3077, 65535
    %v3108 = vshrl.u32 %v3077, 16
    %v3109 = vmul.u32 %v3105, %v3107
    %v3110 = vmul.u32 %v3105, %v3108
    %v3111 = vmul.u32 %v3106, %v3107
    %v3112 = vmul.u32 %v3106, %v3108
    %v3113 = vshll.u32 %v3110, 16
    %v3114 = vshrl.u32 %v3110, 16
    %v3115 = vshll.u32 %v3111, 16
    %v3116 = vshrl.u32 %v3111, 16
    %vm3117 = vc.u32 %v3109, %v3113
    %v3118 = vsel %vm3117, 1, 0
    %v3119 = vadd.s32 %v3109, %v3113
    %v3120 = vadd.s32 %v3112, %v3118
    %vm3121 = vc.u32 %v3119, %v3115
    %v3122 = vsel %vm3121, 1, 0
    %v3123 = vadd.s32 %v3119, %v3115
    %v3124 = vadd.s32 %v3120, %v3122
    %v3125 = vadd.s32 %v3124, %v3114
    %v3126 = vadd.s32 %v3125, %v3116
    %v3127 = vmul.u32 %v3082, %v3073
    %v3128 = vadd.s32 %v3104, %v3123
    %vm3129 = vc.u32 %v3104, %v3123
    %v3130 = vadd.s32 %v3126, 1
    %v3131 = vsel %vm3129, %v3130, %v3126
    %v3132 = vadd.s32 %v3127, %v3131
    %v3133 = vadd.s32 %v3132, 536870912
    %v3134 = vshrl.u32 %v3133, 30
    %v3135 = vshll.u32 %v3134, 30
    %v3136 = vsub.s32 %v3132, %v3135
    %vm3137 = vcmp.lt.s32.totalorder %v3136, 0
    %v3138 = vsub.s32 0, %v3136
    %v3139 = vsel %vm3137, %v3138, %v3136
    %v3140 = vclz %v3139
    %v3141 = vsub.s32 %v3140, 2
    %vm3142 = vcmp.gt.s32.totalorder 0, %v3141
    %v3143 = vsel %vm3142, 0, %v3141
    %v3144 = vsub.s32 32, %v3143
    %v3145 = vshll.u32 %v3136, %v3143
    %v3146 = vshrl.u32 %v3128, %v3144
    %v3147 = vor.u32 %v3145, %v3146
    %v3148 = vsub.s32 4294967266, %v3143
    %v3149 = vadd.s32 %v3148, 127
    %v3150 = vshll.u32 %v3149, 23
    %v3151 = vor.u32 4788187, %v3150
    %v3152 = vand.u32 2147483647, %v3151
    %v3154 = vcvt.s32.f32 %v3147
    %v3155 = vmul.f32 %v3154, %v3152
    %v3156 = vxor.u32 %v3155, 2147483648
    %v3157 = vsel %vm3036, %v3156, %v3155
    %v3158 = vsub.s32 4, %v3134
    %v3159 = vsel %vm3036, %v3158, %v3134
    %v3160 = vsel %vm3035, %v76, %v3157
    %v3161 = vsel %vm3035, 0, %v3159
    %v3162 = vmul.f32 %v3160, %v3160
    %v3163 = vmul.f32 %v3162, -0.001358992
    %v3164 = vadd.f32 %v3163, 0.041655596
    %v3165 = vmul.f32 %v3162, %v3164
    %v3166 = vadd.f32 %v3165, -0.4999988
    %v3167 = vmul.f32 %v3162, %v3166
    %v3168 = vadd.f32 1.0, %v3167
    %v3169 = vmul.f32 %v3160, %v3160
    %v3170 = vmul.f32 %v3169, -0.00019511016
    %v3171 = vadd.f32 %v3170, 0.008332121
    %v3172 = vmul.f32 %v3169, %v3171
    %v3173 = vadd.f32 %v3172, -0.16666654
    %v3174 = vmul.f32 %v3169, %v3173
    %v3175 = vadd.f32 %v3174, 1.0
    %v3176 = vmul.f32 %v3175, %v3160
    %vm3177 = vweird.f32 %v76
    %v3178 = vadd.s32 %v3161, 3
    %v3179 = vand.u32 %v3178, 3
    %vm3180 = vcmp.lt.s32.totalorder %v3179, 2
    %vm3181 = vcmp.eq.s32.totalorder %v3179, 0
    %v3182 = vxor.u32 %v3176, 2147483648
    %v3183 = vsel %vm3181, %v3168, %v3182
    %vm3184 = vcmp.eq.s32.totalorder %v3179, 2
    %v3185 = vxor.u32 %v3168, 2147483648
    %v3186 = vsel %vm3184, %v3185, %v3176
    %v3187 = vsel %vm3180, %v3183, %v3186
    %v3188 = vsel %vm3177, nan, %v3187
    %v3189 = vand.u32 2147483647, %v77
    %vm3190 = vcmp.le.f32.partialorder %v3189, 0.7853982
    %vm3191 = vcmp.lt.s32.totalorder %v77, 0
    %v3192 = vand.u32 %v77, 2139095040
    %v3193 = vshrl.u32 %v3192, 23
    %v3194 = vsub.s32 %v3193, 127
    %v3195 = vand.u32 2147483647, %v77
    %v3196 = vand.u32 %v3195, 8388607
    %v3197 = vor.u32 %v3196, 8388608
    %v3198 = vsub.s32 0, %v3197
    %v3199 = vadd.s32 %v3194, 1
    %vm3200 = vcmp.gt.s32.totalorder %v3199, 0
    %v3201 = vsel %vm3200, %v3199, 0
    %v3202 = vshrl.u32 %v3201, 5
    %v3203 = vand.u32 %v3201, 31
    %v3204 = vsub.s32 32, %v3203
    %v3205 = vshrl.u32 683565275, %v3204
    %v3206 = vshll.u32 683565275, %v3203
    %v3207 = vshrl.u32 2475754826, %v3204
    %v3208 = vor.u32 %v3206, %v3207
    %v3209 = vshll.u32 2475754826, %v3203
    %v3210 = vshrl.u32 2131351028, %v3204
    %v3211 = vor.u32 %v3209, %v3210
    %v3212 = vshll.u32 2131351028, %v3203
    %v3213 = vshrl.u32 2102212464, %v3204
    %v3214 = vor.u32 %v3212, %v3213
    %v3215 = vshll.u32 2102212464, %v3203
    %v3216 = vshrl.u32 920167782, %v3204
    %v3217 = vor.u32 %v3215, %v3216
    %v3218 = vshll.u32 920167782, %v3203
    %v3219 = vshrl.u32 1326507024, %v3204
    %v3220 = vor.u32 %v3218, %v3219
    %vm3221 = vcmp.lt.s32.totalorder %v3202, 1
    %vm3222 = vcmp.lt.s32.totalorder %v3202, 2
    %vm3223 = vcmp.lt.s32.totalorder %v3202, 3
    %vm3224 = vcmp.lt.s32.totalorder %v3202, 4
    %v3225 = vsel %vm3221, %v3205, %v3208
    %v3226 = vsel %vm3224, %v3214, 2102212464
    %v3227 = vsel %vm3223, %v3211, %v3226
    %v3228 = vsel %vm3222, %v3225, %v3227
    %v3229 = vsel %vm3221, %v3208, %v3211
    %v3230 = vsel %vm3224, %v3217, 920167782
    %v3231 = vsel %vm3223, %v3214, %v3230
    %v3232 = vsel %vm3222, %v3229, %v3231
    %v3233 = vsel %vm3221, %v3211, %v3214
    %v3234 = vsel %vm3224, %v3220, 1326507024
    %v3235 = vsel %vm3223, %v3217, %v3234
    %v3236 = vsel %vm3222, %v3233, %v3235
    %v3237 = vshll.u32 %v3197, 8
    %v3238 = vand.u32 %v3237, 65535
    %v3239 = vshrl.u32 %v3237, 16
    %v3240 = vand.u32 %v3236, 65535
    %v3241 = vshrl.u32 %v3236, 16
    %v3242 = vmul.u32 %v3238, %v3240
    %v3243 = vmul.u32 %v3238, %v3241
    %v3244 = vmul.u32 %v3239, %v3240
    %v3245 = vmul.u32 %v3239, %v3241
    %v3246 = vshll.u32 %v3243, 16
    %v3247 = vshrl.u32 %v3243, 16
    %v3248 = vshll.u32 %v3244, 16
    %v3249 = vshrl.u32 %v3244, 16
    %vm3250 = vc.u32 %v3242, %v3246
    %v3251 = vsel %vm3250, 1, 0
    %v3252 = vadd.s32 %v3242, %v3246
    %v3253 = vadd.s32 %v3245, %v3251
    %vm3254 = vc.u32 %v3252, %v3248
    %v3255 = vsel %vm3254, 1, 0
    %v3256 = vadd.s32 %v3252, %v3248
    %v3257 = vadd.s32 %v3253, %v3255
    %v3258 = vadd.s32 %v3257, %v3247
    %v3259 = vadd.s32 %v3258, %v3249
    %v3260 = vand.u32 %v3237, 65535
    %v3261 = vshrl.u32 %v3237, 16
    %v3262 = vand.u32 %v3232, 65535
    %v3263 = vshrl.u32 %v3232, 16
    %v3264 = vmul.u32 %v3260, %v3262
    %v3265 = vmul.u32 %v3260, %v3263
    %v3266 = vmul.u32 %v3261, %v3262
    %v3267 = vmul.u32 %v3261, %v3263
    %v3268 = vshll.u32 %v3265, 16
    %v3269 = vshrl.u32 %v3265, 16
    %v3270 = vshll.u32 %v3266, 16
    %v3271 = vshrl.u32 %v3266, 16
    %vm3272 = vc.u32 %v3264, %v3268
    %v3273 = vsel %vm3272, 1, 0
    %v3274 = vadd.s32 %v3264, %v3268
    %v3275 = vadd.s32 %v3267, %v3273
    %vm3276 = vc.u32 %v3274, %v3270
    %v3277 = vsel %vm3276, 1, 0
    %v3278 = vadd.s32 %v3274, %v3270
    %v3279 = vadd.s32 %v3275, %v3277
    %v3280 = vadd.s32 %v3279, %v3269
    %v3281 = vadd.s32 %v3280, %v3271
    %v3282 = vmul.u32 %v3237, %v3228
    %v3283 = vadd.s32 %v3259, %v3278
    %vm3284 = vc.u32 %v3259, %v3278
    %v3285 = vadd.s32 %v3281, 1
    %v3286 = vsel %vm3284, %v3285, %v3281
    %v3287 = vadd.s32 %v3282, %v3286
    %v3288 = vadd.s32 %v3287, 536870912
    %v3289 = vshrl.u32 %v3288, 30
    %v3290 = vshll.u32 %v3289, 30
    %v3291 = vsub.s32 %v3287, %v3290
    %vm3292 = vcmp.lt.s32.totalorder %v3291, 0
    %v3293 = vsub.s32 0, %v3291
    %v3294 = vsel %vm3292, %v3293, %v3291
    %v3295 = vclz %v3294
    %v3296 = vsub.s32 %v3295, 2
    %vm3297 = vcmp.gt.s32.totalorder 0, %v3296
    %v3298 = vsel %vm3297, 0, %v3296
    %v3299 = vsub.s32 32, %v3298
    %v3300 = vshll.u32 %v3291, %v3298
    %v3301 = vshrl.u32 %v3283, %v3299
    %v3302 = vor.u32 %v3300, %v3301
    %v3303 = vsub.s32 4294967266, %v3298
    %v3304 = vadd.s32 %v3303, 127
    %v3305 = vshll.u32 %v3304, 23
    %v3306 = vor.u32 4788187, %v3305
    %v3307 = vand.u32 2147483647, %v3306
    %v3309 = vcvt.s32.f32 %v3302
    %v3310 = vmul.f32 %v3309, %v3307
    %v3311 = vxor.u32 %v3310, 2147483648
    %v3312 = vsel %vm3191, %v3311, %v3310
    %v3313 = vsub.s32 4, %v3289
    %v3314 = vsel %vm3191, %v3313, %v3289
    %v3315 = vsel %vm3190, %v77, %v3312
    %v3316 = vsel %vm3190, 0, %v3314
    %v3317 = vmul.f32 %v3315, %v3315
    %v3318 = vmul.f32 %v3317, -0.001358992
    %v3319 = vadd.f32 %v3318, 0.041655596
    %v3320 = vmul.f32 %v3317, %v3319
    %v3321 = vadd.f32 %v3320, -0.4999988
    %v3322 = vmul.f32 %v3317, %v3321
    %v3323 = vadd.f32 1.0, %v3322
    %v3324 = vmul.f32 %v3315, %v3315
    %v3325 = vmul.f32 %v3324, -0.00019511016
    %v3326 = vadd.f32 %v3325, 0.008332121
    %v3327 = vmul.f32 %v3324, %v3326
    %v3328 = vadd.f32 %v3327, -0.16666654
    %v3329 = vmul.f32 %v3324, %v3328
    %v3330 = vadd.f32 %v3329, 1.0
    %v3331 = vmul.f32 %v3330, %v3315
    %vm3332 = vweird.f32 %v77
    %v3333 = vadd.s32 %v3316, 3
    %v3334 = vand.u32 %v3333, 3
    %vm3335 = vcmp.lt.s32.totalorder %v3334, 2
    %vm3336 = vcmp.eq.s32.totalorder %v3334, 0
    %v3337 = vxor.u32 %v3331, 2147483648
    %v3338 = vsel %vm3336, %v3323, %v3337
    %vm3339 = vcmp.eq.s32.totalorder %v3334, 2
    %v3340 = vxor.u32 %v3323, 2147483648
    %v3341 = vsel %vm3339, %v3340, %v3331
    %v3342 = vsel %vm3335, %v3338, %v3341
    %v3343 = vsel %vm3332, nan, %v3342
    %v3344 = vand.u32 2147483647, %v78
    %vm3345 = vcmp.le.f32.partialorder %v3344, 0.7853982
    %vm3346 = vcmp.lt.s32.totalorder %v78, 0
    %v3347 = vand.u32 %v78, 2139095040
    %v3348 = vshrl.u32 %v3347, 23
    %v3349 = vsub.s32 %v3348, 127
    %v3350 = vand.u32 2147483647, %v78
    %v3351 = vand.u32 %v3350, 8388607
    %v3352 = vor.u32 %v3351, 8388608
    %v3353 = vsub.s32 0, %v3352
    %v3354 = vadd.s32 %v3349, 1
    %vm3355 = vcmp.gt.s32.totalorder %v3354, 0
    %v3356 = vsel %vm3355, %v3354, 0
    %v3357 = vshrl.u32 %v3356, 5
    %v3358 = vand.u32 %v3356, 31
    %v3359 = vsub.s32 32, %v3358
    %v3360 = vshrl.u32 683565275, %v3359
    %v3361 = vshll.u32 683565275, %v3358
    %v3362 = vshrl.u32 2475754826, %v3359
    %v3363 = vor.u32 %v3361, %v3362
    %v3364 = vshll.u32 2475754826, %v3358
    %v3365 = vshrl.u32 2131351028, %v3359
    %v3366 = vor.u32 %v3364, %v3365
    %v3367 = vshll.u32 2131351028, %v3358
    %v3368 = vshrl.u32 2102212464, %v3359
    %v3369 = vor.u32 %v3367, %v3368
    %v3370 = vshll.u32 2102212464, %v3358
    %v3371 = vshrl.u32 920167782, %v3359
    %v3372 = vor.u32 %v3370, %v3371
    %v3373 = vshll.u32 920167782, %v3358
    %v3374 = vshrl.u32 1326507024, %v3359
    %v3375 = vor.u32 %v3373, %v3374
    %vm3376 = vcmp.lt.s32.totalorder %v3357, 1
    %vm3377 = vcmp.lt.s32.totalorder %v3357, 2
    %vm3378 = vcmp.lt.s32.totalorder %v3357, 3
    %vm3379 = vcmp.lt.s32.totalorder %v3357, 4
    %v3380 = vsel %vm3376, %v3360, %v3363
    %v3381 = vsel %vm3379, %v3369, 2102212464
    %v3382 = vsel %vm3378, %v3366, %v3381
    %v3383 = vsel %vm3377, %v3380, %v3382
    %v3384 = vsel %vm3376, %v3363, %v3366
    %v3385 = vsel %vm3379, %v3372, 920167782
    %v3386 = vsel %vm3378, %v3369, %v3385
    %v3387 = vsel %vm3377, %v3384, %v3386
    %v3388 = vsel %vm3376, %v3366, %v3369
    %v3389 = vsel %vm3379, %v3375, 1326507024
    %v3390 = vsel %vm3378, %v3372, %v3389
    %v3391 = vsel %vm3377, %v3388, %v3390
    %v3392 = vshll.u32 %v3352, 8
    %v3393 = vand.u32 %v3392, 65535
    %v3394 = vshrl.u32 %v3392, 16
    %v3395 = vand.u32 %v3391, 65535
    %v3396 = vshrl.u32 %v3391, 16
    %v3397 = vmul.u32 %v3393, %v3395
    %v3398 = vmul.u32 %v3393, %v3396
    %v3399 = vmul.u32 %v3394, %v3395
    %v3400 = vmul.u32 %v3394, %v3396
    %v3401 = vshll.u32 %v3398, 16
    %v3402 = vshrl.u32 %v3398, 16
    %v3403 = vshll.u32 %v3399, 16
    %v3404 = vshrl.u32 %v3399, 16
    %vm3405 = vc.u32 %v3397, %v3401
    %v3406 = vsel %vm3405, 1, 0
    %v3407 = vadd.s32 %v3397, %v3401
    %v3408 = vadd.s32 %v3400, %v3406
    %vm3409 = vc.u32 %v3407, %v3403
    %v3410 = vsel %vm3409, 1, 0
    %v3411 = vadd.s32 %v3407, %v3403
    %v3412 = vadd.s32 %v3408, %v3410
    %v3413 = vadd.s32 %v3412, %v3402
    %v3414 = vadd.s32 %v3413, %v3404
    %v3415 = vand.u32 %v3392, 65535
    %v3416 = vshrl.u32 %v3392, 16
    %v3417 = vand.u32 %v3387, 65535
    %v3418 = vshrl.u32 %v3387, 16
    %v3419 = vmul.u32 %v3415, %v3417
    %v3420 = vmul.u32 %v3415, %v3418
    %v3421 = vmul.u32 %v3416, %v3417
    %v3422 = vmul.u32 %v3416, %v3418
    %v3423 = vshll.u32 %v3420, 16
    %v3424 = vshrl.u32 %v3420, 16
    %v3425 = vshll.u32 %v3421, 16
    %v3426 = vshrl.u32 %v3421, 16
    %vm3427 = vc.u32 %v3419, %v3423
    %v3428 = vsel %vm3427, 1, 0
    %v3429 = vadd.s32 %v3419, %v3423
    %v3430 = vadd.s32 %v3422, %v3428
    %vm3431 = vc.u32 %v3429, %v3425
    %v3432 = vsel %vm3431, 1, 0
    %v3433 = vadd.s32 %v3429, %v3425
    %v3434 = vadd.s32 %v3430, %v3432
    %v3435 = vadd.s32 %v3434, %v3424
    %v3436 = vadd.s32 %v3435, %v3426
    %v3437 = vmul.u32 %v3392, %v3383
    %v3438 = vadd.s32 %v3414, %v3433
    %vm3439 = vc.u32 %v3414, %v3433
    %v3440 = vadd.s32 %v3436, 1
    %v3441 = vsel %vm3439, %v3440, %v3436
    %v3442 = vadd.s32 %v3437, %v3441
    %v3443 = vadd.s32 %v3442, 536870912
    %v3444 = vshrl.u32 %v3443, 30
    %v3445 = vshll.u32 %v3444, 30
    %v3446 = vsub.s32 %v3442, %v3445
    %vm3447 = vcmp.lt.s32.totalorder %v3446, 0
    %v3448 = vsub.s32 0, %v3446
    %v3449 = vsel %vm3447, %v3448, %v3446
    %v3450 = vclz %v3449
    %v3451 = vsub.s32 %v3450, 2
    %vm3452 = vcmp.gt.s32.totalorder 0, %v3451
    %v3453 = vsel %vm3452, 0, %v3451
    %v3454 = vsub.s32 32, %v3453
    %v3455 = vshll.u32 %v3446, %v3453
    %v3456 = vshrl.u32 %v3438, %v3454
    %v3457 = vor.u32 %v3455, %v3456
    %v3458 = vsub.s32 4294967266, %v3453
    %v3459 = vadd.s32 %v3458, 127
    %v3460 = vshll.u32 %v3459, 23
    %v3461 = vor.u32 4788187, %v3460
    %v3462 = vand.u32 2147483647, %v3461
    %v3464 = vcvt.s32.f32 %v3457
    %v3465 = vmul.f32 %v3464, %v3462
    %v3466 = vxor.u32 %v3465, 2147483648
    %v3467 = vsel %vm3346, %v3466, %v3465
    %v3468 = vsub.s32 4, %v3444
    %v3469 = vsel %vm3346, %v3468, %v3444
    %v3470 = vsel %vm3345, %v78, %v3467
    %v3471 = vsel %vm3345, 0, %v3469
    %v3472 = vmul.f32 %v3470, %v3470
    %v3473 = vmul.f32 %v3472, -0.001358992
    %v3474 = vadd.f32 %v3473, 0.041655596
    %v3475 = vmul.f32 %v3472, %v3474
    %v3476 = vadd.f32 %v3475, -0.4999988
    %v3477 = vmul.f32 %v3472, %v3476
    %v3478 = vadd.f32 1.0, %v3477
    %v3479 = vmul.f32 %v3470, %v3470
    %v3480 = vmul.f32 %v3479, -0.00019511016
    %v3481 = vadd.f32 %v3480, 0.008332121
    %v3482 = vmul.f32 %v3479, %v3481
    %v3483 = vadd.f32 %v3482, -0.16666654
    %v3484 = vmul.f32 %v3479, %v3483
    %v3485 = vadd.f32 %v3484, 1.0
    %v3486 = vmul.f32 %v3485, %v3470
    %vm3487 = vweird.f32 %v78
    %v3488 = vadd.s32 %v3471, 3
    %v3489 = vand.u32 %v3488, 3
    %vm3490 = vcmp.lt.s32.totalorder %v3489, 2
    %vm3491 = vcmp.eq.s32.totalorder %v3489, 0
    %v3492 = vxor.u32 %v3486, 2147483648
    %v3493 = vsel %vm3491, %v3478, %v3492
    %vm3494 = vcmp.eq.s32.totalorder %v3489, 2
    %v3495 = vxor.u32 %v3478, 2147483648
    %v3496 = vsel %vm3494, %v3495, %v3486
    %v3497 = vsel %vm3490, %v3493, %v3496
    %v3498 = vsel %vm3487, nan, %v3497
    %v3499 = vand.u32 2147483647, %v79
    %vm3500 = vcmp.le.f32.partialorder %v3499, 0.7853982
    %vm3501 = vcmp.lt.s32.totalorder %v79, 0
    %v3502 = vand.u32 %v79, 2139095040
    %v3503 = vshrl.u32 %v3502, 23
    %v3504 = vsub.s32 %v3503, 127
    %v3505 = vand.u32 2147483647, %v79
    %v3506 = vand.u32 %v3505, 8388607
    %v3507 = vor.u32 %v3506, 8388608
    %v3508 = vsub.s32 0, %v3507
    %v3509 = vadd.s32 %v3504, 1
    %vm3510 = vcmp.gt.s32.totalorder %v3509, 0
    %v3511 = vsel %vm3510, %v3509, 0
    %v3512 = vshrl.u32 %v3511, 5
    %v3513 = vand.u32 %v3511, 31
    %v3514 = vsub.s32 32, %v3513
    %v3515 = vshrl.u32 683565275, %v3514
    %v3516 = vshll.u32 683565275, %v3513
    %v3517 = vshrl.u32 2475754826, %v3514
    %v3518 = vor.u32 %v3516, %v3517
    %v3519 = vshll.u32 2475754826, %v3513
    %v3520 = vshrl.u32 2131351028, %v3514
    %v3521 = vor.u32 %v3519, %v3520
    %v3522 = vshll.u32 2131351028, %v3513
    %v3523 = vshrl.u32 2102212464, %v3514
    %v3524 = vor.u32 %v3522, %v3523
    %v3525 = vshll.u32 2102212464, %v3513
    %v3526 = vshrl.u32 920167782, %v3514
    %v3527 = vor.u32 %v3525, %v3526
    %v3528 = vshll.u32 920167782, %v3513
    %v3529 = vshrl.u32 1326507024, %v3514
    %v3530 = vor.u32 %v3528, %v3529
    %vm3531 = vcmp.lt.s32.totalorder %v3512, 1
    %vm3532 = vcmp.lt.s32.totalorder %v3512, 2
    %vm3533 = vcmp.lt.s32.totalorder %v3512, 3
    %vm3534 = vcmp.lt.s32.totalorder %v3512, 4
    %v3535 = vsel %vm3531, %v3515, %v3518
    %v3536 = vsel %vm3534, %v3524, 2102212464
    %v3537 = vsel %vm3533, %v3521, %v3536
    %v3538 = vsel %vm3532, %v3535, %v3537
    %v3539 = vsel %vm3531, %v3518, %v3521
    %v3540 = vsel %vm3534, %v3527, 920167782
    %v3541 = vsel %vm3533, %v3524, %v3540
    %v3542 = vsel %vm3532, %v3539, %v3541
    %v3543 = vsel %vm3531, %v3521, %v3524
    %v3544 = vsel %vm3534, %v3530, 1326507024
    %v3545 = vsel %vm3533, %v3527, %v3544
    %v3546 = vsel %vm3532, %v3543, %v3545
    %v3547 = vshll.u32 %v3507, 8
    %v3548 = vand.u32 %v3547, 65535
    %v3549 = vshrl.u32 %v3547, 16
    %v3550 = vand.u32 %v3546, 65535
    %v3551 = vshrl.u32 %v3546, 16
    %v3552 = vmul.u32 %v3548, %v3550
    %v3553 = vmul.u32 %v3548, %v3551
    %v3554 = vmul.u32 %v3549, %v3550
    %v3555 = vmul.u32 %v3549, %v3551
    %v3556 = vshll.u32 %v3553, 16
    %v3557 = vshrl.u32 %v3553, 16
    %v3558 = vshll.u32 %v3554, 16
    %v3559 = vshrl.u32 %v3554, 16
    %vm3560 = vc.u32 %v3552, %v3556
    %v3561 = vsel %vm3560, 1, 0
    %v3562 = vadd.s32 %v3552, %v3556
    %v3563 = vadd.s32 %v3555, %v3561
    %vm3564 = vc.u32 %v3562, %v3558
    %v3565 = vsel %vm3564, 1, 0
    %v3566 = vadd.s32 %v3562, %v3558
    %v3567 = vadd.s32 %v3563, %v3565
    %v3568 = vadd.s32 %v3567, %v3557
    %v3569 = vadd.s32 %v3568, %v3559
    %v3570 = vand.u32 %v3547, 65535
    %v3571 = vshrl.u32 %v3547, 16
    %v3572 = vand.u32 %v3542, 65535
    %v3573 = vshrl.u32 %v3542, 16
    %v3574 = vmul.u32 %v3570, %v3572
    %v3575 = vmul.u32 %v3570, %v3573
    %v3576 = vmul.u32 %v3571, %v3572
    %v3577 = vmul.u32 %v3571, %v3573
    %v3578 = vshll.u32 %v3575, 16
    %v3579 = vshrl.u32 %v3575, 16
    %v3580 = vshll.u32 %v3576, 16
    %v3581 = vshrl.u32 %v3576, 16
    %vm3582 = vc.u32 %v3574, %v3578
    %v3583 = vsel %vm3582, 1, 0
    %v3584 = vadd.s32 %v3574, %v3578
    %v3585 = vadd.s32 %v3577, %v3583
    %vm3586 = vc.u32 %v3584, %v3580
    %v3587 = vsel %vm3586, 1, 0
    %v3588 = vadd.s32 %v3584, %v3580
    %v3589 = vadd.s32 %v3585, %v3587
    %v3590 = vadd.s32 %v3589, %v3579
    %v3591 = vadd.s32 %v3590, %v3581
    %v3592 = vmul.u32 %v3547, %v3538
    %v3593 = vadd.s32 %v3569, %v3588
    %vm3594 = vc.u32 %v3569, %v3588
    %v3595 = vadd.s32 %v3591, 1
    %v3596 = vsel %vm3594, %v3595, %v3591
    %v3597 = vadd.s32 %v3592, %v3596
    %v3598 = vadd.s32 %v3597, 536870912
    %v3599 = vshrl.u32 %v3598, 30
    %v3600 = vshll.u32 %v3599, 30
    %v3601 = vsub.s32 %v3597, %v3600
    %vm3602 = vcmp.lt.s32.totalorder %v3601, 0
    %v3603 = vsub.s32 0, %v3601
    %v3604 = vsel %vm3602, %v3603, %v3601
    %v3605 = vclz %v3604
    %v3606 = vsub.s32 %v3605, 2
    %vm3607 = vcmp.gt.s32.totalorder 0, %v3606
    %v3608 = vsel %vm3607, 0, %v3606
    %v3609 = vsub.s32 32, %v3608
    %v3610 = vshll.u32 %v3601, %v3608
    %v3611 = vshrl.u32 %v3593, %v3609
    %v3612 = vor.u32 %v3610, %v3611
    %v3613 = vsub.s32 4294967266, %v3608
    %v3614 = vadd.s32 %v3613, 127
    %v3615 = vshll.u32 %v3614, 23
    %v3616 = vor.u32 4788187, %v3615
    %v3617 = vand.u32 2147483647, %v3616
    %v3619 = vcvt.s32.f32 %v3612
    %v3620 = vmul.f32 %v3619, %v3617
    %v3621 = vxor.u32 %v3620, 2147483648
    %v3622 = vsel %vm3501, %v3621, %v3620
    %v3623 = vsub.s32 4, %v3599
    %v3624 = vsel %vm3501, %v3623, %v3599
    %v3625 = vsel %vm3500, %v79, %v3622
    %v3626 = vsel %vm3500, 0, %v3624
    %v3627 = vmul.f32 %v3625, %v3625
    %v3628 = vmul.f32 %v3627, -0.001358992
    %v3629 = vadd.f32 %v3628, 0.041655596
    %v3630 = vmul.f32 %v3627, %v3629
    %v3631 = vadd.f32 %v3630, -0.4999988
    %v3632 = vmul.f32 %v3627, %v3631
    %v3633 = vadd.f32 1.0, %v3632
    %v3634 = vmul.f32 %v3625, %v3625
    %v3635 = vmul.f32 %v3634, -0.00019511016
    %v3636 = vadd.f32 %v3635, 0.008332121
    %v3637 = vmul.f32 %v3634, %v3636
    %v3638 = vadd.f32 %v3637, -0.16666654
    %v3639 = vmul.f32 %v3634, %v3638
    %v3640 = vadd.f32 %v3639, 1.0
    %v3641 = vmul.f32 %v3640, %v3625
    %vm3642 = vweird.f32 %v79
    %v3643 = vadd.s32 %v3626, 3
    %v3644 = vand.u32 %v3643, 3
    %vm3645 = vcmp.lt.s32.totalorder %v3644, 2
    %vm3646 = vcmp.eq.s32.totalorder %v3644, 0
    %v3647 = vxor.u32 %v3641, 2147483648
    %v3648 = vsel %vm3646, %v3633, %v3647
    %vm3649 = vcmp.eq.s32.totalorder %v3644, 2
    %v3650 = vxor.u32 %v3633, 2147483648
    %v3651 = vsel %vm3649, %v3650, %v3641
    %v3652 = vsel %vm3645, %v3648, %v3651
    %v3653 = vsel %vm3642, nan, %v3652
    %v3654 = vand.u32 2147483647, %v80
    %vm3655 = vcmp.le.f32.partialorder %v3654, 0.7853982
    %vm3656 = vcmp.lt.s32.totalorder %v80, 0
    %v3657 = vand.u32 %v80, 2139095040
    %v3658 = vshrl.u32 %v3657, 23
    %v3659 = vsub.s32 %v3658, 127
    %v3660 = vand.u32 2147483647, %v80
    %v3661 = vand.u32 %v3660, 8388607
    %v3662 = vor.u32 %v3661, 8388608
    %v3663 = vsub.s32 0, %v3662
    %v3664 = vadd.s32 %v3659, 1
    %vm3665 = vcmp.gt.s32.totalorder %v3664, 0
    %v3666 = vsel %vm3665, %v3664, 0
    %v3667 = vshrl.u32 %v3666, 5
    %v3668 = vand.u32 %v3666, 31
    %v3669 = vsub.s32 32, %v3668
    %v3670 = vshrl.u32 683565275, %v3669
    %v3671 = vshll.u32 683565275, %v3668
    %v3672 = vshrl.u32 2475754826, %v3669
    %v3673 = vor.u32 %v3671, %v3672
    %v3674 = vshll.u32 2475754826, %v3668
    %v3675 = vshrl.u32 2131351028, %v3669
    %v3676 = vor.u32 %v3674, %v3675
    %v3677 = vshll.u32 2131351028, %v3668
    %v3678 = vshrl.u32 2102212464, %v3669
    %v3679 = vor.u32 %v3677, %v3678
    %v3680 = vshll.u32 2102212464, %v3668
    %v3681 = vshrl.u32 920167782, %v3669
    %v3682 = vor.u32 %v3680, %v3681
    %v3683 = vshll.u32 920167782, %v3668
    %v3684 = vshrl.u32 1326507024, %v3669
    %v3685 = vor.u32 %v3683, %v3684
    %vm3686 = vcmp.lt.s32.totalorder %v3667, 1
    %vm3687 = vcmp.lt.s32.totalorder %v3667, 2
    %vm3688 = vcmp.lt.s32.totalorder %v3667, 3
    %vm3689 = vcmp.lt.s32.totalorder %v3667, 4
    %v3690 = vsel %vm3686, %v3670, %v3673
    %v3691 = vsel %vm3689, %v3679, 2102212464
    %v3692 = vsel %vm3688, %v3676, %v3691
    %v3693 = vsel %vm3687, %v3690, %v3692
    %v3694 = vsel %vm3686, %v3673, %v3676
    %v3695 = vsel %vm3689, %v3682, 920167782
    %v3696 = vsel %vm3688, %v3679, %v3695
    %v3697 = vsel %vm3687, %v3694, %v3696
    %v3698 = vsel %vm3686, %v3676, %v3679
    %v3699 = vsel %vm3689, %v3685, 1326507024
    %v3700 = vsel %vm3688, %v3682, %v3699
    %v3701 = vsel %vm3687, %v3698, %v3700
    %v3702 = vshll.u32 %v3662, 8
    %v3703 = vand.u32 %v3702, 65535
    %v3704 = vshrl.u32 %v3702, 16
    %v3705 = vand.u32 %v3701, 65535
    %v3706 = vshrl.u32 %v3701, 16
    %v3707 = vmul.u32 %v3703, %v3705
    %v3708 = vmul.u32 %v3703, %v3706
    %v3709 = vmul.u32 %v3704, %v3705
    %v3710 = vmul.u32 %v3704, %v3706
    %v3711 = vshll.u32 %v3708, 16
    %v3712 = vshrl.u32 %v3708, 16
    %v3713 = vshll.u32 %v3709, 16
    %v3714 = vshrl.u32 %v3709, 16
    %vm3715 = vc.u32 %v3707, %v3711
    %v3716 = vsel %vm3715, 1, 0
    %v3717 = vadd.s32 %v3707, %v3711
    %v3718 = vadd.s32 %v3710, %v3716
    %vm3719 = vc.u32 %v3717, %v3713
    %v3720 = vsel %vm3719, 1, 0
    %v3721 = vadd.s32 %v3717, %v3713
    %v3722 = vadd.s32 %v3718, %v3720
    %v3723 = vadd.s32 %v3722, %v3712
    %v3724 = vadd.s32 %v3723, %v3714
    %v3725 = vand.u32 %v3702, 65535
    %v3726 = vshrl.u32 %v3702, 16
    %v3727 = vand.u32 %v3697, 65535
    %v3728 = vshrl.u32 %v3697, 16
    %v3729 = vmul.u32 %v3725, %v3727
    %v3730 = vmul.u32 %v3725, %v3728
    %v3731 = vmul.u32 %v3726, %v3727
    %v3732 = vmul.u32 %v3726, %v3728
    %v3733 = vshll.u32 %v3730, 16
    %v3734 = vshrl.u32 %v3730, 16
    %v3735 = vshll.u32 %v3731, 16
    %v3736 = vshrl.u32 %v3731, 16
    %vm3737 = vc.u32 %v3729, %v3733
    %v3738 = vsel %vm3737, 1, 0
    %v3739 = vadd.s32 %v3729, %v3733
    %v3740 = vadd.s32 %v3732, %v3738
    %vm3741 = vc.u32 %v3739, %v3735
    %v3742 = vsel %vm3741, 1, 0
    %v3743 = vadd.s32 %v3739, %v3735
    %v3744 = vadd.s32 %v3740, %v3742
    %v3745 = vadd.s32 %v3744, %v3734
    %v3746 = vadd.s32 %v3745, %v3736
    %v3747 = vmul.u32 %v3702, %v3693
    %v3748 = vadd.s32 %v3724, %v3743
    %vm3749 = vc.u32 %v3724, %v3743
    %v3750 = vadd.s32 %v3746, 1
    %v3751 = vsel %vm3749, %v3750, %v3746
    %v3752 = vadd.s32 %v3747, %v3751
    %v3753 = vadd.s32 %v3752, 536870912
    %v3754 = vshrl.u32 %v3753, 30
    %v3755 = vshll.u32 %v3754, 30
    %v3756 = vsub.s32 %v3752, %v3755
    %vm3757 = vcmp.lt.s32.totalorder %v3756, 0
    %v3758 = vsub.s32 0, %v3756
    %v3759 = vsel %vm3757, %v3758, %v3756
    %v3760 = vclz %v3759
    %v3761 = vsub.s32 %v3760, 2
    %vm3762 = vcmp.gt.s32.totalorder 0, %v3761
    %v3763 = vsel %vm3762, 0, %v3761
    %v3764 = vsub.s32 32, %v3763
    %v3765 = vshll.u32 %v3756, %v3763
    %v3766 = vshrl.u32 %v3748, %v3764
    %v3767 = vor.u32 %v3765, %v3766
    %v3768 = vsub.s32 4294967266, %v3763
    %v3769 = vadd.s32 %v3768, 127
    %v3770 = vshll.u32 %v3769, 23
    %v3771 = vor.u32 4788187, %v3770
    %v3772 = vand.u32 2147483647, %v3771
    %v3774 = vcvt.s32.f32 %v3767
    %v3775 = vmul.f32 %v3774, %v3772
    %v3776 = vxor.u32 %v3775, 2147483648
    %v3777 = vsel %vm3656, %v3776, %v3775
    %v3778 = vsub.s32 4, %v3754
    %v3779 = vsel %vm3656, %v3778, %v3754
    %v3780 = vsel %vm3655, %v80, %v3777
    %v3781 = vsel %vm3655, 0, %v3779
    %v3782 = vmul.f32 %v3780, %v3780
    %v3783 = vmul.f32 %v3782, -0.001358992
    %v3784 = vadd.f32 %v3783, 0.041655596
    %v3785 = vmul.f32 %v3782, %v3784
    %v3786 = vadd.f32 %v3785, -0.4999988
    %v3787 = vmul.f32 %v3782, %v3786
    %v3788 = vadd.f32 1.0, %v3787
    %v3789 = vmul.f32 %v3780, %v3780
    %v3790 = vmul.f32 %v3789, -0.00019511016
    %v3791 = vadd.f32 %v3790, 0.008332121
    %v3792 = vmul.f32 %v3789, %v3791
    %v3793 = vadd.f32 %v3792, -0.16666654
    %v3794 = vmul.f32 %v3789, %v3793
    %v3795 = vadd.f32 %v3794, 1.0
    %v3796 = vmul.f32 %v3795, %v3780
    %vm3797 = vweird.f32 %v80
    %v3798 = vadd.s32 %v3781, 3
    %v3799 = vand.u32 %v3798, 3
    %vm3800 = vcmp.lt.s32.totalorder %v3799, 2
    %vm3801 = vcmp.eq.s32.totalorder %v3799, 0
    %v3802 = vxor.u32 %v3796, 2147483648
    %v3803 = vsel %vm3801, %v3788, %v3802
    %vm3804 = vcmp.eq.s32.totalorder %v3799, 2
    %v3805 = vxor.u32 %v3788, 2147483648
    %v3806 = vsel %vm3804, %v3805, %v3796
    %v3807 = vsel %vm3800, %v3803, %v3806
    %v3808 = vsel %vm3797, nan, %v3807
    %v3809 = vand.u32 2147483647, %v81
    %vm3810 = vcmp.le.f32.partialorder %v3809, 0.7853982
    %vm3811 = vcmp.lt.s32.totalorder %v81, 0
    %v3812 = vand.u32 %v81, 2139095040
    %v3813 = vshrl.u32 %v3812, 23
    %v3814 = vsub.s32 %v3813, 127
    %v3815 = vand.u32 2147483647, %v81
    %v3816 = vand.u32 %v3815, 8388607
    %v3817 = vor.u32 %v3816, 8388608
    %v3818 = vsub.s32 0, %v3817
    %v3819 = vadd.s32 %v3814, 1
    %vm3820 = vcmp.gt.s32.totalorder %v3819, 0
    %v3821 = vsel %vm3820, %v3819, 0
    %v3822 = vshrl.u32 %v3821, 5
    %v3823 = vand.u32 %v3821, 31
    %v3824 = vsub.s32 32, %v3823
    %v3825 = vshrl.u32 683565275, %v3824
    %v3826 = vshll.u32 683565275, %v3823
    %v3827 = vshrl.u32 2475754826, %v3824
    %v3828 = vor.u32 %v3826, %v3827
    %v3829 = vshll.u32 2475754826, %v3823
    %v3830 = vshrl.u32 2131351028, %v3824
    %v3831 = vor.u32 %v3829, %v3830
    %v3832 = vshll.u32 2131351028, %v3823
    %v3833 = vshrl.u32 2102212464, %v3824
    %v3834 = vor.u32 %v3832, %v3833
    %v3835 = vshll.u32 2102212464, %v3823
    %v3836 = vshrl.u32 920167782, %v3824
    %v3837 = vor.u32 %v3835, %v3836
    %v3838 = vshll.u32 920167782, %v3823
    %v3839 = vshrl.u32 1326507024, %v3824
    %v3840 = vor.u32 %v3838, %v3839
    %vm3841 = vcmp.lt.s32.totalorder %v3822, 1
    %vm3842 = vcmp.lt.s32.totalorder %v3822, 2
    %vm3843 = vcmp.lt.s32.totalorder %v3822, 3
    %vm3844 = vcmp.lt.s32.totalorder %v3822, 4
    %v3845 = vsel %vm3841, %v3825, %v3828
    %v3846 = vsel %vm3844, %v3834, 2102212464
    %v3847 = vsel %vm3843, %v3831, %v3846
    %v3848 = vsel %vm3842, %v3845, %v3847
    %v3849 = vsel %vm3841, %v3828, %v3831
    %v3850 = vsel %vm3844, %v3837, 920167782
    %v3851 = vsel %vm3843, %v3834, %v3850
    %v3852 = vsel %vm3842, %v3849, %v3851
    %v3853 = vsel %vm3841, %v3831, %v3834
    %v3854 = vsel %vm3844, %v3840, 1326507024
    %v3855 = vsel %vm3843, %v3837, %v3854
    %v3856 = vsel %vm3842, %v3853, %v3855
    %v3857 = vshll.u32 %v3817, 8
    %v3858 = vand.u32 %v3857, 65535
    %v3859 = vshrl.u32 %v3857, 16
    %v3860 = vand.u32 %v3856, 65535
    %v3861 = vshrl.u32 %v3856, 16
    %v3862 = vmul.u32 %v3858, %v3860
    %v3863 = vmul.u32 %v3858, %v3861
    %v3864 = vmul.u32 %v3859, %v3860
    %v3865 = vmul.u32 %v3859, %v3861
    %v3866 = vshll.u32 %v3863, 16
    %v3867 = vshrl.u32 %v3863, 16
    %v3868 = vshll.u32 %v3864, 16
    %v3869 = vshrl.u32 %v3864, 16
    %vm3870 = vc.u32 %v3862, %v3866
    %v3871 = vsel %vm3870, 1, 0
    %v3872 = vadd.s32 %v3862, %v3866
    %v3873 = vadd.s32 %v3865, %v3871
    %vm3874 = vc.u32 %v3872, %v3868
    %v3875 = vsel %vm3874, 1, 0
    %v3876 = vadd.s32 %v3872, %v3868
    %v3877 = vadd.s32 %v3873, %v3875
    %v3878 = vadd.s32 %v3877, %v3867
    %v3879 = vadd.s32 %v3878, %v3869
    %v3880 = vand.u32 %v3857, 65535
    %v3881 = vshrl.u32 %v3857, 16
    %v3882 = vand.u32 %v3852, 65535
    %v3883 = vshrl.u32 %v3852, 16
    %v3884 = vmul.u32 %v3880, %v3882
    %v3885 = vmul.u32 %v3880, %v3883
    %v3886 = vmul.u32 %v3881, %v3882
    %v3887 = vmul.u32 %v3881, %v3883
    %v3888 = vshll.u32 %v3885, 16
    %v3889 = vshrl.u32 %v3885, 16
    %v3890 = vshll.u32 %v3886, 16
    %v3891 = vshrl.u32 %v3886, 16
    %vm3892 = vc.u32 %v3884, %v3888
    %v3893 = vsel %vm3892, 1, 0
    %v3894 = vadd.s32 %v3884, %v3888
    %v3895 = vadd.s32 %v3887, %v3893
    %vm3896 = vc.u32 %v3894, %v3890
    %v3897 = vsel %vm3896, 1, 0
    %v3898 = vadd.s32 %v3894, %v3890
    %v3899 = vadd.s32 %v3895, %v3897
    %v3900 = vadd.s32 %v3899, %v3889
    %v3901 = vadd.s32 %v3900, %v3891
    %v3902 = vmul.u32 %v3857, %v3848
    %v3903 = vadd.s32 %v3879, %v3898
    %vm3904 = vc.u32 %v3879, %v3898
    %v3905 = vadd.s32 %v3901, 1
    %v3906 = vsel %vm3904, %v3905, %v3901
    %v3907 = vadd.s32 %v3902, %v3906
    %v3908 = vadd.s32 %v3907, 536870912
    %v3909 = vshrl.u32 %v3908, 30
    %v3910 = vshll.u32 %v3909, 30
    %v3911 = vsub.s32 %v3907, %v3910
    %vm3912 = vcmp.lt.s32.totalorder %v3911, 0
    %v3913 = vsub.s32 0, %v3911
    %v3914 = vsel %vm3912, %v3913, %v3911
    %v3915 = vclz %v3914
    %v3916 = vsub.s32 %v3915, 2
    %vm3917 = vcmp.gt.s32.totalorder 0, %v3916
    %v3918 = vsel %vm3917, 0, %v3916
    %v3919 = vsub.s32 32, %v3918
    %v3920 = vshll.u32 %v3911, %v3918
    %v3921 = vshrl.u32 %v3903, %v3919
    %v3922 = vor.u32 %v3920, %v3921
    %v3923 = vsub.s32 4294967266, %v3918
    %v3924 = vadd.s32 %v3923, 127
    %v3925 = vshll.u32 %v3924, 23
    %v3926 = vor.u32 4788187, %v3925
    %v3927 = vand.u32 2147483647, %v3926
    %v3929 = vcvt.s32.f32 %v3922
    %v3930 = vmul.f32 %v3929, %v3927
    %v3931 = vxor.u32 %v3930, 2147483648
    %v3932 = vsel %vm3811, %v3931, %v3930
    %v3933 = vsub.s32 4, %v3909
    %v3934 = vsel %vm3811, %v3933, %v3909
    %v3935 = vsel %vm3810, %v81, %v3932
    %v3936 = vsel %vm3810, 0, %v3934
    %v3937 = vmul.f32 %v3935, %v3935
    %v3938 = vmul.f32 %v3937, -0.001358992
    %v3939 = vadd.f32 %v3938, 0.041655596
    %v3940 = vmul.f32 %v3937, %v3939
    %v3941 = vadd.f32 %v3940, -0.4999988
    %v3942 = vmul.f32 %v3937, %v3941
    %v3943 = vadd.f32 1.0, %v3942
    %v3944 = vmul.f32 %v3935, %v3935
    %v3945 = vmul.f32 %v3944, -0.00019511016
    %v3946 = vadd.f32 %v3945, 0.008332121
    %v3947 = vmul.f32 %v3944, %v3946
    %v3948 = vadd.f32 %v3947, -0.16666654
    %v3949 = vmul.f32 %v3944, %v3948
    %v3950 = vadd.f32 %v3949, 1.0
    %v3951 = vmul.f32 %v3950, %v3935
    %vm3952 = vweird.f32 %v81
    %v3953 = vadd.s32 %v3936, 3
    %v3954 = vand.u32 %v3953, 3
    %vm3955 = vcmp.lt.s32.totalorder %v3954, 2
    %vm3956 = vcmp.eq.s32.totalorder %v3954, 0
    %v3957 = vxor.u32 %v3951, 2147483648
    %v3958 = vsel %vm3956, %v3943, %v3957
    %vm3959 = vcmp.eq.s32.totalorder %v3954, 2
    %v3960 = vxor.u32 %v3943, 2147483648
    %v3961 = vsel %vm3959, %v3960, %v3951
    %v3962 = vsel %vm3955, %v3958, %v3961
    %v3963 = vsel %vm3952, nan, %v3962
    %v3964 = vand.u32 2147483647, %v82
    %vm3965 = vcmp.le.f32.partialorder %v3964, 0.7853982
    %vm3966 = vcmp.lt.s32.totalorder %v82, 0
    %v3967 = vand.u32 %v82, 2139095040
    %v3968 = vshrl.u32 %v3967, 23
    %v3969 = vsub.s32 %v3968, 127
    %v3970 = vand.u32 2147483647, %v82
    %v3971 = vand.u32 %v3970, 8388607
    %v3972 = vor.u32 %v3971, 8388608
    %v3973 = vsub.s32 0, %v3972
    %v3974 = vadd.s32 %v3969, 1
    %vm3975 = vcmp.gt.s32.totalorder %v3974, 0
    %v3976 = vsel %vm3975, %v3974, 0
    %v3977 = vshrl.u32 %v3976, 5
    %v3978 = vand.u32 %v3976, 31
    %v3979 = vsub.s32 32, %v3978
    %v3980 = vshrl.u32 683565275, %v3979
    %v3981 = vshll.u32 683565275, %v3978
    %v3982 = vshrl.u32 2475754826, %v3979
    %v3983 = vor.u32 %v3981, %v3982
    %v3984 = vshll.u32 2475754826, %v3978
    %v3985 = vshrl.u32 2131351028, %v3979
    %v3986 = vor.u32 %v3984, %v3985
    %v3987 = vshll.u32 2131351028, %v3978
    %v3988 = vshrl.u32 2102212464, %v3979
    %v3989 = vor.u32 %v3987, %v3988
    %v3990 = vshll.u32 2102212464, %v3978
    %v3991 = vshrl.u32 920167782, %v3979
    %v3992 = vor.u32 %v3990, %v3991
    %v3993 = vshll.u32 920167782, %v3978
    %v3994 = vshrl.u32 1326507024, %v3979
    %v3995 = vor.u32 %v3993, %v3994
    %vm3996 = vcmp.lt.s32.totalorder %v3977, 1
    %vm3997 = vcmp.lt.s32.totalorder %v3977, 2
    %vm3998 = vcmp.lt.s32.totalorder %v3977, 3
    %vm3999 = vcmp.lt.s32.totalorder %v3977, 4
    %v4000 = vsel %vm3996, %v3980, %v3983
    %v4001 = vsel %vm3999, %v3989, 2102212464
    %v4002 = vsel %vm3998, %v3986, %v4001
    %v4003 = vsel %vm3997, %v4000, %v4002
    %v4004 = vsel %vm3996, %v3983, %v3986
    %v4005 = vsel %vm3999, %v3992, 920167782
    %v4006 = vsel %vm3998, %v3989, %v4005
    %v4007 = vsel %vm3997, %v4004, %v4006
    %v4008 = vsel %vm3996, %v3986, %v3989
    %v4009 = vsel %vm3999, %v3995, 1326507024
    %v4010 = vsel %vm3998, %v3992, %v4009
    %v4011 = vsel %vm3997, %v4008, %v4010
    %v4012 = vshll.u32 %v3972, 8
    %v4013 = vand.u32 %v4012, 65535
    %v4014 = vshrl.u32 %v4012, 16
    %v4015 = vand.u32 %v4011, 65535
    %v4016 = vshrl.u32 %v4011, 16
    %v4017 = vmul.u32 %v4013, %v4015
    %v4018 = vmul.u32 %v4013, %v4016
    %v4019 = vmul.u32 %v4014, %v4015
    %v4020 = vmul.u32 %v4014, %v4016
    %v4021 = vshll.u32 %v4018, 16
    %v4022 = vshrl.u32 %v4018, 16
    %v4023 = vshll.u32 %v4019, 16
    %v4024 = vshrl.u32 %v4019, 16
    %vm4025 = vc.u32 %v4017, %v4021
    %v4026 = vsel %vm4025, 1, 0
    %v4027 = vadd.s32 %v4017, %v4021
    %v4028 = vadd.s32 %v4020, %v4026
    %vm4029 = vc.u32 %v4027, %v4023
    %v4030 = vsel %vm4029, 1, 0
    %v4031 = vadd.s32 %v4027, %v4023
    %v4032 = vadd.s32 %v4028, %v4030
    %v4033 = vadd.s32 %v4032, %v4022
    %v4034 = vadd.s32 %v4033, %v4024
    %v4035 = vand.u32 %v4012, 65535
    %v4036 = vshrl.u32 %v4012, 16
    %v4037 = vand.u32 %v4007, 65535
    %v4038 = vshrl.u32 %v4007, 16
    %v4039 = vmul.u32 %v4035, %v4037
    %v4040 = vmul.u32 %v4035, %v4038
    %v4041 = vmul.u32 %v4036, %v4037
    %v4042 = vmul.u32 %v4036, %v4038
    %v4043 = vshll.u32 %v4040, 16
    %v4044 = vshrl.u32 %v4040, 16
    %v4045 = vshll.u32 %v4041, 16
    %v4046 = vshrl.u32 %v4041, 16
    %vm4047 = vc.u32 %v4039, %v4043
    %v4048 = vsel %vm4047, 1, 0
    %v4049 = vadd.s32 %v4039, %v4043
    %v4050 = vadd.s32 %v4042, %v4048
    %vm4051 = vc.u32 %v4049, %v4045
    %v4052 = vsel %vm4051, 1, 0
    %v4053 = vadd.s32 %v4049, %v4045
    %v4054 = vadd.s32 %v4050, %v4052
    %v4055 = vadd.s32 %v4054, %v4044
    %v4056 = vadd.s32 %v4055, %v4046
    %v4057 = vmul.u32 %v4012, %v4003
    %v4058 = vadd.s32 %v4034, %v4053
    %vm4059 = vc.u32 %v4034, %v4053
    %v4060 = vadd.s32 %v4056, 1
    %v4061 = vsel %vm4059, %v4060, %v4056
    %v4062 = vadd.s32 %v4057, %v4061
    %v4063 = vadd.s32 %v4062, 536870912
    %v4064 = vshrl.u32 %v4063, 30
    %v4065 = vshll.u32 %v4064, 30
    %v4066 = vsub.s32 %v4062, %v4065
    %vm4067 = vcmp.lt.s32.totalorder %v4066, 0
    %v4068 = vsub.s32 0, %v4066
    %v4069 = vsel %vm4067, %v4068, %v4066
    %v4070 = vclz %v4069
    %v4071 = vsub.s32 %v4070, 2
    %vm4072 = vcmp.gt.s32.totalorder 0, %v4071
    %v4073 = vsel %vm4072, 0, %v4071
    %v4074 = vsub.s32 32, %v4073
    %v4075 = vshll.u32 %v4066, %v4073
    %v4076 = vshrl.u32 %v4058, %v4074
    %v4077 = vor.u32 %v4075, %v4076
    %v4078 = vsub.s32 4294967266, %v4073
    %v4079 = vadd.s32 %v4078, 127
    %v4080 = vshll.u32 %v4079, 23
    %v4081 = vor.u32 4788187, %v4080
    %v4082 = vand.u32 2147483647, %v4081
    %v4084 = vcvt.s32.f32 %v4077
    %v4085 = vmul.f32 %v4084, %v4082
    %v4086 = vxor.u32 %v4085, 2147483648
    %v4087 = vsel %vm3966, %v4086, %v4085
    %v4088 = vsub.s32 4, %v4064
    %v4089 = vsel %vm3966, %v4088, %v4064
    %v4090 = vsel %vm3965, %v82, %v4087
    %v4091 = vsel %vm3965, 0, %v4089
    %v4092 = vmul.f32 %v4090, %v4090
    %v4093 = vmul.f32 %v4092, -0.001358992
    %v4094 = vadd.f32 %v4093, 0.041655596
    %v4095 = vmul.f32 %v4092, %v4094
    %v4096 = vadd.f32 %v4095, -0.4999988
    %v4097 = vmul.f32 %v4092, %v4096
    %v4098 = vadd.f32 1.0, %v4097
    %v4099 = vmul.f32 %v4090, %v4090
    %v4100 = vmul.f32 %v4099, -0.00019511016
    %v4101 = vadd.f32 %v4100, 0.008332121
    %v4102 = vmul.f32 %v4099, %v4101
    %v4103 = vadd.f32 %v4102, -0.16666654
    %v4104 = vmul.f32 %v4099, %v4103
    %v4105 = vadd.f32 %v4104, 1.0
    %v4106 = vmul.f32 %v4105, %v4090
    %vm4107 = vweird.f32 %v82
    %v4108 = vadd.s32 %v4091, 3
    %v4109 = vand.u32 %v4108, 3
    %vm4110 = vcmp.lt.s32.totalorder %v4109, 2
    %vm4111 = vcmp.eq.s32.totalorder %v4109, 0
    %v4112 = vxor.u32 %v4106, 2147483648
    %v4113 = vsel %vm4111, %v4098, %v4112
    %vm4114 = vcmp.eq.s32.totalorder %v4109, 2
    %v4115 = vxor.u32 %v4098, 2147483648
    %v4116 = vsel %vm4114, %v4115, %v4106
    %v4117 = vsel %vm4110, %v4113, %v4116
    %v4118 = vsel %vm4107, nan, %v4117
    %v4119 = vand.u32 2147483647, %v83
    %vm4120 = vcmp.le.f32.partialorder %v4119, 0.7853982
    %vm4121 = vcmp.lt.s32.totalorder %v83, 0
    %v4122 = vand.u32 %v83, 2139095040
    %v4123 = vshrl.u32 %v4122, 23
    %v4124 = vsub.s32 %v4123, 127
    %v4125 = vand.u32 2147483647, %v83
    %v4126 = vand.u32 %v4125, 8388607
    %v4127 = vor.u32 %v4126, 8388608
    %v4128 = vsub.s32 0, %v4127
    %v4129 = vadd.s32 %v4124, 1
    %vm4130 = vcmp.gt.s32.totalorder %v4129, 0
    %v4131 = vsel %vm4130, %v4129, 0
    %v4132 = vshrl.u32 %v4131, 5
    %v4133 = vand.u32 %v4131, 31
    %v4134 = vsub.s32 32, %v4133
    %v4135 = vshrl.u32 683565275, %v4134
    %v4136 = vshll.u32 683565275, %v4133
    %v4137 = vshrl.u32 2475754826, %v4134
    %v4138 = vor.u32 %v4136, %v4137
    %v4139 = vshll.u32 2475754826, %v4133
    %v4140 = vshrl.u32 2131351028, %v4134
    %v4141 = vor.u32 %v4139, %v4140
    %v4142 = vshll.u32 2131351028, %v4133
    %v4143 = vshrl.u32 2102212464, %v4134
    %v4144 = vor.u32 %v4142, %v4143
    %v4145 = vshll.u32 2102212464, %v4133
    %v4146 = vshrl.u32 920167782, %v4134
    %v4147 = vor.u32 %v4145, %v4146
    %v4148 = vshll.u32 920167782, %v4133
    %v4149 = vshrl.u32 1326507024, %v4134
    %v4150 = vor.u32 %v4148, %v4149
    %vm4151 = vcmp.lt.s32.totalorder %v4132, 1
    %vm4152 = vcmp.lt.s32.totalorder %v4132, 2
    %vm4153 = vcmp.lt.s32.totalorder %v4132, 3
    %vm4154 = vcmp.lt.s32.totalorder %v4132, 4
    %v4155 = vsel %vm4151, %v4135, %v4138
    %v4156 = vsel %vm4154, %v4144, 2102212464
    %v4157 = vsel %vm4153, %v4141, %v4156
    %v4158 = vsel %vm4152, %v4155, %v4157
    %v4159 = vsel %vm4151, %v4138, %v4141
    %v4160 = vsel %vm4154, %v4147, 920167782
    %v4161 = vsel %vm4153, %v4144, %v4160
    %v4162 = vsel %vm4152, %v4159, %v4161
    %v4163 = vsel %vm4151, %v4141, %v4144
    %v4164 = vsel %vm4154, %v4150, 1326507024
    %v4165 = vsel %vm4153, %v4147, %v4164
    %v4166 = vsel %vm4152, %v4163, %v4165
    %v4167 = vshll.u32 %v4127, 8
    %v4168 = vand.u32 %v4167, 65535
    %v4169 = vshrl.u32 %v4167, 16
    %v4170 = vand.u32 %v4166, 65535
    %v4171 = vshrl.u32 %v4166, 16
    %v4172 = vmul.u32 %v4168, %v4170
    %v4173 = vmul.u32 %v4168, %v4171
    %v4174 = vmul.u32 %v4169, %v4170
    %v4175 = vmul.u32 %v4169, %v4171
    %v4176 = vshll.u32 %v4173, 16
    %v4177 = vshrl.u32 %v4173, 16
    %v4178 = vshll.u32 %v4174, 16
    %v4179 = vshrl.u32 %v4174, 16
    %vm4180 = vc.u32 %v4172, %v4176
    %v4181 = vsel %vm4180, 1, 0
    %v4182 = vadd.s32 %v4172, %v4176
    %v4183 = vadd.s32 %v4175, %v4181
    %vm4184 = vc.u32 %v4182, %v4178
    %v4185 = vsel %vm4184, 1, 0
    %v4186 = vadd.s32 %v4182, %v4178
    %v4187 = vadd.s32 %v4183, %v4185
    %v4188 = vadd.s32 %v4187, %v4177
    %v4189 = vadd.s32 %v4188, %v4179
    %v4190 = vand.u32 %v4167, 65535
    %v4191 = vshrl.u32 %v4167, 16
    %v4192 = vand.u32 %v4162, 65535
    %v4193 = vshrl.u32 %v4162, 16
    %v4194 = vmul.u32 %v4190, %v4192
    %v4195 = vmul.u32 %v4190, %v4193
    %v4196 = vmul.u32 %v4191, %v4192
    %v4197 = vmul.u32 %v4191, %v4193
    %v4198 = vshll.u32 %v4195, 16
    %v4199 = vshrl.u32 %v4195, 16
    %v4200 = vshll.u32 %v4196, 16
    %v4201 = vshrl.u32 %v4196, 16
    %vm4202 = vc.u32 %v4194, %v4198
    %v4203 = vsel %vm4202, 1, 0
    %v4204 = vadd.s32 %v4194, %v4198
    %v4205 = vadd.s32 %v4197, %v4203
    %vm4206 = vc.u32 %v4204, %v4200
    %v4207 = vsel %vm4206, 1, 0
    %v4208 = vadd.s32 %v4204, %v4200
    %v4209 = vadd.s32 %v4205, %v4207
    %v4210 = vadd.s32 %v4209, %v4199
    %v4211 = vadd.s32 %v4210, %v4201
    %v4212 = vmul.u32 %v4167, %v4158
    %v4213 = vadd.s32 %v4189, %v4208
    %vm4214 = vc.u32 %v4189, %v4208
    %v4215 = vadd.s32 %v4211, 1
    %v4216 = vsel %vm4214, %v4215, %v4211
    %v4217 = vadd.s32 %v4212, %v4216
    %v4218 = vadd.s32 %v4217, 536870912
    %v4219 = vshrl.u32 %v4218, 30
    %v4220 = vshll.u32 %v4219, 30
    %v4221 = vsub.s32 %v4217, %v4220
    %vm4222 = vcmp.lt.s32.totalorder %v4221, 0
    %v4223 = vsub.s32 0, %v4221
    %v4224 = vsel %vm4222, %v4223, %v4221
    %v4225 = vclz %v4224
    %v4226 = vsub.s32 %v4225, 2
    %vm4227 = vcmp.gt.s32.totalorder 0, %v4226
    %v4228 = vsel %vm4227, 0, %v4226
    %v4229 = vsub.s32 32, %v4228
    %v4230 = vshll.u32 %v4221, %v4228
    %v4231 = vshrl.u32 %v4213, %v4229
    %v4232 = vor.u32 %v4230, %v4231
    %v4233 = vsub.s32 4294967266, %v4228
    %v4234 = vadd.s32 %v4233, 127
    %v4235 = vshll.u32 %v4234, 23
    %v4236 = vor.u32 4788187, %v4235
    %v4237 = vand.u32 2147483647, %v4236
    %v4239 = vcvt.s32.f32 %v4232
    %v4240 = vmul.f32 %v4239, %v4237
    %v4241 = vxor.u32 %v4240, 2147483648
    %v4242 = vsel %vm4121, %v4241, %v4240
    %v4243 = vsub.s32 4, %v4219
    %v4244 = vsel %vm4121, %v4243, %v4219
    %v4245 = vsel %vm4120, %v83, %v4242
    %v4246 = vsel %vm4120, 0, %v4244
    %v4247 = vmul.f32 %v4245, %v4245
    %v4248 = vmul.f32 %v4247, -0.001358992
    %v4249 = vadd.f32 %v4248, 0.041655596
    %v4250 = vmul.f32 %v4247, %v4249
    %v4251 = vadd.f32 %v4250, -0.4999988
    %v4252 = vmul.f32 %v4247, %v4251
    %v4253 = vadd.f32 1.0, %v4252
    %v4254 = vmul.f32 %v4245, %v4245
    %v4255 = vmul.f32 %v4254, -0.00019511016
    %v4256 = vadd.f32 %v4255, 0.008332121
    %v4257 = vmul.f32 %v4254, %v4256
    %v4258 = vadd.f32 %v4257, -0.16666654
    %v4259 = vmul.f32 %v4254, %v4258
    %v4260 = vadd.f32 %v4259, 1.0
    %v4261 = vmul.f32 %v4260, %v4245
    %vm4262 = vweird.f32 %v83
    %v4263 = vadd.s32 %v4246, 3
    %v4264 = vand.u32 %v4263, 3
    %vm4265 = vcmp.lt.s32.totalorder %v4264, 2
    %vm4266 = vcmp.eq.s32.totalorder %v4264, 0
    %v4267 = vxor.u32 %v4261, 2147483648
    %v4268 = vsel %vm4266, %v4253, %v4267
    %vm4269 = vcmp.eq.s32.totalorder %v4264, 2
    %v4270 = vxor.u32 %v4253, 2147483648
    %v4271 = vsel %vm4269, %v4270, %v4261
    %v4272 = vsel %vm4265, %v4268, %v4271
    %v4273 = vsel %vm4262, nan, %v4272
    %v4274 = vand.u32 2147483647, %v84
    %vm4275 = vcmp.le.f32.partialorder %v4274, 0.7853982
    %vm4276 = vcmp.lt.s32.totalorder %v84, 0
    %v4277 = vand.u32 %v84, 2139095040
    %v4278 = vshrl.u32 %v4277, 23
    %v4279 = vsub.s32 %v4278, 127
    %v4280 = vand.u32 2147483647, %v84
    %v4281 = vand.u32 %v4280, 8388607
    %v4282 = vor.u32 %v4281, 8388608
    %v4283 = vsub.s32 0, %v4282
    %v4284 = vadd.s32 %v4279, 1
    %vm4285 = vcmp.gt.s32.totalorder %v4284, 0
    %v4286 = vsel %vm4285, %v4284, 0
    %v4287 = vshrl.u32 %v4286, 5
    %v4288 = vand.u32 %v4286, 31
    %v4289 = vsub.s32 32, %v4288
    %v4290 = vshrl.u32 683565275, %v4289
    %v4291 = vshll.u32 683565275, %v4288
    %v4292 = vshrl.u32 2475754826, %v4289
    %v4293 = vor.u32 %v4291, %v4292
    %v4294 = vshll.u32 2475754826, %v4288
    %v4295 = vshrl.u32 2131351028, %v4289
    %v4296 = vor.u32 %v4294, %v4295
    %v4297 = vshll.u32 2131351028, %v4288
    %v4298 = vshrl.u32 2102212464, %v4289
    %v4299 = vor.u32 %v4297, %v4298
    %v4300 = vshll.u32 2102212464, %v4288
    %v4301 = vshrl.u32 920167782, %v4289
    %v4302 = vor.u32 %v4300, %v4301
    %v4303 = vshll.u32 920167782, %v4288
    %v4304 = vshrl.u32 1326507024, %v4289
    %v4305 = vor.u32 %v4303, %v4304
    %vm4306 = vcmp.lt.s32.totalorder %v4287, 1
    %vm4307 = vcmp.lt.s32.totalorder %v4287, 2
    %vm4308 = vcmp.lt.s32.totalorder %v4287, 3
    %vm4309 = vcmp.lt.s32.totalorder %v4287, 4
    %v4310 = vsel %vm4306, %v4290, %v4293
    %v4311 = vsel %vm4309, %v4299, 2102212464
    %v4312 = vsel %vm4308, %v4296, %v4311
    %v4313 = vsel %vm4307, %v4310, %v4312
    %v4314 = vsel %vm4306, %v4293, %v4296
    %v4315 = vsel %vm4309, %v4302, 920167782
    %v4316 = vsel %vm4308, %v4299, %v4315
    %v4317 = vsel %vm4307, %v4314, %v4316
    %v4318 = vsel %vm4306, %v4296, %v4299
    %v4319 = vsel %vm4309, %v4305, 1326507024
    %v4320 = vsel %vm4308, %v4302, %v4319
    %v4321 = vsel %vm4307, %v4318, %v4320
    %v4322 = vshll.u32 %v4282, 8
    %v4323 = vand.u32 %v4322, 65535
    %v4324 = vshrl.u32 %v4322, 16
    %v4325 = vand.u32 %v4321, 65535
    %v4326 = vshrl.u32 %v4321, 16
    %v4327 = vmul.u32 %v4323, %v4325
    %v4328 = vmul.u32 %v4323, %v4326
    %v4329 = vmul.u32 %v4324, %v4325
    %v4330 = vmul.u32 %v4324, %v4326
    %v4331 = vshll.u32 %v4328, 16
    %v4332 = vshrl.u32 %v4328, 16
    %v4333 = vshll.u32 %v4329, 16
    %v4334 = vshrl.u32 %v4329, 16
    %vm4335 = vc.u32 %v4327, %v4331
    %v4336 = vsel %vm4335, 1, 0
    %v4337 = vadd.s32 %v4327, %v4331
    %v4338 = vadd.s32 %v4330, %v4336
    %vm4339 = vc.u32 %v4337, %v4333
    %v4340 = vsel %vm4339, 1, 0
    %v4341 = vadd.s32 %v4337, %v4333
    %v4342 = vadd.s32 %v4338, %v4340
    %v4343 = vadd.s32 %v4342, %v4332
    %v4344 = vadd.s32 %v4343, %v4334
    %v4345 = vand.u32 %v4322, 65535
    %v4346 = vshrl.u32 %v4322, 16
    %v4347 = vand.u32 %v4317, 65535
    %v4348 = vshrl.u32 %v4317, 16
    %v4349 = vmul.u32 %v4345, %v4347
    %v4350 = vmul.u32 %v4345, %v4348
    %v4351 = vmul.u32 %v4346, %v4347
    %v4352 = vmul.u32 %v4346, %v4348
    %v4353 = vshll.u32 %v4350, 16
    %v4354 = vshrl.u32 %v4350, 16
    %v4355 = vshll.u32 %v4351, 16
    %v4356 = vshrl.u32 %v4351, 16
    %vm4357 = vc.u32 %v4349, %v4353
    %v4358 = vsel %vm4357, 1, 0
    %v4359 = vadd.s32 %v4349, %v4353
    %v4360 = vadd.s32 %v4352, %v4358
    %vm4361 = vc.u32 %v4359, %v4355
    %v4362 = vsel %vm4361, 1, 0
    %v4363 = vadd.s32 %v4359, %v4355
    %v4364 = vadd.s32 %v4360, %v4362
    %v4365 = vadd.s32 %v4364, %v4354
    %v4366 = vadd.s32 %v4365, %v4356
    %v4367 = vmul.u32 %v4322, %v4313
    %v4368 = vadd.s32 %v4344, %v4363
    %vm4369 = vc.u32 %v4344, %v4363
    %v4370 = vadd.s32 %v4366, 1
    %v4371 = vsel %vm4369, %v4370, %v4366
    %v4372 = vadd.s32 %v4367, %v4371
    %v4373 = vadd.s32 %v4372, 536870912
    %v4374 = vshrl.u32 %v4373, 30
    %v4375 = vshll.u32 %v4374, 30
    %v4376 = vsub.s32 %v4372, %v4375
    %vm4377 = vcmp.lt.s32.totalorder %v4376, 0
    %v4378 = vsub.s32 0, %v4376
    %v4379 = vsel %vm4377, %v4378, %v4376
    %v4380 = vclz %v4379
    %v4381 = vsub.s32 %v4380, 2
    %vm4382 = vcmp.gt.s32.totalorder 0, %v4381
    %v4383 = vsel %vm4382, 0, %v4381
    %v4384 = vsub.s32 32, %v4383
    %v4385 = vshll.u32 %v4376, %v4383
    %v4386 = vshrl.u32 %v4368, %v4384
    %v4387 = vor.u32 %v4385, %v4386
    %v4388 = vsub.s32 4294967266, %v4383
    %v4389 = vadd.s32 %v4388, 127
    %v4390 = vshll.u32 %v4389, 23
    %v4391 = vor.u32 4788187, %v4390
    %v4392 = vand.u32 2147483647, %v4391
    %v4394 = vcvt.s32.f32 %v4387
    %v4395 = vmul.f32 %v4394, %v4392
    %v4396 = vxor.u32 %v4395, 2147483648
    %v4397 = vsel %vm4276, %v4396, %v4395
    %v4398 = vsub.s32 4, %v4374
    %v4399 = vsel %vm4276, %v4398, %v4374
    %v4400 = vsel %vm4275, %v84, %v4397
    %v4401 = vsel %vm4275, 0, %v4399
    %v4402 = vmul.f32 %v4400, %v4400
    %v4403 = vmul.f32 %v4402, -0.001358992
    %v4404 = vadd.f32 %v4403, 0.041655596
    %v4405 = vmul.f32 %v4402, %v4404
    %v4406 = vadd.f32 %v4405, -0.4999988
    %v4407 = vmul.f32 %v4402, %v4406
    %v4408 = vadd.f32 1.0, %v4407
    %v4409 = vmul.f32 %v4400, %v4400
    %v4410 = vmul.f32 %v4409, -0.00019511016
    %v4411 = vadd.f32 %v4410, 0.008332121
    %v4412 = vmul.f32 %v4409, %v4411
    %v4413 = vadd.f32 %v4412, -0.16666654
    %v4414 = vmul.f32 %v4409, %v4413
    %v4415 = vadd.f32 %v4414, 1.0
    %v4416 = vmul.f32 %v4415, %v4400
    %vm4417 = vweird.f32 %v84
    %v4418 = vadd.s32 %v4401, 3
    %v4419 = vand.u32 %v4418, 3
    %vm4420 = vcmp.lt.s32.totalorder %v4419, 2
    %vm4421 = vcmp.eq.s32.totalorder %v4419, 0
    %v4422 = vxor.u32 %v4416, 2147483648
    %v4423 = vsel %vm4421, %v4408, %v4422
    %vm4424 = vcmp.eq.s32.totalorder %v4419, 2
    %v4425 = vxor.u32 %v4408, 2147483648
    %v4426 = vsel %vm4424, %v4425, %v4416
    %v4427 = vsel %vm4420, %v4423, %v4426
    %v4428 = vsel %vm4417, nan, %v4427
    %v4429 = vand.u32 2147483647, %v85
    %vm4430 = vcmp.le.f32.partialorder %v4429, 0.7853982
    %vm4431 = vcmp.lt.s32.totalorder %v85, 0
    %v4432 = vand.u32 %v85, 2139095040
    %v4433 = vshrl.u32 %v4432, 23
    %v4434 = vsub.s32 %v4433, 127
    %v4435 = vand.u32 2147483647, %v85
    %v4436 = vand.u32 %v4435, 8388607
    %v4437 = vor.u32 %v4436, 8388608
    %v4438 = vsub.s32 0, %v4437
    %v4439 = vadd.s32 %v4434, 1
    %vm4440 = vcmp.gt.s32.totalorder %v4439, 0
    %v4441 = vsel %vm4440, %v4439, 0
    %v4442 = vshrl.u32 %v4441, 5
    %v4443 = vand.u32 %v4441, 31
    %v4444 = vsub.s32 32, %v4443
    %v4445 = vshrl.u32 683565275, %v4444
    %v4446 = vshll.u32 683565275, %v4443
    %v4447 = vshrl.u32 2475754826, %v4444
    %v4448 = vor.u32 %v4446, %v4447
    %v4449 = vshll.u32 2475754826, %v4443
    %v4450 = vshrl.u32 2131351028, %v4444
    %v4451 = vor.u32 %v4449, %v4450
    %v4452 = vshll.u32 2131351028, %v4443
    %v4453 = vshrl.u32 2102212464, %v4444
    %v4454 = vor.u32 %v4452, %v4453
    %v4455 = vshll.u32 2102212464, %v4443
    %v4456 = vshrl.u32 920167782, %v4444
    %v4457 = vor.u32 %v4455, %v4456
    %v4458 = vshll.u32 920167782, %v4443
    %v4459 = vshrl.u32 1326507024, %v4444
    %v4460 = vor.u32 %v4458, %v4459
    %vm4461 = vcmp.lt.s32.totalorder %v4442, 1
    %vm4462 = vcmp.lt.s32.totalorder %v4442, 2
    %vm4463 = vcmp.lt.s32.totalorder %v4442, 3
    %vm4464 = vcmp.lt.s32.totalorder %v4442, 4
    %v4465 = vsel %vm4461, %v4445, %v4448
    %v4466 = vsel %vm4464, %v4454, 2102212464
    %v4467 = vsel %vm4463, %v4451, %v4466
    %v4468 = vsel %vm4462, %v4465, %v4467
    %v4469 = vsel %vm4461, %v4448, %v4451
    %v4470 = vsel %vm4464, %v4457, 920167782
    %v4471 = vsel %vm4463, %v4454, %v4470
    %v4472 = vsel %vm4462, %v4469, %v4471
    %v4473 = vsel %vm4461, %v4451, %v4454
    %v4474 = vsel %vm4464, %v4460, 1326507024
    %v4475 = vsel %vm4463, %v4457, %v4474
    %v4476 = vsel %vm4462, %v4473, %v4475
    %v4477 = vshll.u32 %v4437, 8
    %v4478 = vand.u32 %v4477, 65535
    %v4479 = vshrl.u32 %v4477, 16
    %v4480 = vand.u32 %v4476, 65535
    %v4481 = vshrl.u32 %v4476, 16
    %v4482 = vmul.u32 %v4478, %v4480
    %v4483 = vmul.u32 %v4478, %v4481
    %v4484 = vmul.u32 %v4479, %v4480
    %v4485 = vmul.u32 %v4479, %v4481
    %v4486 = vshll.u32 %v4483, 16
    %v4487 = vshrl.u32 %v4483, 16
    %v4488 = vshll.u32 %v4484, 16
    %v4489 = vshrl.u32 %v4484, 16
    %vm4490 = vc.u32 %v4482, %v4486
    %v4491 = vsel %vm4490, 1, 0
    %v4492 = vadd.s32 %v4482, %v4486
    %v4493 = vadd.s32 %v4485, %v4491
    %vm4494 = vc.u32 %v4492, %v4488
    %v4495 = vsel %vm4494, 1, 0
    %v4496 = vadd.s32 %v4492, %v4488
    %v4497 = vadd.s32 %v4493, %v4495
    %v4498 = vadd.s32 %v4497, %v4487
    %v4499 = vadd.s32 %v4498, %v4489
    %v4500 = vand.u32 %v4477, 65535
    %v4501 = vshrl.u32 %v4477, 16
    %v4502 = vand.u32 %v4472, 65535
    %v4503 = vshrl.u32 %v4472, 16
    %v4504 = vmul.u32 %v4500, %v4502
    %v4505 = vmul.u32 %v4500, %v4503
    %v4506 = vmul.u32 %v4501, %v4502
    %v4507 = vmul.u32 %v4501, %v4503
    %v4508 = vshll.u32 %v4505, 16
    %v4509 = vshrl.u32 %v4505, 16
    %v4510 = vshll.u32 %v4506, 16
    %v4511 = vshrl.u32 %v4506, 16
    %vm4512 = vc.u32 %v4504, %v4508
    %v4513 = vsel %vm4512, 1, 0
    %v4514 = vadd.s32 %v4504, %v4508
    %v4515 = vadd.s32 %v4507, %v4513
    %vm4516 = vc.u32 %v4514, %v4510
    %v4517 = vsel %vm4516, 1, 0
    %v4518 = vadd.s32 %v4514, %v4510
    %v4519 = vadd.s32 %v4515, %v4517
    %v4520 = vadd.s32 %v4519, %v4509
    %v4521 = vadd.s32 %v4520, %v4511
    %v4522 = vmul.u32 %v4477, %v4468
    %v4523 = vadd.s32 %v4499, %v4518
    %vm4524 = vc.u32 %v4499, %v4518
    %v4525 = vadd.s32 %v4521, 1
    %v4526 = vsel %vm4524, %v4525, %v4521
    %v4527 = vadd.s32 %v4522, %v4526
    %v4528 = vadd.s32 %v4527, 536870912
    %v4529 = vshrl.u32 %v4528, 30
    %v4530 = vshll.u32 %v4529, 30
    %v4531 = vsub.s32 %v4527, %v4530
    %vm4532 = vcmp.lt.s32.totalorder %v4531, 0
    %v4533 = vsub.s32 0, %v4531
    %v4534 = vsel %vm4532, %v4533, %v4531
    %v4535 = vclz %v4534
    %v4536 = vsub.s32 %v4535, 2
    %vm4537 = vcmp.gt.s32.totalorder 0, %v4536
    %v4538 = vsel %vm4537, 0, %v4536
    %v4539 = vsub.s32 32, %v4538
    %v4540 = vshll.u32 %v4531, %v4538
    %v4541 = vshrl.u32 %v4523, %v4539
    %v4542 = vor.u32 %v4540, %v4541
    %v4543 = vsub.s32 4294967266, %v4538
    %v4544 = vadd.s32 %v4543, 127
    %v4545 = vshll.u32 %v4544, 23
    %v4546 = vor.u32 4788187, %v4545
    %v4547 = vand.u32 2147483647, %v4546
    %v4549 = vcvt.s32.f32 %v4542
    %v4550 = vmul.f32 %v4549, %v4547
    %v4551 = vxor.u32 %v4550, 2147483648
    %v4552 = vsel %vm4431, %v4551, %v4550
    %v4553 = vsub.s32 4, %v4529
    %v4554 = vsel %vm4431, %v4553, %v4529
    %v4555 = vsel %vm4430, %v85, %v4552
    %v4556 = vsel %vm4430, 0, %v4554
    %v4557 = vmul.f32 %v4555, %v4555
    %v4558 = vmul.f32 %v4557, -0.001358992
    %v4559 = vadd.f32 %v4558, 0.041655596
    %v4560 = vmul.f32 %v4557, %v4559
    %v4561 = vadd.f32 %v4560, -0.4999988
    %v4562 = vmul.f32 %v4557, %v4561
    %v4563 = vadd.f32 1.0, %v4562
    %v4564 = vmul.f32 %v4555, %v4555
    %v4565 = vmul.f32 %v4564, -0.00019511016
    %v4566 = vadd.f32 %v4565, 0.008332121
    %v4567 = vmul.f32 %v4564, %v4566
    %v4568 = vadd.f32 %v4567, -0.16666654
    %v4569 = vmul.f32 %v4564, %v4568
    %v4570 = vadd.f32 %v4569, 1.0
    %v4571 = vmul.f32 %v4570, %v4555
    %vm4572 = vweird.f32 %v85
    %v4573 = vadd.s32 %v4556, 3
    %v4574 = vand.u32 %v4573, 3
    %vm4575 = vcmp.lt.s32.totalorder %v4574, 2
    %vm4576 = vcmp.eq.s32.totalorder %v4574, 0
    %v4577 = vxor.u32 %v4571, 2147483648
    %v4578 = vsel %vm4576, %v4563, %v4577
    %vm4579 = vcmp.eq.s32.totalorder %v4574, 2
    %v4580 = vxor.u32 %v4563, 2147483648
    %v4581 = vsel %vm4579, %v4580, %v4571
    %v4582 = vsel %vm4575, %v4578, %v4581
    %v4583 = vsel %vm4572, nan, %v4582
    %v4584 = vand.u32 2147483647, %v86
    %vm4585 = vcmp.le.f32.partialorder %v4584, 0.7853982
    %vm4586 = vcmp.lt.s32.totalorder %v86, 0
    %v4587 = vand.u32 %v86, 2139095040
    %v4588 = vshrl.u32 %v4587, 23
    %v4589 = vsub.s32 %v4588, 127
    %v4590 = vand.u32 2147483647, %v86
    %v4591 = vand.u32 %v4590, 8388607
    %v4592 = vor.u32 %v4591, 8388608
    %v4593 = vsub.s32 0, %v4592
    %v4594 = vadd.s32 %v4589, 1
    %vm4595 = vcmp.gt.s32.totalorder %v4594, 0
    %v4596 = vsel %vm4595, %v4594, 0
    %v4597 = vshrl.u32 %v4596, 5
    %v4598 = vand.u32 %v4596, 31
    %v4599 = vsub.s32 32, %v4598
    %v4600 = vshrl.u32 683565275, %v4599
    %v4601 = vshll.u32 683565275, %v4598
    %v4602 = vshrl.u32 2475754826, %v4599
    %v4603 = vor.u32 %v4601, %v4602
    %v4604 = vshll.u32 2475754826, %v4598
    %v4605 = vshrl.u32 2131351028, %v4599
    %v4606 = vor.u32 %v4604, %v4605
    %v4607 = vshll.u32 2131351028, %v4598
    %v4608 = vshrl.u32 2102212464, %v4599
    %v4609 = vor.u32 %v4607, %v4608
    %v4610 = vshll.u32 2102212464, %v4598
    %v4611 = vshrl.u32 920167782, %v4599
    %v4612 = vor.u32 %v4610, %v4611
    %v4613 = vshll.u32 920167782, %v4598
    %v4614 = vshrl.u32 1326507024, %v4599
    %v4615 = vor.u32 %v4613, %v4614
    %vm4616 = vcmp.lt.s32.totalorder %v4597, 1
    %vm4617 = vcmp.lt.s32.totalorder %v4597, 2
    %vm4618 = vcmp.lt.s32.totalorder %v4597, 3
    %vm4619 = vcmp.lt.s32.totalorder %v4597, 4
    %v4620 = vsel %vm4616, %v4600, %v4603
    %v4621 = vsel %vm4619, %v4609, 2102212464
    %v4622 = vsel %vm4618, %v4606, %v4621
    %v4623 = vsel %vm4617, %v4620, %v4622
    %v4624 = vsel %vm4616, %v4603, %v4606
    %v4625 = vsel %vm4619, %v4612, 920167782
    %v4626 = vsel %vm4618, %v4609, %v4625
    %v4627 = vsel %vm4617, %v4624, %v4626
    %v4628 = vsel %vm4616, %v4606, %v4609
    %v4629 = vsel %vm4619, %v4615, 1326507024
    %v4630 = vsel %vm4618, %v4612, %v4629
    %v4631 = vsel %vm4617, %v4628, %v4630
    %v4632 = vshll.u32 %v4592, 8
    %v4633 = vand.u32 %v4632, 65535
    %v4634 = vshrl.u32 %v4632, 16
    %v4635 = vand.u32 %v4631, 65535
    %v4636 = vshrl.u32 %v4631, 16
    %v4637 = vmul.u32 %v4633, %v4635
    %v4638 = vmul.u32 %v4633, %v4636
    %v4639 = vmul.u32 %v4634, %v4635
    %v4640 = vmul.u32 %v4634, %v4636
    %v4641 = vshll.u32 %v4638, 16
    %v4642 = vshrl.u32 %v4638, 16
    %v4643 = vshll.u32 %v4639, 16
    %v4644 = vshrl.u32 %v4639, 16
    %vm4645 = vc.u32 %v4637, %v4641
    %v4646 = vsel %vm4645, 1, 0
    %v4647 = vadd.s32 %v4637, %v4641
    %v4648 = vadd.s32 %v4640, %v4646
    %vm4649 = vc.u32 %v4647, %v4643
    %v4650 = vsel %vm4649, 1, 0
    %v4651 = vadd.s32 %v4647, %v4643
    %v4652 = vadd.s32 %v4648, %v4650
    %v4653 = vadd.s32 %v4652, %v4642
    %v4654 = vadd.s32 %v4653, %v4644
    %v4655 = vand.u32 %v4632, 65535
    %v4656 = vshrl.u32 %v4632, 16
    %v4657 = vand.u32 %v4627, 65535
    %v4658 = vshrl.u32 %v4627, 16
    %v4659 = vmul.u32 %v4655, %v4657
    %v4660 = vmul.u32 %v4655, %v4658
    %v4661 = vmul.u32 %v4656, %v4657
    %v4662 = vmul.u32 %v4656, %v4658
    %v4663 = vshll.u32 %v4660, 16
    %v4664 = vshrl.u32 %v4660, 16
    %v4665 = vshll.u32 %v4661, 16
    %v4666 = vshrl.u32 %v4661, 16
    %vm4667 = vc.u32 %v4659, %v4663
    %v4668 = vsel %vm4667, 1, 0
    %v4669 = vadd.s32 %v4659, %v4663
    %v4670 = vadd.s32 %v4662, %v4668
    %vm4671 = vc.u32 %v4669, %v4665
    %v4672 = vsel %vm4671, 1, 0
    %v4673 = vadd.s32 %v4669, %v4665
    %v4674 = vadd.s32 %v4670, %v4672
    %v4675 = vadd.s32 %v4674, %v4664
    %v4676 = vadd.s32 %v4675, %v4666
    %v4677 = vmul.u32 %v4632, %v4623
    %v4678 = vadd.s32 %v4654, %v4673
    %vm4679 = vc.u32 %v4654, %v4673
    %v4680 = vadd.s32 %v4676, 1
    %v4681 = vsel %vm4679, %v4680, %v4676
    %v4682 = vadd.s32 %v4677, %v4681
    %v4683 = vadd.s32 %v4682, 536870912
    %v4684 = vshrl.u32 %v4683, 30
    %v4685 = vshll.u32 %v4684, 30
    %v4686 = vsub.s32 %v4682, %v4685
    %vm4687 = vcmp.lt.s32.totalorder %v4686, 0
    %v4688 = vsub.s32 0, %v4686
    %v4689 = vsel %vm4687, %v4688, %v4686
    %v4690 = vclz %v4689
    %v4691 = vsub.s32 %v4690, 2
    %vm4692 = vcmp.gt.s32.totalorder 0, %v4691
    %v4693 = vsel %vm4692, 0, %v4691
    %v4694 = vsub.s32 32, %v4693
    %v4695 = vshll.u32 %v4686, %v4693
    %v4696 = vshrl.u32 %v4678, %v4694
    %v4697 = vor.u32 %v4695, %v4696
    %v4698 = vsub.s32 4294967266, %v4693
    %v4699 = vadd.s32 %v4698, 127
    %v4700 = vshll.u32 %v4699, 23
    %v4701 = vor.u32 4788187, %v4700
    %v4702 = vand.u32 2147483647, %v4701
    %v4704 = vcvt.s32.f32 %v4697
    %v4705 = vmul.f32 %v4704, %v4702
    %v4706 = vxor.u32 %v4705, 2147483648
    %v4707 = vsel %vm4586, %v4706, %v4705
    %v4708 = vsub.s32 4, %v4684
    %v4709 = vsel %vm4586, %v4708, %v4684
    %v4710 = vsel %vm4585, %v86, %v4707
    %v4711 = vsel %vm4585, 0, %v4709
    %v4712 = vmul.f32 %v4710, %v4710
    %v4713 = vmul.f32 %v4712, -0.001358992
    %v4714 = vadd.f32 %v4713, 0.041655596
    %v4715 = vmul.f32 %v4712, %v4714
    %v4716 = vadd.f32 %v4715, -0.4999988
    %v4717 = vmul.f32 %v4712, %v4716
    %v4718 = vadd.f32 1.0, %v4717
    %v4719 = vmul.f32 %v4710, %v4710
    %v4720 = vmul.f32 %v4719, -0.00019511016
    %v4721 = vadd.f32 %v4720, 0.008332121
    %v4722 = vmul.f32 %v4719, %v4721
    %v4723 = vadd.f32 %v4722, -0.16666654
    %v4724 = vmul.f32 %v4719, %v4723
    %v4725 = vadd.f32 %v4724, 1.0
    %v4726 = vmul.f32 %v4725, %v4710
    %vm4727 = vweird.f32 %v86
    %v4728 = vadd.s32 %v4711, 3
    %v4729 = vand.u32 %v4728, 3
    %vm4730 = vcmp.lt.s32.totalorder %v4729, 2
    %vm4731 = vcmp.eq.s32.totalorder %v4729, 0
    %v4732 = vxor.u32 %v4726, 2147483648
    %v4733 = vsel %vm4731, %v4718, %v4732
    %vm4734 = vcmp.eq.s32.totalorder %v4729, 2
    %v4735 = vxor.u32 %v4718, 2147483648
    %v4736 = vsel %vm4734, %v4735, %v4726
    %v4737 = vsel %vm4730, %v4733, %v4736
    %v4738 = vsel %vm4727, nan, %v4737
    %v4739 = vand.u32 2147483647, %v87
    %vm4740 = vcmp.le.f32.partialorder %v4739, 0.7853982
    %vm4741 = vcmp.lt.s32.totalorder %v87, 0
    %v4742 = vand.u32 %v87, 2139095040
    %v4743 = vshrl.u32 %v4742, 23
    %v4744 = vsub.s32 %v4743, 127
    %v4745 = vand.u32 2147483647, %v87
    %v4746 = vand.u32 %v4745, 8388607
    %v4747 = vor.u32 %v4746, 8388608
    %v4748 = vsub.s32 0, %v4747
    %v4749 = vadd.s32 %v4744, 1
    %vm4750 = vcmp.gt.s32.totalorder %v4749, 0
    %v4751 = vsel %vm4750, %v4749, 0
    %v4752 = vshrl.u32 %v4751, 5
    %v4753 = vand.u32 %v4751, 31
    %v4754 = vsub.s32 32, %v4753
    %v4755 = vshrl.u32 683565275, %v4754
    %v4756 = vshll.u32 683565275, %v4753
    %v4757 = vshrl.u32 2475754826, %v4754
    %v4758 = vor.u32 %v4756, %v4757
    %v4759 = vshll.u32 2475754826, %v4753
    %v4760 = vshrl.u32 2131351028, %v4754
    %v4761 = vor.u32 %v4759, %v4760
    %v4762 = vshll.u32 2131351028, %v4753
    %v4763 = vshrl.u32 2102212464, %v4754
    %v4764 = vor.u32 %v4762, %v4763
    %v4765 = vshll.u32 2102212464, %v4753
    %v4766 = vshrl.u32 920167782, %v4754
    %v4767 = vor.u32 %v4765, %v4766
    %v4768 = vshll.u32 920167782, %v4753
    %v4769 = vshrl.u32 1326507024, %v4754
    %v4770 = vor.u32 %v4768, %v4769
    %vm4771 = vcmp.lt.s32.totalorder %v4752, 1
    %vm4772 = vcmp.lt.s32.totalorder %v4752, 2
    %vm4773 = vcmp.lt.s32.totalorder %v4752, 3
    %vm4774 = vcmp.lt.s32.totalorder %v4752, 4
    %v4775 = vsel %vm4771, %v4755, %v4758
    %v4776 = vsel %vm4774, %v4764, 2102212464
    %v4777 = vsel %vm4773, %v4761, %v4776
    %v4778 = vsel %vm4772, %v4775, %v4777
    %v4779 = vsel %vm4771, %v4758, %v4761
    %v4780 = vsel %vm4774, %v4767, 920167782
    %v4781 = vsel %vm4773, %v4764, %v4780
    %v4782 = vsel %vm4772, %v4779, %v4781
    %v4783 = vsel %vm4771, %v4761, %v4764
    %v4784 = vsel %vm4774, %v4770, 1326507024
    %v4785 = vsel %vm4773, %v4767, %v4784
    %v4786 = vsel %vm4772, %v4783, %v4785
    %v4787 = vshll.u32 %v4747, 8
    %v4788 = vand.u32 %v4787, 65535
    %v4789 = vshrl.u32 %v4787, 16
    %v4790 = vand.u32 %v4786, 65535
    %v4791 = vshrl.u32 %v4786, 16
    %v4792 = vmul.u32 %v4788, %v4790
    %v4793 = vmul.u32 %v4788, %v4791
    %v4794 = vmul.u32 %v4789, %v4790
    %v4795 = vmul.u32 %v4789, %v4791
    %v4796 = vshll.u32 %v4793, 16
    %v4797 = vshrl.u32 %v4793, 16
    %v4798 = vshll.u32 %v4794, 16
    %v4799 = vshrl.u32 %v4794, 16
    %vm4800 = vc.u32 %v4792, %v4796
    %v4801 = vsel %vm4800, 1, 0
    %v4802 = vadd.s32 %v4792, %v4796
    %v4803 = vadd.s32 %v4795, %v4801
    %vm4804 = vc.u32 %v4802, %v4798
    %v4805 = vsel %vm4804, 1, 0
    %v4806 = vadd.s32 %v4802, %v4798
    %v4807 = vadd.s32 %v4803, %v4805
    %v4808 = vadd.s32 %v4807, %v4797
    %v4809 = vadd.s32 %v4808, %v4799
    %v4810 = vand.u32 %v4787, 65535
    %v4811 = vshrl.u32 %v4787, 16
    %v4812 = vand.u32 %v4782, 65535
    %v4813 = vshrl.u32 %v4782, 16
    %v4814 = vmul.u32 %v4810, %v4812
    %v4815 = vmul.u32 %v4810, %v4813
    %v4816 = vmul.u32 %v4811, %v4812
    %v4817 = vmul.u32 %v4811, %v4813
    %v4818 = vshll.u32 %v4815, 16
    %v4819 = vshrl.u32 %v4815, 16
    %v4820 = vshll.u32 %v4816, 16
    %v4821 = vshrl.u32 %v4816, 16
    %vm4822 = vc.u32 %v4814, %v4818
    %v4823 = vsel %vm4822, 1, 0
    %v4824 = vadd.s32 %v4814, %v4818
    %v4825 = vadd.s32 %v4817, %v4823
    %vm4826 = vc.u32 %v4824, %v4820
    %v4827 = vsel %vm4826, 1, 0
    %v4828 = vadd.s32 %v4824, %v4820
    %v4829 = vadd.s32 %v4825, %v4827
    %v4830 = vadd.s32 %v4829, %v4819
    %v4831 = vadd.s32 %v4830, %v4821
    %v4832 = vmul.u32 %v4787, %v4778
    %v4833 = vadd.s32 %v4809, %v4828
    %vm4834 = vc.u32 %v4809, %v4828
    %v4835 = vadd.s32 %v4831, 1
    %v4836 = vsel %vm4834, %v4835, %v4831
    %v4837 = vadd.s32 %v4832, %v4836
    %v4838 = vadd.s32 %v4837, 536870912
    %v4839 = vshrl.u32 %v4838, 30
    %v4840 = vshll.u32 %v4839, 30
    %v4841 = vsub.s32 %v4837, %v4840
    %vm4842 = vcmp.lt.s32.totalorder %v4841, 0
    %v4843 = vsub.s32 0, %v4841
    %v4844 = vsel %vm4842, %v4843, %v4841
    %v4845 = vclz %v4844
    %v4846 = vsub.s32 %v4845, 2
    %vm4847 = vcmp.gt.s32.totalorder 0, %v4846
    %v4848 = vsel %vm4847, 0, %v4846
    %v4849 = vsub.s32 32, %v4848
    %v4850 = vshll.u32 %v4841, %v4848
    %v4851 = vshrl.u32 %v4833, %v4849
    %v4852 = vor.u32 %v4850, %v4851
    %v4853 = vsub.s32 4294967266, %v4848
    %v4854 = vadd.s32 %v4853, 127
    %v4855 = vshll.u32 %v4854, 23
    %v4856 = vor.u32 4788187, %v4855
    %v4857 = vand.u32 2147483647, %v4856
    %v4859 = vcvt.s32.f32 %v4852
    %v4860 = vmul.f32 %v4859, %v4857
    %v4861 = vxor.u32 %v4860, 2147483648
    %v4862 = vsel %vm4741, %v4861, %v4860
    %v4863 = vsub.s32 4, %v4839
    %v4864 = vsel %vm4741, %v4863, %v4839
    %v4865 = vsel %vm4740, %v87, %v4862
    %v4866 = vsel %vm4740, 0, %v4864
    %v4867 = vmul.f32 %v4865, %v4865
    %v4868 = vmul.f32 %v4867, -0.001358992
    %v4869 = vadd.f32 %v4868, 0.041655596
    %v4870 = vmul.f32 %v4867, %v4869
    %v4871 = vadd.f32 %v4870, -0.4999988
    %v4872 = vmul.f32 %v4867, %v4871
    %v4873 = vadd.f32 1.0, %v4872
    %v4874 = vmul.f32 %v4865, %v4865
    %v4875 = vmul.f32 %v4874, -0.00019511016
    %v4876 = vadd.f32 %v4875, 0.008332121
    %v4877 = vmul.f32 %v4874, %v4876
    %v4878 = vadd.f32 %v4877, -0.16666654
    %v4879 = vmul.f32 %v4874, %v4878
    %v4880 = vadd.f32 %v4879, 1.0
    %v4881 = vmul.f32 %v4880, %v4865
    %vm4882 = vweird.f32 %v87
    %v4883 = vadd.s32 %v4866, 3
    %v4884 = vand.u32 %v4883, 3
    %vm4885 = vcmp.lt.s32.totalorder %v4884, 2
    %vm4886 = vcmp.eq.s32.totalorder %v4884, 0
    %v4887 = vxor.u32 %v4881, 2147483648
    %v4888 = vsel %vm4886, %v4873, %v4887
    %vm4889 = vcmp.eq.s32.totalorder %v4884, 2
    %v4890 = vxor.u32 %v4873, 2147483648
    %v4891 = vsel %vm4889, %v4890, %v4881
    %v4892 = vsel %vm4885, %v4888, %v4891
    %v4893 = vsel %vm4882, nan, %v4892
    %v4894 = vand.u32 2147483647, %v88
    %vm4895 = vcmp.le.f32.partialorder %v4894, 0.7853982
    %vm4896 = vcmp.lt.s32.totalorder %v88, 0
    %v4897 = vand.u32 %v88, 2139095040
    %v4898 = vshrl.u32 %v4897, 23
    %v4899 = vsub.s32 %v4898, 127
    %v4900 = vand.u32 2147483647, %v88
    %v4901 = vand.u32 %v4900, 8388607
    %v4902 = vor.u32 %v4901, 8388608
    %v4903 = vsub.s32 0, %v4902
    %v4904 = vadd.s32 %v4899, 1
    %vm4905 = vcmp.gt.s32.totalorder %v4904, 0
    %v4906 = vsel %vm4905, %v4904, 0
    %v4907 = vshrl.u32 %v4906, 5
    %v4908 = vand.u32 %v4906, 31
    %v4909 = vsub.s32 32, %v4908
    %v4910 = vshrl.u32 683565275, %v4909
    %v4911 = vshll.u32 683565275, %v4908
    %v4912 = vshrl.u32 2475754826, %v4909
    %v4913 = vor.u32 %v4911, %v4912
    %v4914 = vshll.u32 2475754826, %v4908
    %v4915 = vshrl.u32 2131351028, %v4909
    %v4916 = vor.u32 %v4914, %v4915
    %v4917 = vshll.u32 2131351028, %v4908
    %v4918 = vshrl.u32 2102212464, %v4909
    %v4919 = vor.u32 %v4917, %v4918
    %v4920 = vshll.u32 2102212464, %v4908
    %v4921 = vshrl.u32 920167782, %v4909
    %v4922 = vor.u32 %v4920, %v4921
    %v4923 = vshll.u32 920167782, %v4908
    %v4924 = vshrl.u32 1326507024, %v4909
    %v4925 = vor.u32 %v4923, %v4924
    %vm4926 = vcmp.lt.s32.totalorder %v4907, 1
    %vm4927 = vcmp.lt.s32.totalorder %v4907, 2
    %vm4928 = vcmp.lt.s32.totalorder %v4907, 3
    %vm4929 = vcmp.lt.s32.totalorder %v4907, 4
    %v4930 = vsel %vm4926, %v4910, %v4913
    %v4931 = vsel %vm4929, %v4919, 2102212464
    %v4932 = vsel %vm4928, %v4916, %v4931
    %v4933 = vsel %vm4927, %v4930, %v4932
    %v4934 = vsel %vm4926, %v4913, %v4916
    %v4935 = vsel %vm4929, %v4922, 920167782
    %v4936 = vsel %vm4928, %v4919, %v4935
    %v4937 = vsel %vm4927, %v4934, %v4936
    %v4938 = vsel %vm4926, %v4916, %v4919
    %v4939 = vsel %vm4929, %v4925, 1326507024
    %v4940 = vsel %vm4928, %v4922, %v4939
    %v4941 = vsel %vm4927, %v4938, %v4940
    %v4942 = vshll.u32 %v4902, 8
    %v4943 = vand.u32 %v4942, 65535
    %v4944 = vshrl.u32 %v4942, 16
    %v4945 = vand.u32 %v4941, 65535
    %v4946 = vshrl.u32 %v4941, 16
    %v4947 = vmul.u32 %v4943, %v4945
    %v4948 = vmul.u32 %v4943, %v4946
    %v4949 = vmul.u32 %v4944, %v4945
    %v4950 = vmul.u32 %v4944, %v4946
    %v4951 = vshll.u32 %v4948, 16
    %v4952 = vshrl.u32 %v4948, 16
    %v4953 = vshll.u32 %v4949, 16
    %v4954 = vshrl.u32 %v4949, 16
    %vm4955 = vc.u32 %v4947, %v4951
    %v4956 = vsel %vm4955, 1, 0
    %v4957 = vadd.s32 %v4947, %v4951
    %v4958 = vadd.s32 %v4950, %v4956
    %vm4959 = vc.u32 %v4957, %v4953
    %v4960 = vsel %vm4959, 1, 0
    %v4961 = vadd.s32 %v4957, %v4953
    %v4962 = vadd.s32 %v4958, %v4960
    %v4963 = vadd.s32 %v4962, %v4952
    %v4964 = vadd.s32 %v4963, %v4954
    %v4965 = vand.u32 %v4942, 65535
    %v4966 = vshrl.u32 %v4942, 16
    %v4967 = vand.u32 %v4937, 65535
    %v4968 = vshrl.u32 %v4937, 16
    %v4969 = vmul.u32 %v4965, %v4967
    %v4970 = vmul.u32 %v4965, %v4968
    %v4971 = vmul.u32 %v4966, %v4967
    %v4972 = vmul.u32 %v4966, %v4968
    %v4973 = vshll.u32 %v4970, 16
    %v4974 = vshrl.u32 %v4970, 16
    %v4975 = vshll.u32 %v4971, 16
    %v4976 = vshrl.u32 %v4971, 16
    %vm4977 = vc.u32 %v4969, %v4973
    %v4978 = vsel %vm4977, 1, 0
    %v4979 = vadd.s32 %v4969, %v4973
    %v4980 = vadd.s32 %v4972, %v4978
    %vm4981 = vc.u32 %v4979, %v4975
    %v4982 = vsel %vm4981, 1, 0
    %v4983 = vadd.s32 %v4979, %v4975
    %v4984 = vadd.s32 %v4980, %v4982
    %v4985 = vadd.s32 %v4984, %v4974
    %v4986 = vadd.s32 %v4985, %v4976
    %v4987 = vmul.u32 %v4942, %v4933
    %v4988 = vadd.s32 %v4964, %v4983
    %vm4989 = vc.u32 %v4964, %v4983
    %v4990 = vadd.s32 %v4986, 1
    %v4991 = vsel %vm4989, %v4990, %v4986
    %v4992 = vadd.s32 %v4987, %v4991
    %v4993 = vadd.s32 %v4992, 536870912
    %v4994 = vshrl.u32 %v4993, 30
    %v4995 = vshll.u32 %v4994, 30
    %v4996 = vsub.s32 %v4992, %v4995
    %vm4997 = vcmp.lt.s32.totalorder %v4996, 0
    %v4998 = vsub.s32 0, %v4996
    %v4999 = vsel %vm4997, %v4998, %v4996
    %v5000 = vclz %v4999
    %v5001 = vsub.s32 %v5000, 2
    %vm5002 = vcmp.gt.s32.totalorder 0, %v5001
    %v5003 = vsel %vm5002, 0, %v5001
    %v5004 = vsub.s32 32, %v5003
    %v5005 = vshll.u32 %v4996, %v5003
    %v5006 = vshrl.u32 %v4988, %v5004
    %v5007 = vor.u32 %v5005, %v5006
    %v5008 = vsub.s32 4294967266, %v5003
    %v5009 = vadd.s32 %v5008, 127
    %v5010 = vshll.u32 %v5009, 23
    %v5011 = vor.u32 4788187, %v5010
    %v5012 = vand.u32 2147483647, %v5011
    %v5014 = vcvt.s32.f32 %v5007
    %v5015 = vmul.f32 %v5014, %v5012
    %v5016 = vxor.u32 %v5015, 2147483648
    %v5017 = vsel %vm4896, %v5016, %v5015
    %v5018 = vsub.s32 4, %v4994
    %v5019 = vsel %vm4896, %v5018, %v4994
    %v5020 = vsel %vm4895, %v88, %v5017
    %v5021 = vsel %vm4895, 0, %v5019
    %v5022 = vmul.f32 %v5020, %v5020
    %v5023 = vmul.f32 %v5022, -0.001358992
    %v5024 = vadd.f32 %v5023, 0.041655596
    %v5025 = vmul.f32 %v5022, %v5024
    %v5026 = vadd.f32 %v5025, -0.4999988
    %v5027 = vmul.f32 %v5022, %v5026
    %v5028 = vadd.f32 1.0, %v5027
    %v5029 = vmul.f32 %v5020, %v5020
    %v5030 = vmul.f32 %v5029, -0.00019511016
    %v5031 = vadd.f32 %v5030, 0.008332121
    %v5032 = vmul.f32 %v5029, %v5031
    %v5033 = vadd.f32 %v5032, -0.16666654
    %v5034 = vmul.f32 %v5029, %v5033
    %v5035 = vadd.f32 %v5034, 1.0
    %v5036 = vmul.f32 %v5035, %v5020
    %vm5037 = vweird.f32 %v88
    %v5038 = vadd.s32 %v5021, 3
    %v5039 = vand.u32 %v5038, 3
    %vm5040 = vcmp.lt.s32.totalorder %v5039, 2
    %vm5041 = vcmp.eq.s32.totalorder %v5039, 0
    %v5042 = vxor.u32 %v5036, 2147483648
    %v5043 = vsel %vm5041, %v5028, %v5042
    %vm5044 = vcmp.eq.s32.totalorder %v5039, 2
    %v5045 = vxor.u32 %v5028, 2147483648
    %v5046 = vsel %vm5044, %v5045, %v5036
    %v5047 = vsel %vm5040, %v5043, %v5046
    %v5048 = vsel %vm5037, nan, %v5047
    %5049 = vst [vmem:[#allocation5] sm:$0xff] %v243
    %5050 = vst [vmem:[#allocation5 + $0x8] sm:$0xff] %v398
    %5051 = vst [vmem:[#allocation5 + $0x10] sm:$0xff] %v553
    %5052 = vst [vmem:[#allocation5 + $0x18] sm:$0xff] %v708
    %5053 = vst [vmem:[#allocation5 + $0x20] sm:$0xff] %v863
    %5054 = vst [vmem:[#allocation5 + $0x28] sm:$0xff] %v1018
    %5055 = vst [vmem:[#allocation5 + $0x30] sm:$0xff] %v1173
    %5056 = vst [vmem:[#allocation5 + $0x38] sm:$0xff] %v1328
    %5057 = vst [vmem:[#allocation5 + $0x40] sm:$0xff] %v1483
    %5058 = vst [vmem:[#allocation5 + $0x48] sm:$0xff] %v1638
    %5059 = vst [vmem:[#allocation5 + $0x50] sm:$0xff] %v1793
    %5060 = vst [vmem:[#allocation5 + $0x58] sm:$0xff] %v1948
    %5061 = vst [vmem:[#allocation5 + $0x60] sm:$0xff] %v2103
    %5062 = vst [vmem:[#allocation5 + $0x68] sm:$0xff] %v2258
    %5063 = vst [vmem:[#allocation5 + $0x70] sm:$0xff] %v2413
    %5064 = vst [vmem:[#allocation5 + $0x78] sm:$0xff] %v2568
    %5065 = vst [vmem:[#allocation5 + $0x80] sm:$0xff] %v2723
    %5066 = vst [vmem:[#allocation5 + $0x88] sm:$0xff] %v2878
    %5067 = vst [vmem:[#allocation5 + $0x90] sm:$0xff] %v3033
    %5068 = vst [vmem:[#allocation5 + $0x98] sm:$0xff] %v3188
    %5069 = vst [vmem:[#allocation5 + $0xa0] sm:$0xff] %v3343
    %5070 = vst [vmem:[#allocation5 + $0xa8] sm:$0xff] %v3498
    %5071 = vst [vmem:[#allocation5 + $0xb0] sm:$0xff] %v3653
    %5072 = vst [vmem:[#allocation5 + $0xb8] sm:$0xff] %v3808
    %5073 = vst [vmem:[#allocation5 + $0xc0] sm:$0xff] %v3963
    %5074 = vst [vmem:[#allocation5 + $0xc8] sm:$0xff] %v4118
    %5075 = vst [vmem:[#allocation5 + $0xd0] sm:$0xff] %v4273
    %5076 = vst [vmem:[#allocation5 + $0xd8] sm:$0xff] %v4428
    %5077 = vst [vmem:[#allocation5 + $0xe0] sm:$0xff] %v4583
    %5078 = vst [vmem:[#allocation5 + $0xe8] sm:$0xff] %v4738
    %5079 = vst [vmem:[#allocation5 + $0xf0] sm:$0xff] %v4893
    %5080 = vst [vmem:[#allocation5 + $0xf8] sm:$0xff] %v5048
    // Predicated region
    $region10: #{tpu_custom_call.1} parent=1 // pred_check
      _
    $region11: #{tpu_custom_call.1} parent=1 // pred_check_branch
      %5082 = sbr.rel (0) target = $region13
    $region12: #{tpu_custom_call.1} parent=1 // pred_region
      %5084 = vsyncadd [#allocation4], 0
      %s5085 = sshll.u32 [#allocation5], 4
      %s5086 = int_to_ptr.vmem [resolvable:$true] %s5085
      %s5087 = sshll.u32 %s1, 4
      %s5088 = int_to_ptr.hbm [resolvable:$true] %s5087
      %5093 = dma.vmem_to_hbm [thread:$0]  %s5086, 4096, %s5088, [#allocation4], 256, 256, 16
    $region13: #{tpu_custom_call.1} parent=1 // pred_fallthru
      _
    // Predicated region
    $region14: #{tpu_custom_call.1} parent=1 // pred_check
      _
    $region15: #{tpu_custom_call.1} parent=1 // pred_check_branch
      %5095 = sbr.rel (0) target = $region17
    $region16: #{tpu_custom_call.1} parent=1 // pred_region
      %5097 = dma.done [#allocation4], 4096
    $region17: #{tpu_custom_call.1} parent=1 // pred_fallthru
      _
    %5098 = vsyncpa [#allocation3], 1
    %5099 = vsyncpa [#allocation4], 1

</llo_original>
